<compile_context>
chip_gen: v7x
topology: tpu7x:2x2x1
jax: 0.10.0
libtpu: 0.0.40
codegen_flags: <defaults>
</compile_context>

<pallas_src>
import functools

import jax
import jax.numpy as jnp
from jax.experimental import pallas as pl
from jax.experimental.pallas import tpu as pltpu

_BN_EPS = 1e-5
_VMEM_LIMIT_BYTES = 48 * 1024 * 1024  # raises v5e/v6e scoped defaults, fits v7x's 64 MiB


def _nsplit_for(n_imgs):
    # Leading "parallel" grid axis (v7x megacore) with per-core partial stats.
    return 2 if (n_imgs % 2 == 0 and n_imgs >= 2) else 1


# ---------------------------------------------------------------------------
# Pass 1a: generic conv (K-concatenated tap matmul, bf16 MXU / f32 accumulate)
#          + per-channel sum / sum-of-squares partials.
# Used for conv1 (3x3, stride s, pad 1) and the 1x1 projection shortcut.
# ---------------------------------------------------------------------------
def _conv_stats_kernel(taps, Ho, Wo, x_ref, w_ref, y_ref, psum_ref, psq_ref):
    @pl.when(pl.program_id(1) == 0)
    def _init():
        psum_ref[...] = jnp.zeros_like(psum_ref)
        psq_ref[...] = jnp.zeros_like(psq_ref)

    m = Ho * Wo
    # Gather the k*k shifted tap windows and concatenate them along the
    # contraction axis -> ONE matmul with K = k*k*Cin (instead of k*k matmuls
    # with K = Cin, which underfill the MXU contraction and sweep the
    # accumulator k*k times).
    cols = [x_ref[p, r0:r0 + Ho, c0:c0 + Wo, :] for (p, r0, c0) in taps]
    patch = cols[0] if len(cols) == 1 else jnp.concatenate(cols, axis=-1)
    patch = patch.reshape(m, patch.shape[-1])                 # (M, T*Cin) bf16
    acc = jnp.dot(patch, w_ref[...], preferred_element_type=jnp.float32)

    y_ref[0] = acc.astype(y_ref.dtype)                        # pre-BN output, bf16
    psum_ref[0] = psum_ref[0] + jnp.sum(acc, axis=0, keepdims=True)
    psq_ref[0] = psq_ref[0] + jnp.sum(acc * acc, axis=0, keepdims=True)


def conv_bn_stats(src, w_cat, taps, n_imgs, Ho, Wo, cout):
    """src: (N*P, Hs, Ws, Cin) bf16 tap-source planes; w_cat: (T*Cin, Cout) bf16.

    Returns y (N, Ho*Wo, Cout) bf16 pre-BN conv output plus per-channel sum and
    sum-of-squares ((1, Cout) f32 each), accumulated over all N*Ho*Wo rows.
    """
    NP, Hs, Ws, cin = src.shape
    P = NP // n_imgs
    m = Ho * Wo
    nsplit = _nsplit_for(n_imgs)
    n_per = n_imgs // nsplit
    kernel = functools.partial(_conv_stats_kernel, taps, Ho, Wo)
    y, psum, psq = pl.pallas_call(
        kernel,
        grid=(nsplit, n_per),
        out_shape=(jax.ShapeDtypeStruct((n_imgs, m, cout), jnp.bfloat16),
                   jax.ShapeDtypeStruct((nsplit, 1, cout), jnp.float32),
                   jax.ShapeDtypeStruct((nsplit, 1, cout), jnp.float32)),
        in_specs=[
            # One image's tap-source planes per step (double-buffered DMA).
            pl.BlockSpec((P, Hs, Ws, cin), lambda s, n: (s * n_per + n, 0, 0, 0)),
            # Concatenated tap weights: constant index_map -> fetched once and
            # resident in VMEM across the whole grid.
            pl.BlockSpec((w_cat.shape[0], cout), lambda s, n: (0, 0)),
        ],
        out_specs=(
            pl.BlockSpec((1, m, cout), lambda s, n: (s * n_per + n, 0, 0)),
            # Per-split partial stats: revisited along the "arbitrary" axis only.
            pl.BlockSpec((1, 1, cout), lambda s, n: (s, 0, 0)),
            pl.BlockSpec((1, 1, cout), lambda s, n: (s, 0, 0)),
        ),
        compiler_params=pltpu.CompilerParams(
            dimension_semantics=("parallel", "arbitrary"),
            vmem_limit_bytes=_VMEM_LIMIT_BYTES),
    )(src, w_cat)
    # Fold the per-core partials (tiny op, plain JAX).
    return y, jnp.sum(psum, axis=0), jnp.sum(psq, axis=0)


# ---------------------------------------------------------------------------
# Pass 1b: conv2 (3x3, stride 1, pad 1) with BN1-finalize + ReLU + zero-padding
#          fused in, plus BN2 partial stats.  No HBM round trip for h1.
# ---------------------------------------------------------------------------
def _conv2_fused_kernel(Ho, Wo, y1_ref, sc1_ref, sh1_ref, w_ref,
                        y_ref, psum_ref, psq_ref, pad_ref):
    @pl.when(pl.program_id(1) == 0)
    def _init():
        psum_ref[...] = jnp.zeros_like(psum_ref)
        psq_ref[...] = jnp.zeros_like(psq_ref)
        pad_ref[...] = jnp.zeros_like(pad_ref)   # zero border; interior overwritten below

    m = Ho * Wo
    c = sc1_ref.shape[-1]
    # BN1 finalize + ReLU on the loaded conv1 tile (f32 math), written into the
    # interior of the zero-bordered VMEM scratch: conv2 gets its padded input
    # without any HBM write / jnp.pad / padded re-read.
    h = jnp.maximum(y1_ref[0].astype(jnp.float32) * sc1_ref[...] + sh1_ref[...], 0.0)
    pad_ref[1:Ho + 1, 1:Wo + 1, :] = h.reshape(Ho, Wo, c)

    cols = [pad_ref[dy:dy + Ho, dx:dx + Wo, :] for dy in range(3) for dx in range(3)]
    patch = jnp.concatenate(cols, axis=-1).reshape(m, 9 * c).astype(jnp.bfloat16)
    acc = jnp.dot(patch, w_ref[...], preferred_element_type=jnp.float32)

    y_ref[0] = acc.astype(y_ref.dtype)
    psum_ref[0] = psum_ref[0] + jnp.sum(acc, axis=0, keepdims=True)
    psq_ref[0] = psq_ref[0] + jnp.sum(acc * acc, axis=0, keepdims=True)


def conv2_bn_stats_fused(y1, sc1, sh1, w_cat, n_imgs, Ho, Wo, cout):
    m = Ho * Wo
    nsplit = _nsplit_for(n_imgs)
    n_per = n_imgs // nsplit
    kernel = functools.partial(_conv2_fused_kernel, Ho, Wo)
    y, psum, psq = pl.pallas_call(
        kernel,
        grid=(nsplit, n_per),
        out_shape=(jax.ShapeDtypeStruct((n_imgs, m, cout), jnp.bfloat16),
                   jax.ShapeDtypeStruct((nsplit, 1, cout), jnp.float32),
                   jax.ShapeDtypeStruct((nsplit, 1, cout), jnp.float32)),
        in_specs=[
            pl.BlockSpec((1, m, cout), lambda s, n: (s * n_per + n, 0, 0)),
            pl.BlockSpec((1, cout), lambda s, n: (0, 0)),     # BN1 scale (resident)
            pl.BlockSpec((1, cout), lambda s, n: (0, 0)),     # BN1 shift (resident)
            pl.BlockSpec((9 * cout, cout), lambda s, n: (0, 0)),
        ],
        out_specs=(
            pl.BlockSpec((1, m, cout), lambda s, n: (s * n_per + n, 0, 0)),
            pl.BlockSpec((1, 1, cout), lambda s, n: (s, 0, 0)),
            pl.BlockSpec((1, 1, cout), lambda s, n: (s, 0, 0)),
        ),
        # f32 padded scratch: unaligned interior store stays on the plain
        # masked-store path (no packed-sublane update); cast to bf16 at matmul.
        scratch_shapes=[pltpu.VMEM((Ho + 2, Wo + 2, cout), jnp.float32)],
        compiler_params=pltpu.CompilerParams(
            dimension_semantics=("parallel", "arbitrary"),
            vmem_limit_bytes=_VMEM_LIMIT_BYTES),
    )(y1, sc1, sh1, w_cat)
    return y, jnp.sum(psum, axis=0), jnp.sum(psq, axis=0)


# ---------------------------------------------------------------------------
# BN scale/shift finalize — tiny op, hoisted to plain JAX (review item).
# ---------------------------------------------------------------------------
def bn_scale_shift(ssum, ssq, gamma, beta, count):
    mean = ssum / count
    var = ssq / count - mean * mean                  # biased batch variance (f32)
    scale = gamma.reshape(1, -1).astype(jnp.float32) * jax.lax.rsqrt(var + _BN_EPS)
    shift = beta.reshape(1, -1).astype(jnp.float32) - mean * scale
    return scale, shift


# ---------------------------------------------------------------------------
# Pass 2: BN2 finalize + shortcut (raw or BN'd projection) + ReLU, lane-dense.
# ---------------------------------------------------------------------------
def _apply_kernel(mode, y_ref, sc_ref, sh_ref, *rest):
    out_ref = rest[-1]
    out = y_ref[0].astype(jnp.float32) * sc_ref[...] + sh_ref[...]
    if mode == 0:                                          # identity residual
        out = out + rest[0][0].astype(jnp.float32)
    else:                                                  # BN'd projection shortcut
        out = out + rest[0][0].astype(jnp.float32) * rest[1][...] + rest[2][...]
    out_ref[0] = jnp.maximum(out, 0.0)


def bn_residual_apply(y2, sc2, sh2, n_imgs, m, c, residual=None, residual_bn=None):
    # Lane-dense store layout: (M, C) -> (M*C/128, 128) is a free reshape of
    # contiguous NHWC data; per-channel vectors tile to 128 lanes (purely
    # elementwise, so legal).  C >= 128 is already lane-dense and is untouched.
    if c % 128 != 0 and 128 % c == 0 and (m * c) % 128 == 0:
        rows, lanes, rep = (m * c) // 128, 128, 128 // c
    else:
        rows, lanes, rep = m, c, 1

    def pack(a):
        return a.reshape(n_imgs, rows, lanes)

    def vec(v):
        v = v.astype(jnp.float32)
        return jnp.tile(v, (1, rep)) if rep > 1 else v

    row_spec = pl.BlockSpec((1, rows, lanes), lambda n: (n, 0, 0))
    vec_spec = pl.BlockSpec((1, lanes), lambda n: (0, 0))

    args = [pack(y2), vec(sc2), vec(sh2)]
    in_specs = [row_spec, vec_spec, vec_spec]
    if residual is not None:
        mode = 0
        args.append(pack(residual.astype(jnp.float32)))
        in_specs.append(row_spec)
    else:
        mode = 1
        ys, scs, shs = residual_bn
        args += [pack(ys), vec(scs), vec(shs)]
        in_specs += [row_spec, vec_spec, vec_spec]

    out = pl.pallas_call(
        functools.partial(_apply_kernel, mode),
        grid=(n_imgs,),
        out_shape=jax.ShapeDtypeStruct((n_imgs, rows, lanes), jnp.float32),
        in_specs=in_specs,
        out_specs=row_spec,
        compiler_params=pltpu.CompilerParams(
            dimension_semantics=("parallel",),          # megacore on v7x
            vmem_limit_bytes=_VMEM_LIMIT_BYTES),
    )(*args)
    return out.reshape(n_imgs, m, c)


# ---------------------------------------------------------------------------
# Plain-JAX glue: tap-source planes (1x relayout, NOT k*k im2col in HBM).
# ---------------------------------------------------------------------------
def _prep_conv_source(x_nhwc, ksize, stride, padding):
    """Returns (src, taps): src (N*P, Hs, Ws, C) bf16; taps is a static tuple of
    (plane, row_off, col_off) so every in-kernel tap slice is unit-stride."""
    N, H, W, C = x_nhwc.shape
    xb = x_nhwc.astype(jnp.bfloat16)

    if ksize == 1:
        assert padding == 0
        if stride > 1:
            xb = xb[:, ::stride, ::stride, :]            # tiny 1x1-shortcut gather
        return xb, ((0, 0, 0),)

    assert ksize == 3 and padding == 1
    xp = jnp.pad(xb, ((0, 0), (padding, padding), (padding, padding), (0, 0)))
    if stride == 1:
        taps = tuple((0, dy, dx) for dy in range(3) for dx in range(3))
        return xp, taps

    assert stride == 2 and H % 2 == 0 and W % 2 == 0
    # Phase-split the padded input into 4 even/odd planes so stride-2 taps are
    # unit-stride slices in the kernel.  (Only conv1 of stride-2 blocks pays
    # this extra pass; conv2 needs no XLA-side prep at all after the fusion.)
    planes = [xp[:, py::2, px::2, :] for py in range(2) for px in range(2)]
    src = jnp.stack(planes, axis=1)
    src = src.reshape(N * 4, src.shape[2], src.shape[3], C)
    taps = tuple(((dy % 2) * 2 + (dx % 2), dy // 2, dx // 2)
                 for dy in range(3) for dx in range(3))
    return src, taps


# ---------------------------------------------------------------------------
# BasicBlock forward
# ---------------------------------------------------------------------------
def basic_block_forward_nhwc(x, params, stride):
    """Transpose-free NHWC entry point (kernel-boundary layout)."""
    N, H, W, cin = x.shape
    cout = params["w1"].shape[-1]
    Ho = (H + 2 - 3) // stride + 1
    Wo = (W + 2 - 3) // stride + 1
    m = Ho * Wo
    count = float(N * m)                                 # global BN row count

    # conv1 (3x3, stride, pad 1) -> pre-BN y1 (bf16) + BN1 batch stats
    src1, taps1 = _prep_conv_source(x, 3, stride, 1)
    w1 = params["w1"].reshape(9 * cin, cout).astype(jnp.bfloat16)
    y1, s1, q1 = conv_bn_stats(src1, w1, taps1, N, Ho, Wo, cout)
    sc1, sh1 = bn_scale_shift(s1, q1, params["g1"], params["b1"], count)

    # conv2 (3x3, stride 1, pad 1) with BN1-apply + ReLU + zero-pad fused in
    w2 = params["w2"].reshape(9 * cout, cout).astype(jnp.bfloat16)
    y2, s2, q2 = conv2_bn_stats_fused(y1, sc1, sh1, w2, N, Ho, Wo, cout)
    sc2, sh2 = bn_scale_shift(s2, q2, params["g2"], params["b2"], count)

    # BN2 finalize + shortcut + add + ReLU in one lane-dense apply pass
    if stride != 1 or cin != cout:
        srcs, tapss = _prep_conv_source(x, 1, stride, 0)
        ws = params["ws"].reshape(cin, cout).astype(jnp.bfloat16)
        ys, ss, qs = conv_bn_stats(srcs, ws, tapss, N, Ho, Wo, cout)
        scs, shs = bn_scale_shift(ss, qs, params["gs"], params["bs"], count)
        out = bn_residual_apply(y2, sc2, sh2, N, m, cout,
                                residual_bn=(ys, scs, shs))
    else:
        out = bn_residual_apply(y2, sc2, sh2, N, m, cout, residual=x)
    return out.reshape(N, Ho, Wo, cout)


def basic_block_forward(x_nchw, params, stride):
    """PyTorch-conformant NCHW interface (transposes only at the boundary)."""
    x = jnp.transpose(x_nchw, (0, 2, 3, 1)).astype(jnp.float32)
    out = basic_block_forward_nhwc(x, params, stride)
    return jnp.transpose(out, (0, 3, 1, 2))


# ---------------------------------------------------------------------------
# Pure-JAX reference (f32 end to end) for correctness checking
# ---------------------------------------------------------------------------
def _conv_ref(x_nhwc, w_hwio, stride, padding):
    return jax.lax.conv_general_dilated(
        x_nhwc, w_hwio, window_strides=(stride, stride),
        padding=((padding, padding), (padding, padding)),
        dimension_numbers=("NHWC", "HWIO", "NHWC"))


def _bn_ref(y, gamma, beta):
    mean = y.mean(axis=(0, 1, 2))
    var = jnp.square(y - mean).mean(axis=(0, 1, 2))
    return gamma * (y - mean) / jnp.sqrt(var + _BN_EPS) + beta


def basic_block_ref(x_nchw, params, stride):
    x = jnp.transpose(x_nchw, (0, 2, 3, 1)).astype(jnp.float32)
    cin = x.shape[-1]
    cout = params["w1"].shape[-1]
    out = jnp.maximum(_bn_ref(_conv_ref(x, params["w1"], stride, 1),
                              params["g1"], params["b1"]), 0.0)
    out = _bn_ref(_conv_ref(out, params["w2"], 1, 1), params["g2"], params["b2"])
    if stride != 1 or cin != cout:
        sc = _bn_ref(_conv_ref(x, params["ws"], stride, 0),
                     params["gs"], params["bs"])
    else:
        sc = x
    out = jnp.maximum(out + sc, 0.0)
    return jnp.transpose(out, (0, 3, 1, 2))


# ---------------------------------------------------------------------------
# Deterministic parameter init (shapes from BasicBlock.__init__, HWIO layout)
# ---------------------------------------------------------------------------
def make_params(key, in_channels, out_channels, stride):
    ks = jax.random.split(key, 9)
    p = {
        "w1": 0.1 * jax.random.normal(ks[0], (3, 3, in_channels, out_channels), jnp.float32),
        "g1": 1.0 + 0.1 * jax.random.normal(ks[1], (out_channels,), jnp.float32),
        "b1": 0.1 * jax.random.normal(ks[2], (out_channels,), jnp.float32),
        "w2": 0.1 * jax.random.normal(ks[3], (3, 3, out_channels, out_channels), jnp.float32),
        "g2": 1.0 + 0.1 * jax.random.normal(ks[4], (out_channels,), jnp.float32),
        "b2": 0.1 * jax.random.normal(ks[5], (out_channels,), jnp.float32),
    }
    if stride != 1 or in_channels != out_channels:
        p["ws"] = 0.1 * jax.random.normal(ks[6], (1, 1, in_channels, out_channels), jnp.float32)
        p["gs"] = 1.0 + 0.1 * jax.random.normal(ks[7], (out_channels,), jnp.float32)
        p["bs"] = 0.1 * jax.random.normal(ks[8], (out_channels,), jnp.float32)
    return p


if __name__ == "__main__":
    key = jax.random.PRNGKey(0)
    kx, kp1, kp2 = jax.random.split(key, 3)

    x = jax.random.normal(kx, (2, 4, 16, 16), jnp.float32)   # NCHW, like PyTorch

    # Tolerance covers bf16 MXU inputs + bf16 pre-BN storage vs. the f32 reference
    # (expected error ~1e-2 at these scales; see review numerics note).
    TOL = dict(atol=5e-2, rtol=5e-2)

    # Case 1: identity shortcut (in == out, stride 1)
    params_id = make_params(kp1, 4, 4, 1)
    fwd1 = jax.jit(functools.partial(basic_block_forward, stride=1))
    out_id = jax.block_until_ready(fwd1(x, params_id))
    ref_id = basic_block_ref(x, params_id, stride=1)
    assert out_id.shape == (2, 4, 16, 16)
    assert jnp.allclose(out_id, ref_id, **TOL), (
        "identity-shortcut mismatch, max diff %e"
        % float(jnp.max(jnp.abs(out_id - ref_id))))

    # Case 2: projection shortcut (stride 2, channel expansion 4 -> 8)
    params_proj = make_params(kp2, 4, 8, 2)
    fwd2 = jax.jit(functools.partial(basic_block_forward, stride=2))
    out_proj = jax.block_until_ready(fwd2(x, params_proj))
    ref_proj = basic_block_ref(x, params_proj, stride=2)
    assert out_proj.shape == (2, 8, 8, 8)
    assert jnp.allclose(out_proj, ref_proj, **TOL), (
        "projection-shortcut mismatch, max diff %e"
        % float(jnp.max(jnp.abs(out_proj - ref_proj))))

    print("KERNEL_OK")
</pallas_src>

<mosaic_0001>
module attributes {stable_mosaic.version = 11 : i64} {
  func.func @_conv_stats_kernel(%arg0: i32, %arg1: i32, %arg2: memref<1x18x18x4xbf16, #tpu.memory_space<vmem>>, %arg3: memref<36x4xbf16, #tpu.memory_space<vmem>>, %arg4: memref<1x256x4xbf16, #tpu.memory_space<vmem>>, %arg5: memref<1x1x4xf32, #tpu.memory_space<vmem>>, %arg6: memref<1x1x4xf32, #tpu.memory_space<vmem>>) attributes {dimension_semantics = [#tpu.dimension_semantics<parallel>, #tpu.dimension_semantics<arbitrary>], iteration_bounds = array<i64: 2, 1>, scalar_prefetch = 0 : i64, scratch_operands = 0 : i64, tpu.core_type = #tpu.core_type<tc>, window_params = [{transform_indices = @transform_0, window_bounds = array<i64: 1, 18, 18, 4>}, {pipeline_mode = #tpu.pipeline_mode<synchronous>, transform_indices = @transform_1, window_bounds = array<i64: 36, 4>}, {transform_indices = @transform_2, window_bounds = array<i64: 1, 256, 4>}, {transform_indices = @transform_3, window_bounds = array<i64: 1, 1, 4>}, {transform_indices = @transform_4, window_bounds = array<i64: 1, 1, 4>}]} {
    %c0_i32 = arith.constant 0 : i32
    %0 = arith.cmpi eq, %arg1, %c0_i32 : i32
    %1 = arith.extui %0 : i1 to i32
    %c0_i32_0 = arith.constant 0 : i32
    %2 = arith.cmpi ne, %1, %c0_i32_0 : i32
    scf.if %2 {
      %cst_53 = arith.constant 0.000000e+00 : f32
      %46 = vector.broadcast %cst_53 : f32 to vector<1x1x4xf32>
      %c0_54 = arith.constant 0 : index
      %c0_55 = arith.constant 0 : index
      %c0_56 = arith.constant 0 : index
      %47 = vector.load %arg5[%c0_54, %c0_55, %c0_56] : memref<1x1x4xf32, #tpu.memory_space<vmem>>, vector<1x1x4xf32>
      tpu.vector_store %arg5[%c0_54, %c0_55, %c0_56], %46 {strides = array<i32>} : memref<1x1x4xf32, #tpu.memory_space<vmem>>, vector<1x1x4xf32>,
      %cst_57 = arith.constant 0.000000e+00 : f32
      %48 = vector.broadcast %cst_57 : f32 to vector<1x1x4xf32>
      %c0_58 = arith.constant 0 : index
      %c0_59 = arith.constant 0 : index
      %c0_60 = arith.constant 0 : index
      %49 = vector.load %arg6[%c0_58, %c0_59, %c0_60] : memref<1x1x4xf32, #tpu.memory_space<vmem>>, vector<1x1x4xf32>
      tpu.vector_store %arg6[%c0_58, %c0_59, %c0_60], %48 {strides = array<i32>} : memref<1x1x4xf32, #tpu.memory_space<vmem>>, vector<1x1x4xf32>,
    } else {
    }
    %c0 = arith.constant 0 : index
    %c0_1 = arith.constant 0 : index
    %c0_2 = arith.constant 0 : index
    %c0_3 = arith.constant 0 : index
    %3 = vector.load %arg2[%c0, %c0_1, %c0_2, %c0_3] : memref<1x18x18x4xbf16, #tpu.memory_space<vmem>>, vector<1x16x16x4xbf16>
    %4 = vector.shape_cast %3 : vector<1x16x16x4xbf16> to vector<16x16x4xbf16>
    %c0_4 = arith.constant 0 : index
    %c0_5 = arith.constant 0 : index
    %c1 = arith.constant 1 : index
    %c0_6 = arith.constant 0 : index
    %5 = vector.load %arg2[%c0_4, %c0_5, %c1, %c0_6] : memref<1x18x18x4xbf16, #tpu.memory_space<vmem>>, vector<1x16x16x4xbf16>
    %6 = vector.shape_cast %5 : vector<1x16x16x4xbf16> to vector<16x16x4xbf16>
    %c0_7 = arith.constant 0 : index
    %c0_8 = arith.constant 0 : index
    %c2 = arith.constant 2 : index
    %c0_9 = arith.constant 0 : index
    %7 = vector.load %arg2[%c0_7, %c0_8, %c2, %c0_9] : memref<1x18x18x4xbf16, #tpu.memory_space<vmem>>, vector<1x16x16x4xbf16>
    %8 = vector.shape_cast %7 : vector<1x16x16x4xbf16> to vector<16x16x4xbf16>
    %c0_10 = arith.constant 0 : index
    %c1_11 = arith.constant 1 : index
    %c0_12 = arith.constant 0 : index
    %c0_13 = arith.constant 0 : index
    %9 = vector.load %arg2[%c0_10, %c1_11, %c0_12, %c0_13] : memref<1x18x18x4xbf16, #tpu.memory_space<vmem>>, vector<1x16x16x4xbf16>
    %10 = vector.shape_cast %9 : vector<1x16x16x4xbf16> to vector<16x16x4xbf16>
    %c0_14 = arith.constant 0 : index
    %c1_15 = arith.constant 1 : index
    %c1_16 = arith.constant 1 : index
    %c0_17 = arith.constant 0 : index
    %11 = vector.load %arg2[%c0_14, %c1_15, %c1_16, %c0_17] : memref<1x18x18x4xbf16, #tpu.memory_space<vmem>>, vector<1x16x16x4xbf16>
    %12 = vector.shape_cast %11 : vector<1x16x16x4xbf16> to vector<16x16x4xbf16>
    %c0_18 = arith.constant 0 : index
    %c1_19 = arith.constant 1 : index
    %c2_20 = arith.constant 2 : index
    %c0_21 = arith.constant 0 : index
    %13 = vector.load %arg2[%c0_18, %c1_19, %c2_20, %c0_21] : memref<1x18x18x4xbf16, #tpu.memory_space<vmem>>, vector<1x16x16x4xbf16>
    %14 = vector.shape_cast %13 : vector<1x16x16x4xbf16> to vector<16x16x4xbf16>
    %c0_22 = arith.constant 0 : index
    %c2_23 = arith.constant 2 : index
    %c0_24 = arith.constant 0 : index
    %c0_25 = arith.constant 0 : index
    %15 = vector.load %arg2[%c0_22, %c2_23, %c0_24, %c0_25] : memref<1x18x18x4xbf16, #tpu.memory_space<vmem>>, vector<1x16x16x4xbf16>
    %16 = vector.shape_cast %15 : vector<1x16x16x4xbf16> to vector<16x16x4xbf16>
    %c0_26 = arith.constant 0 : index
    %c2_27 = arith.constant 2 : index
    %c1_28 = arith.constant 1 : index
    %c0_29 = arith.constant 0 : index
    %17 = vector.load %arg2[%c0_26, %c2_27, %c1_28, %c0_29] : memref<1x18x18x4xbf16, #tpu.memory_space<vmem>>, vector<1x16x16x4xbf16>
    %18 = vector.shape_cast %17 : vector<1x16x16x4xbf16> to vector<16x16x4xbf16>
    %c0_30 = arith.constant 0 : index
    %c2_31 = arith.constant 2 : index
    %c2_32 = arith.constant 2 : index
    %c0_33 = arith.constant 0 : index
    %19 = vector.load %arg2[%c0_30, %c2_31, %c2_32, %c0_33] : memref<1x18x18x4xbf16, #tpu.memory_space<vmem>>, vector<1x16x16x4xbf16>
    %20 = vector.shape_cast %19 : vector<1x16x16x4xbf16> to vector<16x16x4xbf16>
    %21 = tpu.concatenate %4, %6, %8, %10, %12, %14, %16, %18, %20 in 2 : vector<16x16x4xbf16>, vector<16x16x4xbf16>, vector<16x16x4xbf16>, vector<16x16x4xbf16>, vector<16x16x4xbf16>, vector<16x16x4xbf16>, vector<16x16x4xbf16>, vector<16x16x4xbf16>, vector<16x16x4xbf16> -> vector<16x16x36xbf16>
    %22 = vector.shape_cast %21 : vector<16x16x36xbf16> to vector<256x36xbf16>
    %c0_34 = arith.constant 0 : index
    %c0_35 = arith.constant 0 : index
    %23 = vector.load %arg3[%c0_34, %c0_35] : memref<36x4xbf16, #tpu.memory_space<vmem>>, vector<36x4xbf16>
    %cst = arith.constant dense<0.000000e+00> : vector<256x4xf32>
    %24 = tpu.matmul %22, %23, %cst {dimension_numbers = #tpu.dot_dimension_numbers<[1], [0], [0], [1], [0, 0, 1, 1], [], []>} : vector<256x36xbf16>, vector<36x4xbf16>, vector<256x4xf32> -> vector<256x4xf32>
    %25 = arith.truncf %24 : vector<256x4xf32> to vector<256x4xbf16>
    %c0_36 = arith.constant 0 : index
    %c0_37 = arith.constant 0 : index
    %c0_38 = arith.constant 0 : index
    %26 = vector.load %arg4[%c0_36, %c0_37, %c0_38] : memref<1x256x4xbf16, #tpu.memory_space<vmem>>, vector<1x256x4xbf16>
    %27 = vector.shape_cast %26 : vector<1x256x4xbf16> to vector<256x4xbf16>
    %28 = vector.shape_cast %25 : vector<256x4xbf16> to vector<1x256x4xbf16>
    tpu.vector_store %arg4[%c0_36, %c0_37, %c0_38], %28 {strides = array<i32>} : memref<1x256x4xbf16, #tpu.memory_space<vmem>>, vector<1x256x4xbf16>,
    %c0_39 = arith.constant 0 : index
    %c0_40 = arith.constant 0 : index
    %c0_41 = arith.constant 0 : index
    %29 = vector.load %arg5[%c0_39, %c0_40, %c0_41] : memref<1x1x4xf32, #tpu.memory_space<vmem>>, vector<1x1x4xf32>
    %30 = vector.shape_cast %29 : vector<1x1x4xf32> to vector<1x4xf32>
    %cst_42 = arith.constant dense<0.000000e+00> : vector<4xf32>
    %31 = vector.multi_reduction <add>, %24, %cst_42 [0] : vector<256x4xf32> to vector<4xf32>
    %32 = vector.shape_cast %31 : vector<4xf32> to vector<1x4xf32>
    %33 = arith.addf %30, %32 : vector<1x4xf32>
    %c0_43 = arith.constant 0 : index
    %c0_44 = arith.constant 0 : index
    %c0_45 = arith.constant 0 : index
    %34 = vector.load %arg5[%c0_43, %c0_44, %c0_45] : memref<1x1x4xf32, #tpu.memory_space<vmem>>, vector<1x1x4xf32>
    %35 = vector.shape_cast %34 : vector<1x1x4xf32> to vector<1x4xf32>
    %36 = vector.shape_cast %33 : vector<1x4xf32> to vector<1x1x4xf32>
    tpu.vector_store %arg5[%c0_43, %c0_44, %c0_45], %36 {strides = array<i32>} : memref<1x1x4xf32, #tpu.memory_space<vmem>>, vector<1x1x4xf32>,
    %c0_46 = arith.constant 0 : index
    %c0_47 = arith.constant 0 : index
    %c0_48 = arith.constant 0 : index
    %37 = vector.load %arg6[%c0_46, %c0_47, %c0_48] : memref<1x1x4xf32, #tpu.memory_space<vmem>>, vector<1x1x4xf32>
    %38 = vector.shape_cast %37 : vector<1x1x4xf32> to vector<1x4xf32>
    %39 = arith.mulf %24, %24 : vector<256x4xf32>
    %cst_49 = arith.constant dense<0.000000e+00> : vector<4xf32>
    %40 = vector.multi_reduction <add>, %39, %cst_49 [0] : vector<256x4xf32> to vector<4xf32>
    %41 = vector.shape_cast %40 : vector<4xf32> to vector<1x4xf32>
    %42 = arith.addf %38, %41 : vector<1x4xf32>
    %c0_50 = arith.constant 0 : index
    %c0_51 = arith.constant 0 : index
    %c0_52 = arith.constant 0 : index
    %43 = vector.load %arg6[%c0_50, %c0_51, %c0_52] : memref<1x1x4xf32, #tpu.memory_space<vmem>>, vector<1x1x4xf32>
    %44 = vector.shape_cast %43 : vector<1x1x4xf32> to vector<1x4xf32>
    %45 = vector.shape_cast %42 : vector<1x4xf32> to vector<1x1x4xf32>
    tpu.vector_store %arg6[%c0_50, %c0_51, %c0_52], %45 {strides = array<i32>} : memref<1x1x4xf32, #tpu.memory_space<vmem>>, vector<1x1x4xf32>,
    return
  }
  func.func @transform_0(%arg0: i32, %arg1: i32) -> (i32, i32, i32, i32) {
    %c1_i32 = arith.constant 1 : i32
    %0 = arith.muli %arg0, %c1_i32 : i32
    %1 = arith.addi %0, %arg1 : i32
    %c0_i32 = arith.constant 0 : i32
    %c0_i32_0 = arith.constant 0 : i32
    %c0_i32_1 = arith.constant 0 : i32
    %c0_i32_2 = arith.constant 0 : i32
    return %1, %c0_i32, %c0_i32_0, %c0_i32_1 : i32, i32, i32, i32
  }
  func.func @transform_1(%arg0: i32, %arg1: i32) -> (i32, i32) {
    %c0_i32 = arith.constant 0 : i32
    %c0_i32_0 = arith.constant 0 : i32
    %c0_i32_1 = arith.constant 0 : i32
    return %c0_i32, %c0_i32_0 : i32, i32
  }
  func.func @transform_2(%arg0: i32, %arg1: i32) -> (i32, i32, i32) {
    %c1_i32 = arith.constant 1 : i32
    %0 = arith.muli %arg0, %c1_i32 : i32
    %1 = arith.addi %0, %arg1 : i32
    %c0_i32 = arith.constant 0 : i32
    %c0_i32_0 = arith.constant 0 : i32
    %c0_i32_1 = arith.constant 0 : i32
    return %1, %c0_i32, %c0_i32_0 : i32, i32, i32
  }
  func.func @transform_3(%arg0: i32, %arg1: i32) -> (i32, i32, i32) {
    %c0_i32 = arith.constant 0 : i32
    %c0_i32_0 = arith.constant 0 : i32
    %c0_i32_1 = arith.constant 0 : i32
    return %arg0, %c0_i32, %c0_i32_0 : i32, i32, i32
  }
  func.func @transform_4(%arg0: i32, %arg1: i32) -> (i32, i32, i32) {
    %c0_i32 = arith.constant 0 : i32
    %c0_i32_0 = arith.constant 0 : i32
    %c0_i32_1 = arith.constant 0 : i32
    return %arg0, %c0_i32, %c0_i32_0 : i32, i32, i32
  }
}

module attributes {stable_mosaic.version = 11 : i64} {
  func.func @_conv2_fused_kernel(%arg0: i32, %arg1: i32, %arg2: memref<1x256x4xbf16, #tpu.memory_space<vmem>>, %arg3: memref<1x4xf32, #tpu.memory_space<vmem>>, %arg4: memref<1x4xf32, #tpu.memory_space<vmem>>, %arg5: memref<36x4xbf16, #tpu.memory_space<vmem>>, %arg6: memref<1x256x4xbf16, #tpu.memory_space<vmem>>, %arg7: memref<1x1x4xf32, #tpu.memory_space<vmem>>, %arg8: memref<1x1x4xf32, #tpu.memory_space<vmem>>, %arg9: memref<18x18x4xf32, #tpu.memory_space<vmem>>) attributes {dimension_semantics = [#tpu.dimension_semantics<parallel>, #tpu.dimension_semantics<arbitrary>], iteration_bounds = array<i64: 2, 1>, scalar_prefetch = 0 : i64, scratch_operands = 1 : i64, tpu.core_type = #tpu.core_type<tc>, window_params = [{transform_indices = @transform_0, window_bounds = array<i64: 1, 256, 4>}, {pipeline_mode = #tpu.pipeline_mode<synchronous>, transform_indices = @transform_1, window_bounds = array<i64: 1, 4>}, {pipeline_mode = #tpu.pipeline_mode<synchronous>, transform_indices = @transform_2, window_bounds = array<i64: 1, 4>}, {pipeline_mode = #tpu.pipeline_mode<synchronous>, transform_indices = @transform_3, window_bounds = array<i64: 36, 4>}, {transform_indices = @transform_4, window_bounds = array<i64: 1, 256, 4>}, {transform_indices = @transform_5, window_bounds = array<i64: 1, 1, 4>}, {transform_indices = @transform_6, window_bounds = array<i64: 1, 1, 4>}]} {
    %c0_i32 = arith.constant 0 : i32
    %0 = arith.cmpi eq, %arg1, %c0_i32 : i32
    %1 = arith.extui %0 : i1 to i32
    %c0_i32_0 = arith.constant 0 : i32
    %2 = arith.cmpi ne, %1, %c0_i32_0 : i32
    scf.if %2 {
      %cst_55 = arith.constant 0.000000e+00 : f32
      %51 = vector.broadcast %cst_55 : f32 to vector<1x1x4xf32>
      %c0_56 = arith.constant 0 : index
      %c0_57 = arith.constant 0 : index
      %c0_58 = arith.constant 0 : index
      %52 = vector.load %arg7[%c0_56, %c0_57, %c0_58] : memref<1x1x4xf32, #tpu.memory_space<vmem>>, vector<1x1x4xf32>
      tpu.vector_store %arg7[%c0_56, %c0_57, %c0_58], %51 {strides = array<i32>} : memref<1x1x4xf32, #tpu.memory_space<vmem>>, vector<1x1x4xf32>,
      %cst_59 = arith.constant 0.000000e+00 : f32
      %53 = vector.broadcast %cst_59 : f32 to vector<1x1x4xf32>
      %c0_60 = arith.constant 0 : index
      %c0_61 = arith.constant 0 : index
      %c0_62 = arith.constant 0 : index
      %54 = vector.load %arg8[%c0_60, %c0_61, %c0_62] : memref<1x1x4xf32, #tpu.memory_space<vmem>>, vector<1x1x4xf32>
      tpu.vector_store %arg8[%c0_60, %c0_61, %c0_62], %53 {strides = array<i32>} : memref<1x1x4xf32, #tpu.memory_space<vmem>>, vector<1x1x4xf32>,
      %cst_63 = arith.constant 0.000000e+00 : f32
      %55 = vector.broadcast %cst_63 : f32 to vector<18x18x4xf32>
      %c0_64 = arith.constant 0 : index
      %c0_65 = arith.constant 0 : index
      %c0_66 = arith.constant 0 : index
      %56 = vector.load %arg9[%c0_64, %c0_65, %c0_66] : memref<18x18x4xf32, #tpu.memory_space<vmem>>, vector<18x18x4xf32>
      tpu.vector_store %arg9[%c0_64, %c0_65, %c0_66], %55 {strides = array<i32>} : memref<18x18x4xf32, #tpu.memory_space<vmem>>, vector<18x18x4xf32>,
    } else {
    }
    %c0 = arith.constant 0 : index
    %c0_1 = arith.constant 0 : index
    %c0_2 = arith.constant 0 : index
    %3 = vector.load %arg2[%c0, %c0_1, %c0_2] : memref<1x256x4xbf16, #tpu.memory_space<vmem>>, vector<1x256x4xbf16>
    %4 = vector.shape_cast %3 : vector<1x256x4xbf16> to vector<256x4xbf16>
    %5 = arith.extf %4 : vector<256x4xbf16> to vector<256x4xf32>
    %c0_3 = arith.constant 0 : index
    %c0_4 = arith.constant 0 : index
    %6 = vector.load %arg3[%c0_3, %c0_4] : memref<1x4xf32, #tpu.memory_space<vmem>>, vector<1x4xf32>
    %7 = vector.broadcast %6 : vector<1x4xf32> to vector<256x4xf32>
    %8 = arith.mulf %5, %7 : vector<256x4xf32>
    %c0_5 = arith.constant 0 : index
    %c0_6 = arith.constant 0 : index
    %9 = vector.load %arg4[%c0_5, %c0_6] : memref<1x4xf32, #tpu.memory_space<vmem>>, vector<1x4xf32>
    %10 = vector.broadcast %9 : vector<1x4xf32> to vector<256x4xf32>
    %11 = arith.addf %8, %10 : vector<256x4xf32>
    %cst = arith.constant 0.000000e+00 : f32
    %12 = vector.broadcast %cst : f32 to vector<256x4xf32>
    %13 = arith.maximumf %11, %12 : vector<256x4xf32>
    %14 = vector.shape_cast %13 : vector<256x4xf32> to vector<16x16x4xf32>
    %c1 = arith.constant 1 : index
    %c1_7 = arith.constant 1 : index
    %c0_8 = arith.constant 0 : index
    %15 = vector.load %arg9[%c1, %c1_7, %c0_8] : memref<18x18x4xf32, #tpu.memory_space<vmem>>, vector<16x16x4xf32>
    tpu.vector_store %arg9[%c1, %c1_7, %c0_8], %14 {strides = array<i32>} : memref<18x18x4xf32, #tpu.memory_space<vmem>>, vector<16x16x4xf32>,
    %c0_9 = arith.constant 0 : index
    %c0_10 = arith.constant 0 : index
    %c0_11 = arith.constant 0 : index
    %16 = vector.load %arg9[%c0_9, %c0_10, %c0_11] : memref<18x18x4xf32, #tpu.memory_space<vmem>>, vector<16x16x4xf32>
    %c0_12 = arith.constant 0 : index
    %c1_13 = arith.constant 1 : index
    %c0_14 = arith.constant 0 : index
    %17 = vector.load %arg9[%c0_12, %c1_13, %c0_14] : memref<18x18x4xf32, #tpu.memory_space<vmem>>, vector<16x16x4xf32>
    %c0_15 = arith.constant 0 : index
    %c2 = arith.constant 2 : index
    %c0_16 = arith.constant 0 : index
    %18 = vector.load %arg9[%c0_15, %c2, %c0_16] : memref<18x18x4xf32, #tpu.memory_space<vmem>>, vector<16x16x4xf32>
    %c1_17 = arith.constant 1 : index
    %c0_18 = arith.constant 0 : index
    %c0_19 = arith.constant 0 : index
    %19 = vector.load %arg9[%c1_17, %c0_18, %c0_19] : memref<18x18x4xf32, #tpu.memory_space<vmem>>, vector<16x16x4xf32>
    %c1_20 = arith.constant 1 : index
    %c1_21 = arith.constant 1 : index
    %c0_22 = arith.constant 0 : index
    %20 = vector.load %arg9[%c1_20, %c1_21, %c0_22] : memref<18x18x4xf32, #tpu.memory_space<vmem>>, vector<16x16x4xf32>
    %c1_23 = arith.constant 1 : index
    %c2_24 = arith.constant 2 : index
    %c0_25 = arith.constant 0 : index
    %21 = vector.load %arg9[%c1_23, %c2_24, %c0_25] : memref<18x18x4xf32, #tpu.memory_space<vmem>>, vector<16x16x4xf32>
    %c2_26 = arith.constant 2 : index
    %c0_27 = arith.constant 0 : index
    %c0_28 = arith.constant 0 : index
    %22 = vector.load %arg9[%c2_26, %c0_27, %c0_28] : memref<18x18x4xf32, #tpu.memory_space<vmem>>, vector<16x16x4xf32>
    %c2_29 = arith.constant 2 : index
    %c1_30 = arith.constant 1 : index
    %c0_31 = arith.constant 0 : index
    %23 = vector.load %arg9[%c2_29, %c1_30, %c0_31] : memref<18x18x4xf32, #tpu.memory_space<vmem>>, vector<16x16x4xf32>
    %c2_32 = arith.constant 2 : index
    %c2_33 = arith.constant 2 : index
    %c0_34 = arith.constant 0 : index
    %24 = vector.load %arg9[%c2_32, %c2_33, %c0_34] : memref<18x18x4xf32, #tpu.memory_space<vmem>>, vector<16x16x4xf32>
    %25 = tpu.concatenate %16, %17, %18, %19, %20, %21, %22, %23, %24 in 2 : vector<16x16x4xf32>, vector<16x16x4xf32>, vector<16x16x4xf32>, vector<16x16x4xf32>, vector<16x16x4xf32>, vector<16x16x4xf32>, vector<16x16x4xf32>, vector<16x16x4xf32>, vector<16x16x4xf32> -> vector<16x16x36xf32>
    %26 = vector.shape_cast %25 : vector<16x16x36xf32> to vector<256x36xf32>
    %27 = arith.truncf %26 : vector<256x36xf32> to vector<256x36xbf16>
    %c0_35 = arith.constant 0 : index
    %c0_36 = arith.constant 0 : index
    %28 = vector.load %arg5[%c0_35, %c0_36] : memref<36x4xbf16, #tpu.memory_space<vmem>>, vector<36x4xbf16>
    %cst_37 = arith.constant dense<0.000000e+00> : vector<256x4xf32>
    %29 = tpu.matmul %27, %28, %cst_37 {dimension_numbers = #tpu.dot_dimension_numbers<[1], [0], [0], [1], [0, 0, 1, 1], [], []>} : vector<256x36xbf16>, vector<36x4xbf16>, vector<256x4xf32> -> vector<256x4xf32>
    %30 = arith.truncf %29 : vector<256x4xf32> to vector<256x4xbf16>
    %c0_38 = arith.constant 0 : index
    %c0_39 = arith.constant 0 : index
    %c0_40 = arith.constant 0 : index
    %31 = vector.load %arg6[%c0_38, %c0_39, %c0_40] : memref<1x256x4xbf16, #tpu.memory_space<vmem>>, vector<1x256x4xbf16>
    %32 = vector.shape_cast %31 : vector<1x256x4xbf16> to vector<256x4xbf16>
    %33 = vector.shape_cast %30 : vector<256x4xbf16> to vector<1x256x4xbf16>
    tpu.vector_store %arg6[%c0_38, %c0_39, %c0_40], %33 {strides = array<i32>} : memref<1x256x4xbf16, #tpu.memory_space<vmem>>, vector<1x256x4xbf16>,
    %c0_41 = arith.constant 0 : index
    %c0_42 = arith.constant 0 : index
    %c0_43 = arith.constant 0 : index
    %34 = vector.load %arg7[%c0_41, %c0_42, %c0_43] : memref<1x1x4xf32, #tpu.memory_space<vmem>>, vector<1x1x4xf32>
    %35 = vector.shape_cast %34 : vector<1x1x4xf32> to vector<1x4xf32>
    %cst_44 = arith.constant dense<0.000000e+00> : vector<4xf32>
    %36 = vector.multi_reduction <add>, %29, %cst_44 [0] : vector<256x4xf32> to vector<4xf32>
    %37 = vector.shape_cast %36 : vector<4xf32> to vector<1x4xf32>
    %38 = arith.addf %35, %37 : vector<1x4xf32>
    %c0_45 = arith.constant 0 : index
    %c0_46 = arith.constant 0 : index
    %c0_47 = arith.constant 0 : index
    %39 = vector.load %arg7[%c0_45, %c0_46, %c0_47] : memref<1x1x4xf32, #tpu.memory_space<vmem>>, vector<1x1x4xf32>
    %40 = vector.shape_cast %39 : vector<1x1x4xf32> to vector<1x4xf32>
    %41 = vector.shape_cast %38 : vector<1x4xf32> to vector<1x1x4xf32>
    tpu.vector_store %arg7[%c0_45, %c0_46, %c0_47], %41 {strides = array<i32>} : memref<1x1x4xf32, #tpu.memory_space<vmem>>, vector<1x1x4xf32>,
    %c0_48 = arith.constant 0 : index
    %c0_49 = arith.constant 0 : index
    %c0_50 = arith.constant 0 : index
    %42 = vector.load %arg8[%c0_48, %c0_49, %c0_50] : memref<1x1x4xf32, #tpu.memory_space<vmem>>, vector<1x1x4xf32>
    %43 = vector.shape_cast %42 : vector<1x1x4xf32> to vector<1x4xf32>
    %44 = arith.mulf %29, %29 : vector<256x4xf32>
    %cst_51 = arith.constant dense<0.000000e+00> : vector<4xf32>
    %45 = vector.multi_reduction <add>, %44, %cst_51 [0] : vector<256x4xf32> to vector<4xf32>
    %46 = vector.shape_cast %45 : vector<4xf32> to vector<1x4xf32>
    %47 = arith.addf %43, %46 : vector<1x4xf32>
    %c0_52 = arith.constant 0 : index
    %c0_53 = arith.constant 0 : index
    %c0_54 = arith.constant 0 : index
    %48 = vector.load %arg8[%c0_52, %c0_53, %c0_54] : memref<1x1x4xf32, #tpu.memory_space<vmem>>, vector<1x1x4xf32>
    %49 = vector.shape_cast %48 : vector<1x1x4xf32> to vector<1x4xf32>
    %50 = vector.shape_cast %47 : vector<1x4xf32> to vector<1x1x4xf32>
    tpu.vector_store %arg8[%c0_52, %c0_53, %c0_54], %50 {strides = array<i32>} : memref<1x1x4xf32, #tpu.memory_space<vmem>>, vector<1x1x4xf32>,
    return
  }
  func.func @transform_0(%arg0: i32, %arg1: i32) -> (i32, i32, i32) {
    %c1_i32 = arith.constant 1 : i32
    %0 = arith.muli %arg0, %c1_i32 : i32
    %1 = arith.addi %0, %arg1 : i32
    %c0_i32 = arith.constant 0 : i32
    %c0_i32_0 = arith.constant 0 : i32
    %c0_i32_1 = arith.constant 0 : i32
    return %1, %c0_i32, %c0_i32_0 : i32, i32, i32
  }
  func.func @transform_1(%arg0: i32, %arg1: i32) -> (i32, i32) {
    %c0_i32 = arith.constant 0 : i32
    %c0_i32_0 = arith.constant 0 : i32
    %c0_i32_1 = arith.constant 0 : i32
    return %c0_i32, %c0_i32_0 : i32, i32
  }
  func.func @transform_2(%arg0: i32, %arg1: i32) -> (i32, i32) {
    %c0_i32 = arith.constant 0 : i32
    %c0_i32_0 = arith.constant 0 : i32
    %c0_i32_1 = arith.constant 0 : i32
    return %c0_i32, %c0_i32_0 : i32, i32
  }
  func.func @transform_3(%arg0: i32, %arg1: i32) -> (i32, i32) {
    %c0_i32 = arith.constant 0 : i32
    %c0_i32_0 = arith.constant 0 : i32
    %c0_i32_1 = arith.constant 0 : i32
    return %c0_i32, %c0_i32_0 : i32, i32
  }
  func.func @transform_4(%arg0: i32, %arg1: i32) -> (i32, i32, i32) {
    %c1_i32 = arith.constant 1 : i32
    %0 = arith.muli %arg0, %c1_i32 : i32
    %1 = arith.addi %0, %arg1 : i32
    %c0_i32 = arith.constant 0 : i32
    %c0_i32_0 = arith.constant 0 : i32
    %c0_i32_1 = arith.constant 0 : i32
    return %1, %c0_i32, %c0_i32_0 : i32, i32, i32
  }
  func.func @transform_5(%arg0: i32, %arg1: i32) -> (i32, i32, i32) {
    %c0_i32 = arith.constant 0 : i32
    %c0_i32_0 = arith.constant 0 : i32
    %c0_i32_1 = arith.constant 0 : i32
    return %arg0, %c0_i32, %c0_i32_0 : i32, i32, i32
  }
  func.func @transform_6(%arg0: i32, %arg1: i32) -> (i32, i32, i32) {
    %c0_i32 = arith.constant 0 : i32
    %c0_i32_0 = arith.constant 0 : i32
    %c0_i32_1 = arith.constant 0 : i32
    return %arg0, %c0_i32, %c0_i32_0 : i32, i32, i32
  }
}

module attributes {stable_mosaic.version = 11 : i64} {
  func.func @_apply_kernel(%arg0: i32, %arg1: memref<1x8x128xbf16, #tpu.memory_space<vmem>>, %arg2: memref<1x128xf32, #tpu.memory_space<vmem>>, %arg3: memref<1x128xf32, #tpu.memory_space<vmem>>, %arg4: memref<1x8x128xf32, #tpu.memory_space<vmem>>, %arg5: memref<1x8x128xf32, #tpu.memory_space<vmem>>) attributes {dimension_semantics = [#tpu.dimension_semantics<parallel>], iteration_bounds = array<i64: 2>, scalar_prefetch = 0 : i64, scratch_operands = 0 : i64, tpu.core_type = #tpu.core_type<tc>, window_params = [{transform_indices = @transform_0, window_bounds = array<i64: 1, 8, 128>}, {pipeline_mode = #tpu.pipeline_mode<synchronous>, transform_indices = @transform_1, window_bounds = array<i64: 1, 128>}, {pipeline_mode = #tpu.pipeline_mode<synchronous>, transform_indices = @transform_2, window_bounds = array<i64: 1, 128>}, {transform_indices = @transform_3, window_bounds = array<i64: 1, 8, 128>}, {transform_indices = @transform_4, window_bounds = array<i64: 1, 8, 128>}]} {
    %c0 = arith.constant 0 : index
    %c0_0 = arith.constant 0 : index
    %c0_1 = arith.constant 0 : index
    %0 = vector.load %arg1[%c0, %c0_0, %c0_1] : memref<1x8x128xbf16, #tpu.memory_space<vmem>>, vector<1x8x128xbf16>
    %1 = vector.shape_cast %0 : vector<1x8x128xbf16> to vector<8x128xbf16>
    %2 = arith.extf %1 : vector<8x128xbf16> to vector<8x128xf32>
    %c0_2 = arith.constant 0 : index
    %c0_3 = arith.constant 0 : index
    %3 = vector.load %arg2[%c0_2, %c0_3] : memref<1x128xf32, #tpu.memory_space<vmem>>, vector<1x128xf32>
    %4 = vector.broadcast %3 : vector<1x128xf32> to vector<8x128xf32>
    %5 = arith.mulf %2, %4 : vector<8x128xf32>
    %c0_4 = arith.constant 0 : index
    %c0_5 = arith.constant 0 : index
    %6 = vector.load %arg3[%c0_4, %c0_5] : memref<1x128xf32, #tpu.memory_space<vmem>>, vector<1x128xf32>
    %7 = vector.broadcast %6 : vector<1x128xf32> to vector<8x128xf32>
    %8 = arith.addf %5, %7 : vector<8x128xf32>
    %c0_6 = arith.constant 0 : index
    %c0_7 = arith.constant 0 : index
    %c0_8 = arith.constant 0 : index
    %9 = vector.load %arg4[%c0_6, %c0_7, %c0_8] : memref<1x8x128xf32, #tpu.memory_space<vmem>>, vector<1x8x128xf32>
    %10 = vector.shape_cast %9 : vector<1x8x128xf32> to vector<8x128xf32>
    %11 = arith.addf %8, %10 : vector<8x128xf32>
    %cst = arith.constant 0.000000e+00 : f32
    %12 = vector.broadcast %cst : f32 to vector<8x128xf32>
    %13 = arith.maximumf %11, %12 : vector<8x128xf32>
    %c0_9 = arith.constant 0 : index
    %c0_10 = arith.constant 0 : index
    %c0_11 = arith.constant 0 : index
    %14 = vector.load %arg5[%c0_9, %c0_10, %c0_11] : memref<1x8x128xf32, #tpu.memory_space<vmem>>, vector<1x8x128xf32>
    %15 = vector.shape_cast %14 : vector<1x8x128xf32> to vector<8x128xf32>
    %16 = vector.shape_cast %13 : vector<8x128xf32> to vector<1x8x128xf32>
    tpu.vector_store %arg5[%c0_9, %c0_10, %c0_11], %16 {strides = array<i32>} : memref<1x8x128xf32, #tpu.memory_space<vmem>>, vector<1x8x128xf32>,
    return
  }
  func.func @transform_0(%arg0: i32) -> (i32, i32, i32) {
    %c0_i32 = arith.constant 0 : i32
    %c0_i32_0 = arith.constant 0 : i32
    %c0_i32_1 = arith.constant 0 : i32
    return %arg0, %c0_i32, %c0_i32_0 : i32, i32, i32
  }
  func.func @transform_1(%arg0: i32) -> (i32, i32) {
    %c0_i32 = arith.constant 0 : i32
    %c0_i32_0 = arith.constant 0 : i32
    %c0_i32_1 = arith.constant 0 : i32
    return %c0_i32, %c0_i32_0 : i32, i32
  }
  func.func @transform_2(%arg0: i32) -> (i32, i32) {
    %c0_i32 = arith.constant 0 : i32
    %c0_i32_0 = arith.constant 0 : i32
    %c0_i32_1 = arith.constant 0 : i32
    return %c0_i32, %c0_i32_0 : i32, i32
  }
  func.func @transform_3(%arg0: i32) -> (i32, i32, i32) {
    %c0_i32 = arith.constant 0 : i32
    %c0_i32_0 = arith.constant 0 : i32
    %c0_i32_1 = arith.constant 0 : i32
    return %arg0, %c0_i32, %c0_i32_0 : i32, i32, i32
  }
  func.func @transform_4(%arg0: i32) -> (i32, i32, i32) {
    %c0_i32 = arith.constant 0 : i32
    %c0_i32_0 = arith.constant 0 : i32
    %c0_i32_1 = arith.constant 0 : i32
    return %arg0, %c0_i32, %c0_i32_0 : i32, i32, i32
  }
}

</mosaic_0001>

<llo_original>
// kernel: basic_block_forward.5
$region0: #{basic_block_forward.5}
  #allocation0 [shape = 'u32[]', space=smem, size = 0x4, offset = 0x4, fixed_abs, tag = 'smem constant byte address 0x4 - core index']
  #allocation1 [shape = 'u32[144,128]{1,0:T(1,128)}', space=vmem, size = 0x12000, scoped, tag = 'internal scratch']
  %s0 = inlined_call_operand.vmem [shape: bf16[2,8,128], index: 0, kind: input, shape index: {}]
  %s1 = inlined_call_operand.vmem [shape: f32[1,128], index: 1, kind: input, shape index: {}]
  %s2 = inlined_call_operand.vmem [shape: f32[1,128], index: 2, kind: input, shape index: {}]
  %s3 = inlined_call_operand.vmem [shape: f32[2,8,128], index: 3, kind: input, shape index: {}]
  %s4 = inlined_call_operand.vmem [shape: f32[2,8,128], index: 4, kind: output, shape index: {}]
  %s5 = sld [smem:[#allocation0]]
  $region49: #{basic_block_forward.5} parent=0
    _
  %s7 = ssub.s32 1, %s5
  %s8 = scalar_select 0, %s7, %s5
  loop: start=0, step=1, limit=4
  $region2: #{basic_block_forward.5} parent=0 // loop_pre_header
    _
  $region3: #{basic_block_forward.5} parent=0 // loop_header
    %s10 = sphi 0, %s14
    %p11 = scmp.ge.s32.totalorder %s10, 4
    %s20 = sphi 0, %s22
    %s23 = sphi 0, %s20
    %s24 = sphi 0, %s23
    %s40 = sphi 0, %s24
    %s44 = sphi 0, %s44
    %s46 = sphi 0, %s44
    %s47 = sphi 0, %s46
    %s61 = sphi 0, %s47
    %s65 = sphi 0, %s65
    %s67 = sphi 0, %s65
    %s68 = sphi 0, %s67
    %s82 = sphi 0, %s68
    %s88 = sphi 0, %s90
    %s91 = sphi 0, %s88
    %s92 = sphi 0, %s91
    %s108 = sphi 0, %s92
    %s114 = sphi 0, %s116
    %s117 = sphi 0, %s114
    %s118 = sphi 0, %s117
    %s134 = sphi 0, %s118
  $region4: #{basic_block_forward.5} parent=0 // loop_header_branch
    %13 = sbr.rel (%p11) target = $region8
  $region5: #{basic_block_forward.5} parent=0 // loop_body
    %s15 = ssub.s32 %s10, 1
    %s16 = ssub.s32 %s10, 2
    %s17 = sadd.s32 %s10, 1
    %s18 = ssub.s32 %s10, %s17
    %p19 = scmp.eq.s32.totalorder %s18, 0
    %s21 = sadd.s32 %s20, 1
    %s22 = scalar_select %p19, %s20, %s21
    %p25 = pneg %p19
    %p26 = scmp.eq.s32.totalorder %s10, 1
    %p27 = por %p25, %p26
    %p28 = scmp.ne.s32.totalorder %s20, %s23
    %p29 = scmp.eq.s32.totalorder %s10, 0
    %p30 = por %p28, %p29
    %p31 = scmp.ne.s32.totalorder %s20, %s23
    %p32 = scmp.eq.s32.totalorder %s15, 1
    %p33 = por %p31, %p32
    %p34 = scmp.ne.s32.totalorder %s23, %s24
    %p35 = scmp.eq.s32.totalorder %s15, 0
    %p36 = por %p34, %p35
    %p37 = scmp.ne.s32.totalorder %s23, %s24
    %p38 = scmp.eq.s32.totalorder %s16, 1
    %p39 = por %p37, %p38
    %p41 = scmp.ne.s32.totalorder %s24, %s40
    %p42 = scmp.eq.s32.totalorder %s16, 0
    %p43 = por %p41, %p42
    %s45 = sadd.s32 %s44, 1
    %p48 = scmp.eq.s32.totalorder %s10, 1
    %p49 = scmp.ne.s32.totalorder %s44, %s46
    %p50 = scmp.eq.s32.totalorder %s10, 0
    %p51 = por %p49, %p50
    %p52 = scmp.ne.s32.totalorder %s44, %s46
    %p53 = scmp.eq.s32.totalorder %s15, 1
    %p54 = por %p52, %p53
    %p55 = scmp.ne.s32.totalorder %s46, %s47
    %p56 = scmp.eq.s32.totalorder %s15, 0
    %p57 = por %p55, %p56
    %p58 = scmp.ne.s32.totalorder %s46, %s47
    %p59 = scmp.eq.s32.totalorder %s16, 1
    %p60 = por %p58, %p59
    %p62 = scmp.ne.s32.totalorder %s47, %s61
    %p63 = scmp.eq.s32.totalorder %s16, 0
    %p64 = por %p62, %p63
    %s66 = sadd.s32 %s65, 1
    %p69 = scmp.eq.s32.totalorder %s10, 1
    %p70 = scmp.ne.s32.totalorder %s65, %s67
    %p71 = scmp.eq.s32.totalorder %s10, 0
    %p72 = por %p70, %p71
    %p73 = scmp.ne.s32.totalorder %s65, %s67
    %p74 = scmp.eq.s32.totalorder %s15, 1
    %p75 = por %p73, %p74
    %p76 = scmp.ne.s32.totalorder %s67, %s68
    %p77 = scmp.eq.s32.totalorder %s15, 0
    %p78 = por %p76, %p77
    %p79 = scmp.ne.s32.totalorder %s67, %s68
    %p80 = scmp.eq.s32.totalorder %s16, 1
    %p81 = por %p79, %p80
    %p83 = scmp.ne.s32.totalorder %s68, %s82
    %p84 = scmp.eq.s32.totalorder %s16, 0
    %p85 = por %p83, %p84
    %s86 = ssub.s32 %s10, %s17
    %p87 = scmp.eq.s32.totalorder %s86, 0
    %s89 = sadd.s32 %s88, 1
    %s90 = scalar_select %p87, %s88, %s89
    %p93 = pneg %p87
    %p94 = scmp.eq.s32.totalorder %s10, 1
    %p95 = por %p93, %p94
    %p96 = scmp.ne.s32.totalorder %s88, %s91
    %p97 = scmp.eq.s32.totalorder %s10, 0
    %p98 = por %p96, %p97
    %p99 = scmp.ne.s32.totalorder %s88, %s91
    %p100 = scmp.eq.s32.totalorder %s15, 1
    %p101 = por %p99, %p100
    %p102 = scmp.ne.s32.totalorder %s91, %s92
    %p103 = scmp.eq.s32.totalorder %s15, 0
    %p104 = por %p102, %p103
    %p105 = scmp.ne.s32.totalorder %s91, %s92
    %p106 = scmp.eq.s32.totalorder %s16, 1
    %p107 = por %p105, %p106
    %p109 = scmp.ne.s32.totalorder %s92, %s108
    %p110 = scmp.eq.s32.totalorder %s16, 0
    %p111 = por %p109, %p110
    %s112 = ssub.s32 %s10, %s17
    %p113 = scmp.eq.s32.totalorder %s112, 0
    %s115 = sadd.s32 %s114, 1
    %s116 = scalar_select %p113, %s114, %s115
    %p119 = pneg %p113
    %p120 = scmp.eq.s32.totalorder %s10, 1
    %p121 = por %p119, %p120
    %p122 = scmp.ne.s32.totalorder %s114, %s117
    %p123 = scmp.eq.s32.totalorder %s10, 0
    %p124 = por %p122, %p123
    %p125 = scmp.ne.s32.totalorder %s114, %s117
    %p126 = scmp.eq.s32.totalorder %s15, 1
    %p127 = por %p125, %p126
    %p128 = scmp.ne.s32.totalorder %s117, %s118
    %p129 = scmp.eq.s32.totalorder %s15, 0
    %p130 = por %p128, %p129
    %p131 = scmp.ne.s32.totalorder %s117, %s118
    %p132 = scmp.eq.s32.totalorder %s16, 1
    %p133 = por %p131, %p132
    %p135 = scmp.ne.s32.totalorder %s118, %s134
    %p136 = scmp.eq.s32.totalorder %s16, 0
    %p137 = por %p135, %p136
    %p138 = scmp.le.s32.totalorder 1, %s10
    %p139 = scmp.lt.s32.totalorder %s10, 3
    %p140 = pnand %p138, %p139
    %p141 = pneg %p140
    // Predicated region
    $region9: #{basic_block_forward.5} parent=5 // pred_check
      _
    $region10: #{basic_block_forward.5} parent=5 // pred_check_branch
      %143 = sbr.rel (%p140) target = $region12
    $region11: #{basic_block_forward.5} parent=5 // pred_region
      %s144 = ssub.s32 %s10, 1
      // Predicated region
      $region13: #{basic_block_forward.5} parent=11 // pred_check
        %p145 = pneg %p57
      $region14: #{basic_block_forward.5} parent=11 // pred_check_branch
        %147 = sbr.rel (%p145) target = $region16
      $region15: #{basic_block_forward.5} parent=11 // pred_region
        _
      $region16: #{basic_block_forward.5} parent=11 // pred_fallthru
        _
      // Predicated region
      $region17: #{basic_block_forward.5} parent=11 // pred_check
        %p148 = pneg %p78
      $region18: #{basic_block_forward.5} parent=11 // pred_check_branch
        %150 = sbr.rel (%p148) target = $region20
      $region19: #{basic_block_forward.5} parent=11 // pred_region
        _
      $region20: #{basic_block_forward.5} parent=11 // pred_fallthru
        _
    $region12: #{basic_block_forward.5} parent=5 // pred_fallthru
      _
    %p151 = scmp.lt.s32.totalorder %s10, 2
    // Predicated region
    $region21: #{basic_block_forward.5} parent=5 // pred_check
      %p152 = pneg %p151
    $region22: #{basic_block_forward.5} parent=5 // pred_check_branch
      %154 = sbr.rel (%p152) target = $region24
    $region23: #{basic_block_forward.5} parent=5 // pred_region
      // Predicated region
      $region25: #{basic_block_forward.5} parent=23 // pred_check
        %p155 = pneg %p30
      $region26: #{basic_block_forward.5} parent=23 // pred_check_branch
        %157 = sbr.rel (%p155) target = $region28
      $region27: #{basic_block_forward.5} parent=23 // pred_region
        %p158 = scmp.lt.s32.totalorder %s10, 1
        %s159 = scalar_select %p158, %s10, 1
        %s160 = smul.addr %s159, 4
        %s161 = scalar_lea.vmem %s0, %s160
      $region28: #{basic_block_forward.5} parent=23 // pred_fallthru
        _
      // Predicated region
      $region29: #{basic_block_forward.5} parent=23 // pred_check
        %p162 = pneg %p98
      $region30: #{basic_block_forward.5} parent=23 // pred_check_branch
        %164 = sbr.rel (%p162) target = $region32
      $region31: #{basic_block_forward.5} parent=23 // pred_region
        %p165 = scmp.lt.s32.totalorder %s10, 1
        %s166 = scalar_select %p165, %s10, 1
        %s167 = smul.addr %s166, 8
        %s168 = scalar_lea.vmem %s3, %s167
      $region32: #{basic_block_forward.5} parent=23 // pred_fallthru
        _
    $region24: #{basic_block_forward.5} parent=5 // pred_fallthru
      _
    %p169 = scmp.le.s32.totalorder 1, %s10
    %p170 = scmp.lt.s32.totalorder %s10, 3
    %p171 = pnand %p169, %p170
    %p172 = pneg %p171
    // Predicated region
    $region33: #{basic_block_forward.5} parent=5 // pred_check
      _
    $region34: #{basic_block_forward.5} parent=5 // pred_check_branch
      %174 = sbr.rel (%p171) target = $region36
    $region35: #{basic_block_forward.5} parent=5 // pred_region
      %s175 = ssub.s32 %s10, 1
      %p176 = scmp.lt.s32.totalorder %s15, 1
      %s177 = scalar_select %p176, %s15, 1
      %s178 = smul.addr %s177, 4
      %s179 = scalar_lea.vmem %s0, %s178
      %p180 = pneg %p36
      %p181 = pneg %p33
      %p182 = pneg %p57
      %p183 = pneg %p54
      %p184 = pneg %p78
      %p185 = pneg %p75
      %p186 = scmp.lt.s32.totalorder %s15, 1
      %s187 = scalar_select %p186, %s15, 1
      %s188 = smul.addr %s187, 8
      %s189 = scalar_lea.vmem %s3, %s188
      %p190 = pneg %p104
      %p191 = pneg %p101
      %p192 = pneg %p130
      %p193 = pneg %p127
      %p194 = scmp.lt.s32.totalorder %s15, 1
      %s195 = scalar_select %p194, %s15, 1
      %s196 = smul.addr %s195, 8
      %s197 = scalar_lea.vmem %s4, %s196
      %p198 = scmp.lt.s32.totalorder %s15, 1
      %s199 = scalar_select %p198, %s15, 1
      %s200 = smul.addr %s199, 4
      %s201 = scalar_lea.vmem %s0, %s200
      %p202 = scmp.lt.s32.totalorder %s15, 1
      %s203 = scalar_select %p202, %s15, 1
      %s204 = smul.addr %s203, 8
      %s205 = scalar_lea.vmem %s3, %s204
      %p206 = scmp.lt.s32.totalorder %s15, 1
      %s207 = scalar_select %p206, %s15, 1
      %s208 = smul.addr %s207, 8
      %s209 = scalar_lea.vmem %s4, %s208
      %v210 = vld [vmem:[%s201] sm:$0xf]
      %v211 = vunpack.c.l.bf16 %v210
      %v212 = vld [vmem:[%s1] sm:$0x1]
      %v214 = vlaneseq
      %v215 = vshrl.u32 %v214, 7
      %v216 = vsub.s32 0, %v215
      %v217 = vrot.slane %v212, %v216
      %v219 = vmul.f32 %v211, %v217
      %v220 = vld [vmem:[%s2] sm:$0x1]
      %v222 = vlaneseq
      %v223 = vshrl.u32 %v222, 7
      %v224 = vsub.s32 0, %v223
      %v225 = vrot.slane %v220, %v224
      %v227 = vadd.f32 %v219, %v225
      %v228 = vld [vmem:[%s205] sm:$0xff]
      %v229 = vadd.f32 %v227, %v228
      %v230 = vmax.f32 %v229, 0.0
      %231 = vst [vmem:[%s209] sm:$0xff] %v230
      %p232 = scmp.lt.s32.totalorder %s15, 1
      %s233 = scalar_select %p232, %s15, 1
      %s234 = smul.addr %s233, 8
      %s235 = scalar_lea.vmem %s4, %s234
      // Predicated region
      $region37: #{basic_block_forward.5} parent=35 // pred_check
        %p236 = pneg %p127
      $region38: #{basic_block_forward.5} parent=35 // pred_check_branch
        %238 = sbr.rel (%p236) target = $region40
      $region39: #{basic_block_forward.5} parent=35 // pred_region
        _
      $region40: #{basic_block_forward.5} parent=35 // pred_fallthru
        _
    $region36: #{basic_block_forward.5} parent=5 // pred_fallthru
      _
    %p239 = scmp.le.s32.totalorder 2, %s10
    // Predicated region
    $region41: #{basic_block_forward.5} parent=5 // pred_check
      %p240 = pneg %p239
    $region42: #{basic_block_forward.5} parent=5 // pred_check_branch
      %242 = sbr.rel (%p240) target = $region44
    $region43: #{basic_block_forward.5} parent=5 // pred_region
      %s243 = ssub.s32 %s10, 2
      // Predicated region
      $region45: #{basic_block_forward.5} parent=43 // pred_check
        %p244 = pneg %p133
      $region46: #{basic_block_forward.5} parent=43 // pred_check_branch
        %246 = sbr.rel (%p244) target = $region48
      $region47: #{basic_block_forward.5} parent=43 // pred_region
        %p247 = scmp.lt.s32.totalorder %s16, 1
        %s248 = scalar_select %p247, %s16, 1
        %s249 = smul.addr %s248, 8
        %s250 = scalar_lea.vmem %s4, %s249
      $region48: #{basic_block_forward.5} parent=43 // pred_fallthru
        _
    $region44: #{basic_block_forward.5} parent=5 // pred_fallthru
      _
  $region6: #{basic_block_forward.5} parent=0 // loop_footer
    %s14 = sadd.s32 1, %s10
  $region7: #{basic_block_forward.5} parent=0 // loop_footer_branch
    %9 = sbr.rel target = $region3
  $region8: #{basic_block_forward.5} parent=0 // loop_exit
    _

// kernel: basic_block_forward.3
$region0: #{basic_block_forward.3}
  #allocation0 [shape = 'u32[]', space=smem, size = 0x4, offset = 0x4, fixed_abs, tag = 'smem constant byte address 0x4 - core index']
  #allocation1 [shape = 'u32[144,128]{1,0:T(1,128)}', space=vmem, size = 0x12000, scoped, tag = 'internal scratch']
  %s0 = inlined_call_operand.vmem [shape: bf16[2,18,18,4], index: 0, kind: input, shape index: {}]
  %s1 = inlined_call_operand.vmem [shape: bf16[36,4], index: 1, kind: input, shape index: {}]
  %s2 = inlined_call_operand.vmem [shape: bf16[2,256,4], index: 2, kind: output, shape index: {0}]
  %s3 = inlined_call_operand.vmem [shape: f32[2,1,4], index: 3, kind: output, shape index: {1}]
  %s4 = inlined_call_operand.vmem [shape: f32[2,1,4], index: 4, kind: output, shape index: {2}]
  %5 = xla_tuple %s2, %s3, %s4
  %s6 = sld [smem:[#allocation0]]
  $region61: #{basic_block_forward.3} parent=0
    _
  %s8 = ssub.s32 1, %s6
  %s9 = scalar_select 0, %s8, %s6
  loop: start=0, step=1, limit=4
  $region2: #{basic_block_forward.3} parent=0 // loop_pre_header
    _
  $region3: #{basic_block_forward.3} parent=0 // loop_header
    %s11 = sphi 0, %s15
    %p12 = scmp.ge.s32.totalorder %s11, 4
    %s18 = sphi 0, %s30
    %s19 = sphi 0, %s26
    %s20 = sphi 0, %s18
    %s21 = sphi 0, %s19
    %s22 = sphi 0, %s20
    %s23 = sphi 0, %s21
    %s35 = sphi 0, %s37
    %s38 = sphi 0, %s35
    %s39 = sphi 0, %s38
    %s55 = sphi 0, %s39
    %s59 = sphi 0, %s59
    %s61 = sphi 0, %s59
    %s62 = sphi 0, %s61
    %s76 = sphi 0, %s62
    %s84 = sphi 0, %s86
    %s87 = sphi 0, %s84
    %s88 = sphi 0, %s87
    %s104 = sphi 0, %s88
    %s110 = sphi 0, %s112
    %s113 = sphi 0, %s110
    %s114 = sphi 0, %s113
    %s130 = sphi 0, %s114
    %s136 = sphi 0, %s138
    %s139 = sphi 0, %s136
    %s140 = sphi 0, %s139
    %s156 = sphi 0, %s140
  $region4: #{basic_block_forward.3} parent=0 // loop_header_branch
    %14 = sbr.rel (%p12) target = $region8
  $region5: #{basic_block_forward.3} parent=0 // loop_body
    %s16 = ssub.s32 %s11, 1
    %s17 = ssub.s32 %s11, 2
    %s24 = sadd.s32 1, %s19
    %p25 = scmp.ge.s32.totalorder %s24, 1
    %s26 = scalar_select %p25, 0, %s24
    %s27 = sadd.s32 1, %s18
    %s28 = scalar_select %p25, %s27, %s18
    %p29 = scmp.ge.s32.totalorder %s28, 2
    %s30 = scalar_select %p29, 0, %s28
    %s31 = sadd.s32 %s18, %s19
    %s32 = sadd.s32 %s30, %s26
    %s33 = ssub.s32 %s31, %s32
    %p34 = scmp.eq.s32.totalorder %s33, 0
    %s36 = sadd.s32 %s35, 1
    %s37 = scalar_select %p34, %s35, %s36
    %p40 = pneg %p34
    %p41 = scmp.eq.s32.totalorder %s11, 1
    %p42 = por %p40, %p41
    %p43 = scmp.ne.s32.totalorder %s35, %s38
    %p44 = scmp.eq.s32.totalorder %s11, 0
    %p45 = por %p43, %p44
    %p46 = scmp.ne.s32.totalorder %s35, %s38
    %p47 = scmp.eq.s32.totalorder %s16, 1
    %p48 = por %p46, %p47
    %p49 = scmp.ne.s32.totalorder %s38, %s39
    %p50 = scmp.eq.s32.totalorder %s16, 0
    %p51 = por %p49, %p50
    %p52 = scmp.ne.s32.totalorder %s38, %s39
    %p53 = scmp.eq.s32.totalorder %s17, 1
    %p54 = por %p52, %p53
    %p56 = scmp.ne.s32.totalorder %s39, %s55
    %p57 = scmp.eq.s32.totalorder %s17, 0
    %p58 = por %p56, %p57
    %s60 = sadd.s32 %s59, 1
    %p63 = scmp.eq.s32.totalorder %s11, 1
    %p64 = scmp.ne.s32.totalorder %s59, %s61
    %p65 = scmp.eq.s32.totalorder %s11, 0
    %p66 = por %p64, %p65
    %p67 = scmp.ne.s32.totalorder %s59, %s61
    %p68 = scmp.eq.s32.totalorder %s16, 1
    %p69 = por %p67, %p68
    %p70 = scmp.ne.s32.totalorder %s61, %s62
    %p71 = scmp.eq.s32.totalorder %s16, 0
    %p72 = por %p70, %p71
    %p73 = scmp.ne.s32.totalorder %s61, %s62
    %p74 = scmp.eq.s32.totalorder %s17, 1
    %p75 = por %p73, %p74
    %p77 = scmp.ne.s32.totalorder %s62, %s76
    %p78 = scmp.eq.s32.totalorder %s17, 0
    %p79 = por %p77, %p78
    %s80 = sadd.s32 %s18, %s19
    %s81 = sadd.s32 %s30, %s26
    %s82 = ssub.s32 %s80, %s81
    %p83 = scmp.eq.s32.totalorder %s82, 0
    %s85 = sadd.s32 %s84, 1
    %s86 = scalar_select %p83, %s84, %s85
    %p89 = pneg %p83
    %p90 = scmp.eq.s32.totalorder %s11, 1
    %p91 = por %p89, %p90
    %p92 = scmp.ne.s32.totalorder %s84, %s87
    %p93 = scmp.eq.s32.totalorder %s11, 0
    %p94 = por %p92, %p93
    %p95 = scmp.ne.s32.totalorder %s84, %s87
    %p96 = scmp.eq.s32.totalorder %s16, 1
    %p97 = por %p95, %p96
    %p98 = scmp.ne.s32.totalorder %s87, %s88
    %p99 = scmp.eq.s32.totalorder %s16, 0
    %p100 = por %p98, %p99
    %p101 = scmp.ne.s32.totalorder %s87, %s88
    %p102 = scmp.eq.s32.totalorder %s17, 1
    %p103 = por %p101, %p102
    %p105 = scmp.ne.s32.totalorder %s88, %s104
    %p106 = scmp.eq.s32.totalorder %s17, 0
    %p107 = por %p105, %p106
    %s108 = ssub.s32 %s18, %s30
    %p109 = scmp.eq.s32.totalorder %s108, 0
    %s111 = sadd.s32 %s110, 1
    %s112 = scalar_select %p109, %s110, %s111
    %p115 = pneg %p109
    %p116 = scmp.eq.s32.totalorder %s11, 1
    %p117 = por %p115, %p116
    %p118 = scmp.ne.s32.totalorder %s110, %s113
    %p119 = scmp.eq.s32.totalorder %s11, 0
    %p120 = por %p118, %p119
    %p121 = scmp.ne.s32.totalorder %s110, %s113
    %p122 = scmp.eq.s32.totalorder %s16, 1
    %p123 = por %p121, %p122
    %p124 = scmp.ne.s32.totalorder %s113, %s114
    %p125 = scmp.eq.s32.totalorder %s16, 0
    %p126 = por %p124, %p125
    %p127 = scmp.ne.s32.totalorder %s113, %s114
    %p128 = scmp.eq.s32.totalorder %s17, 1
    %p129 = por %p127, %p128
    %p131 = scmp.ne.s32.totalorder %s114, %s130
    %p132 = scmp.eq.s32.totalorder %s17, 0
    %p133 = por %p131, %p132
    %s134 = ssub.s32 %s18, %s30
    %p135 = scmp.eq.s32.totalorder %s134, 0
    %s137 = sadd.s32 %s136, 1
    %s138 = scalar_select %p135, %s136, %s137
    %p141 = pneg %p135
    %p142 = scmp.eq.s32.totalorder %s11, 1
    %p143 = por %p141, %p142
    %p144 = scmp.ne.s32.totalorder %s136, %s139
    %p145 = scmp.eq.s32.totalorder %s11, 0
    %p146 = por %p144, %p145
    %p147 = scmp.ne.s32.totalorder %s136, %s139
    %p148 = scmp.eq.s32.totalorder %s16, 1
    %p149 = por %p147, %p148
    %p150 = scmp.ne.s32.totalorder %s139, %s140
    %p151 = scmp.eq.s32.totalorder %s16, 0
    %p152 = por %p150, %p151
    %p153 = scmp.ne.s32.totalorder %s139, %s140
    %p154 = scmp.eq.s32.totalorder %s17, 1
    %p155 = por %p153, %p154
    %p157 = scmp.ne.s32.totalorder %s140, %s156
    %p158 = scmp.eq.s32.totalorder %s17, 0
    %p159 = por %p157, %p158
    %p160 = scmp.le.s32.totalorder 1, %s11
    %p161 = scmp.lt.s32.totalorder %s11, 3
    %p162 = pnand %p160, %p161
    %p163 = pneg %p162
    // Predicated region
    $region9: #{basic_block_forward.3} parent=5 // pred_check
      _
    $region10: #{basic_block_forward.3} parent=5 // pred_check_branch
      %165 = sbr.rel (%p162) target = $region12
    $region11: #{basic_block_forward.3} parent=5 // pred_region
      %s166 = ssub.s32 %s11, 1
      // Predicated region
      $region13: #{basic_block_forward.3} parent=11 // pred_check
        %p167 = pneg %p72
      $region14: #{basic_block_forward.3} parent=11 // pred_check_branch
        %169 = sbr.rel (%p167) target = $region16
      $region15: #{basic_block_forward.3} parent=11 // pred_region
        _
      $region16: #{basic_block_forward.3} parent=11 // pred_fallthru
        _
    $region12: #{basic_block_forward.3} parent=5 // pred_fallthru
      _
    %p170 = scmp.lt.s32.totalorder %s11, 2
    // Predicated region
    $region17: #{basic_block_forward.3} parent=5 // pred_check
      %p171 = pneg %p170
    $region18: #{basic_block_forward.3} parent=5 // pred_check_branch
      %173 = sbr.rel (%p171) target = $region20
    $region19: #{basic_block_forward.3} parent=5 // pred_region
      // Predicated region
      $region21: #{basic_block_forward.3} parent=19 // pred_check
        %p174 = pneg %p45
      $region22: #{basic_block_forward.3} parent=19 // pred_check_branch
        %176 = sbr.rel (%p174) target = $region24
      $region23: #{basic_block_forward.3} parent=19 // pred_region
        %s177 = sadd.s32 %s18, %s19
        %p178 = scmp.lt.s32.totalorder %s177, 1
        %s179 = scalar_select %p178, %s177, 1
        %s180 = smul.addr %s179, 54
        %s181 = smul.addr %s180, 4
        %s182 = scalar_lea.vmem %s0, %s181
        %s183 = sadd.s32 %s18, %s19
      $region24: #{basic_block_forward.3} parent=19 // pred_fallthru
        _
    $region20: #{basic_block_forward.3} parent=5 // pred_fallthru
      _
    %p184 = scmp.le.s32.totalorder 1, %s11
    %p185 = scmp.lt.s32.totalorder %s11, 3
    %p186 = pnand %p184, %p185
    %p187 = pneg %p186
    // Predicated region
    $region25: #{basic_block_forward.3} parent=5 // pred_check
      _
    $region26: #{basic_block_forward.3} parent=5 // pred_check_branch
      %189 = sbr.rel (%p186) target = $region28
    $region27: #{basic_block_forward.3} parent=5 // pred_region
      %s190 = ssub.s32 %s11, 1
      %s191 = sadd.s32 %s20, %s21
      %p192 = scmp.lt.s32.totalorder %s191, 1
      %s193 = scalar_select %p192, %s191, 1
      %s194 = smul.addr %s193, 54
      %s195 = smul.addr %s194, 4
      %s196 = scalar_lea.vmem %s0, %s195
      %p197 = pneg %p51
      %p198 = pneg %p48
      %p199 = pneg %p72
      %p200 = pneg %p69
      %p201 = pneg %p100
      %p202 = pneg %p97
      %s203 = sadd.s32 %s20, %s21
      %p204 = scmp.lt.s32.totalorder %s203, 1
      %s205 = scalar_select %p204, %s203, 1
      %s206 = smul.addr %s205, 32
      %s207 = smul.addr %s206, 4
      %s208 = scalar_lea.vmem %s2, %s207
      %p209 = pneg %p126
      %p210 = pneg %p123
      %p211 = scmp.lt.s32.totalorder %s20, 1
      %s212 = scalar_select %p211, %s20, 1
      %s213 = scalar_lea.vmem %s3, %s212
      %p214 = pneg %p152
      %p215 = pneg %p149
      %p216 = scmp.lt.s32.totalorder %s20, 1
      %s217 = scalar_select %p216, %s20, 1
      %s218 = scalar_lea.vmem %s4, %s217
      %s219 = sadd.s32 %s20, %s21
      %p220 = scmp.lt.s32.totalorder %s219, 1
      %s221 = scalar_select %p220, %s219, 1
      %s222 = smul.addr %s221, 54
      %s223 = smul.addr %s222, 4
      %s224 = scalar_lea.vmem %s0, %s223
      %s225 = sadd.s32 %s20, %s21
      %s226 = sadd.s32 %s20, %s21
      %p227 = scmp.lt.s32.totalorder %s226, 1
      %s228 = scalar_select %p227, %s226, 1
      %s229 = smul.addr %s228, 32
      %s230 = smul.addr %s229, 4
      %s231 = scalar_lea.vmem %s2, %s230
      %s232 = sadd.s32 %s20, %s21
      %p233 = scmp.lt.s32.totalorder %s20, 1
      %s234 = scalar_select %p233, %s20, 1
      %s235 = scalar_lea.vmem %s3, %s234
      %p236 = scmp.lt.s32.totalorder %s20, 1
      %s237 = scalar_select %p236, %s20, 1
      %s238 = scalar_lea.vmem %s4, %s237
      %p240 = scmp.eq.s32.totalorder %s21, 0
      // Predicated region
      $region29: #{basic_block_forward.3} parent=27 // pred_check
        %p241 = pneg %p240
      $region30: #{basic_block_forward.3} parent=27 // pred_check_branch
        %243 = sbr.rel (%p241) target = $region32
      $region31: #{basic_block_forward.3} parent=27 // pred_region
        %vm244 = vcmask 24576
        %245 = vst.msk [vmem:[%s235] sm:$0x1] %vm244, 0.0
        %246 = vst.msk [vmem:[%s238] sm:$0x1] %vm244, 0.0
      $region32: #{basic_block_forward.3} parent=27 // pred_fallthru
        _
      %v247 = vld [vmem:[%s224] sm:$0xf]
      %v248 = vld [vmem:[%s224 + $0x4] sm:$0xf]
      %v249 = vld [vmem:[%s224 + $0xc] sm:$0xf]
      %v250 = vld [vmem:[%s224 + $0x10] sm:$0xf]
      %v251 = vld [vmem:[%s224 + $0x18] sm:$0xf]
      %v252 = vld [vmem:[%s224 + $0x1c] sm:$0xf]
      %v253 = vld [vmem:[%s224 + $0x24] sm:$0xf]
      %v254 = vld [vmem:[%s224 + $0x28] sm:$0xf]
      %v255 = vld [vmem:[%s224 + $0x30] sm:$0xf]
      %v256 = vld [vmem:[%s224 + $0x34] sm:$0xf]
      %v257 = vld [vmem:[%s224 + $0x3c] sm:$0xf]
      %v258 = vld [vmem:[%s224 + $0x40] sm:$0xf]
      %v259 = vld [vmem:[%s224 + $0x48] sm:$0xf]
      %v260 = vld [vmem:[%s224 + $0x4c] sm:$0xf]
      %v261 = vld [vmem:[%s224 + $0x54] sm:$0xf]
      %v262 = vld [vmem:[%s224 + $0x58] sm:$0xf]
      %v263 = vld [vmem:[%s224 + $0x60] sm:$0xf]
      %v264 = vld [vmem:[%s224 + $0x64] sm:$0xf]
      %v265 = vld [vmem:[%s224 + $0x6c] sm:$0xf]
      %v266 = vld [vmem:[%s224 + $0x70] sm:$0xf]
      %v267 = vld [vmem:[%s224 + $0x78] sm:$0xf]
      %v268 = vld [vmem:[%s224 + $0x7c] sm:$0xf]
      %v269 = vld [vmem:[%s224 + $0x84] sm:$0xf]
      %v270 = vld [vmem:[%s224 + $0x88] sm:$0xf]
      %v271 = vld [vmem:[%s224 + $0x90] sm:$0xf]
      %v272 = vld [vmem:[%s224 + $0x94] sm:$0xf]
      %v273 = vld [vmem:[%s224 + $0x9c] sm:$0xf]
      %v274 = vld [vmem:[%s224 + $0xa0] sm:$0xf]
      %v275 = vld [vmem:[%s224 + $0xa8] sm:$0xf]
      %v276 = vld [vmem:[%s224 + $0xac] sm:$0xf]
      %v277 = vld [vmem:[%s224 + $0xb4] sm:$0xf]
      %v278 = vld [vmem:[%s224 + $0xb8] sm:$0xf]
      %v279 = vld [vmem:[%s224 + $0x8] sm:$0x1]
      %v280 = vld [vmem:[%s224 + $0x14] sm:$0x1]
      %v281 = vld [vmem:[%s224 + $0x20] sm:$0x1]
      %v282 = vld [vmem:[%s224 + $0x2c] sm:$0x1]
      %v283 = vld [vmem:[%s224 + $0x38] sm:$0x1]
      %v284 = vld [vmem:[%s224 + $0x44] sm:$0x1]
      %v285 = vld [vmem:[%s224 + $0x50] sm:$0x1]
      %v286 = vld [vmem:[%s224 + $0x5c] sm:$0x1]
      %v287 = vld [vmem:[%s224 + $0x68] sm:$0x1]
      %v288 = vld [vmem:[%s224 + $0x74] sm:$0x1]
      %v289 = vld [vmem:[%s224 + $0x80] sm:$0x1]
      %v290 = vld [vmem:[%s224 + $0x8c] sm:$0x1]
      %v291 = vld [vmem:[%s224 + $0x98] sm:$0x1]
      %v292 = vld [vmem:[%s224 + $0xa4] sm:$0x1]
      %v293 = vld [vmem:[%s224 + $0xb0] sm:$0x1]
      %v294 = vld [vmem:[%s224 + $0xbc] sm:$0x1]
      %v295 = vld [vmem:[%s224] sm:$0xe]
      %v296 = vld [vmem:[%s224 + $0xc] sm:$0xe]
      %v297 = vld [vmem:[%s224 + $0x18] sm:$0xe]
      %v298 = vld [vmem:[%s224 + $0x24] sm:$0xe]
      %v299 = vld [vmem:[%s224 + $0x30] sm:$0xe]
      %v300 = vld [vmem:[%s224 + $0x3c] sm:$0xe]
      %v301 = vld [vmem:[%s224 + $0x48] sm:$0xe]
      %v302 = vld [vmem:[%s224 + $0x54] sm:$0xe]
      %v303 = vld [vmem:[%s224 + $0x60] sm:$0xe]
      %v304 = vld [vmem:[%s224 + $0x6c] sm:$0xe]
      %v305 = vld [vmem:[%s224 + $0x78] sm:$0xe]
      %v306 = vld [vmem:[%s224 + $0x84] sm:$0xe]
      %v307 = vld [vmem:[%s224 + $0x90] sm:$0xe]
      %v308 = vld [vmem:[%s224 + $0x9c] sm:$0xe]
      %v309 = vld [vmem:[%s224 + $0xa8] sm:$0xe]
      %v310 = vld [vmem:[%s224 + $0xb4] sm:$0xe]
      %s311 = scalar_lea.vmem %s224, 12
      %v312 = vld [vmem:[%s311] sm:$0xf]
      %v313 = vld [vmem:[%s311 + $0x4] sm:$0xf]
      %v314 = vld [vmem:[%s311 + $0xc] sm:$0xf]
      %v315 = vld [vmem:[%s311 + $0x10] sm:$0xf]
      %v316 = vld [vmem:[%s311 + $0x18] sm:$0xf]
      %v317 = vld [vmem:[%s311 + $0x1c] sm:$0xf]
      %v318 = vld [vmem:[%s311 + $0x24] sm:$0xf]
      %v319 = vld [vmem:[%s311 + $0x28] sm:$0xf]
      %v320 = vld [vmem:[%s311 + $0x30] sm:$0xf]
      %v321 = vld [vmem:[%s311 + $0x34] sm:$0xf]
      %v322 = vld [vmem:[%s311 + $0x3c] sm:$0xf]
      %v323 = vld [vmem:[%s311 + $0x40] sm:$0xf]
      %v324 = vld [vmem:[%s311 + $0x48] sm:$0xf]
      %v325 = vld [vmem:[%s311 + $0x4c] sm:$0xf]
      %v326 = vld [vmem:[%s311 + $0x54] sm:$0xf]
      %v327 = vld [vmem:[%s311 + $0x58] sm:$0xf]
      %v328 = vld [vmem:[%s311 + $0x60] sm:$0xf]
      %v329 = vld [vmem:[%s311 + $0x64] sm:$0xf]
      %v330 = vld [vmem:[%s311 + $0x6c] sm:$0xf]
      %v331 = vld [vmem:[%s311 + $0x70] sm:$0xf]
      %v332 = vld [vmem:[%s311 + $0x78] sm:$0xf]
      %v333 = vld [vmem:[%s311 + $0x7c] sm:$0xf]
      %v334 = vld [vmem:[%s311 + $0x84] sm:$0xf]
      %v335 = vld [vmem:[%s311 + $0x88] sm:$0xf]
      %v336 = vld [vmem:[%s311 + $0x90] sm:$0xf]
      %v337 = vld [vmem:[%s311 + $0x94] sm:$0xf]
      %v338 = vld [vmem:[%s311 + $0x9c] sm:$0xf]
      %v339 = vld [vmem:[%s311 + $0xa0] sm:$0xf]
      %v340 = vld [vmem:[%s311 + $0xa8] sm:$0xf]
      %v341 = vld [vmem:[%s311 + $0xac] sm:$0xf]
      %v342 = vld [vmem:[%s311 + $0xb4] sm:$0xf]
      %v343 = vld [vmem:[%s311 + $0xb8] sm:$0xf]
      %v344 = vld [vmem:[%s311 + $0x8] sm:$0x1]
      %v345 = vld [vmem:[%s311 + $0x14] sm:$0x1]
      %v346 = vld [vmem:[%s311 + $0x20] sm:$0x1]
      %v347 = vld [vmem:[%s311 + $0x2c] sm:$0x1]
      %v348 = vld [vmem:[%s311 + $0x38] sm:$0x1]
      %v349 = vld [vmem:[%s311 + $0x44] sm:$0x1]
      %v350 = vld [vmem:[%s311 + $0x50] sm:$0x1]
      %v351 = vld [vmem:[%s311 + $0x5c] sm:$0x1]
      %v352 = vld [vmem:[%s311 + $0x68] sm:$0x1]
      %v353 = vld [vmem:[%s311 + $0x74] sm:$0x1]
      %v354 = vld [vmem:[%s311 + $0x80] sm:$0x1]
      %v355 = vld [vmem:[%s311 + $0x8c] sm:$0x1]
      %v356 = vld [vmem:[%s311 + $0x98] sm:$0x1]
      %v357 = vld [vmem:[%s311 + $0xa4] sm:$0x1]
      %v358 = vld [vmem:[%s311 + $0xb0] sm:$0x1]
      %v359 = vld [vmem:[%s311 + $0xbc] sm:$0x1]
      %v360 = vld [vmem:[%s311] sm:$0xe]
      %v361 = vld [vmem:[%s311 + $0xc] sm:$0xe]
      %v362 = vld [vmem:[%s311 + $0x18] sm:$0xe]
      %v363 = vld [vmem:[%s311 + $0x24] sm:$0xe]
      %v364 = vld [vmem:[%s311 + $0x30] sm:$0xe]
      %v365 = vld [vmem:[%s311 + $0x3c] sm:$0xe]
      %v366 = vld [vmem:[%s311 + $0x48] sm:$0xe]
      %v367 = vld [vmem:[%s311 + $0x54] sm:$0xe]
      %v368 = vld [vmem:[%s311 + $0x60] sm:$0xe]
      %v369 = vld [vmem:[%s311 + $0x6c] sm:$0xe]
      %v370 = vld [vmem:[%s311 + $0x78] sm:$0xe]
      %v371 = vld [vmem:[%s311 + $0x84] sm:$0xe]
      %v372 = vld [vmem:[%s311 + $0x90] sm:$0xe]
      %v373 = vld [vmem:[%s311 + $0x9c] sm:$0xe]
      %v374 = vld [vmem:[%s311 + $0xa8] sm:$0xe]
      %v375 = vld [vmem:[%s311 + $0xb4] sm:$0xe]
      %s376 = scalar_lea.vmem %s224, 24
      %v377 = vld [vmem:[%s376] sm:$0xf]
      %v378 = vld [vmem:[%s376 + $0x4] sm:$0xf]
      %v379 = vld [vmem:[%s376 + $0xc] sm:$0xf]
      %v380 = vld [vmem:[%s376 + $0x10] sm:$0xf]
      %v381 = vld [vmem:[%s376 + $0x18] sm:$0xf]
      %v382 = vld [vmem:[%s376 + $0x1c] sm:$0xf]
      %v383 = vld [vmem:[%s376 + $0x24] sm:$0xf]
      %v384 = vld [vmem:[%s376 + $0x28] sm:$0xf]
      %v385 = vld [vmem:[%s376 + $0x30] sm:$0xf]
      %v386 = vld [vmem:[%s376 + $0x34] sm:$0xf]
      %v387 = vld [vmem:[%s376 + $0x3c] sm:$0xf]
      %v388 = vld [vmem:[%s376 + $0x40] sm:$0xf]
      %v389 = vld [vmem:[%s376 + $0x48] sm:$0xf]
      %v390 = vld [vmem:[%s376 + $0x4c] sm:$0xf]
      %v391 = vld [vmem:[%s376 + $0x54] sm:$0xf]
      %v392 = vld [vmem:[%s376 + $0x58] sm:$0xf]
      %v393 = vld [vmem:[%s376 + $0x60] sm:$0xf]
      %v394 = vld [vmem:[%s376 + $0x64] sm:$0xf]
      %v395 = vld [vmem:[%s376 + $0x6c] sm:$0xf]
      %v396 = vld [vmem:[%s376 + $0x70] sm:$0xf]
      %v397 = vld [vmem:[%s376 + $0x78] sm:$0xf]
      %v398 = vld [vmem:[%s376 + $0x7c] sm:$0xf]
      %v399 = vld [vmem:[%s376 + $0x84] sm:$0xf]
      %v400 = vld [vmem:[%s376 + $0x88] sm:$0xf]
      %v401 = vld [vmem:[%s376 + $0x90] sm:$0xf]
      %v402 = vld [vmem:[%s376 + $0x94] sm:$0xf]
      %v403 = vld [vmem:[%s376 + $0x9c] sm:$0xf]
      %v404 = vld [vmem:[%s376 + $0xa0] sm:$0xf]
      %v405 = vld [vmem:[%s376 + $0xa8] sm:$0xf]
      %v406 = vld [vmem:[%s376 + $0xac] sm:$0xf]
      %v407 = vld [vmem:[%s376 + $0xb4] sm:$0xf]
      %v408 = vld [vmem:[%s376 + $0xb8] sm:$0xf]
      %v409 = vld [vmem:[%s376 + $0x8] sm:$0x1]
      %v410 = vld [vmem:[%s376 + $0x14] sm:$0x1]
      %v411 = vld [vmem:[%s376 + $0x20] sm:$0x1]
      %v412 = vld [vmem:[%s376 + $0x2c] sm:$0x1]
      %v413 = vld [vmem:[%s376 + $0x38] sm:$0x1]
      %v414 = vld [vmem:[%s376 + $0x44] sm:$0x1]
      %v415 = vld [vmem:[%s376 + $0x50] sm:$0x1]
      %v416 = vld [vmem:[%s376 + $0x5c] sm:$0x1]
      %v417 = vld [vmem:[%s376 + $0x68] sm:$0x1]
      %v418 = vld [vmem:[%s376 + $0x74] sm:$0x1]
      %v419 = vld [vmem:[%s376 + $0x80] sm:$0x1]
      %v420 = vld [vmem:[%s376 + $0x8c] sm:$0x1]
      %v421 = vld [vmem:[%s376 + $0x98] sm:$0x1]
      %v422 = vld [vmem:[%s376 + $0xa4] sm:$0x1]
      %v423 = vld [vmem:[%s376 + $0xb0] sm:$0x1]
      %v424 = vld [vmem:[%s376 + $0xbc] sm:$0x1]
      %v425 = vld [vmem:[%s376] sm:$0xe]
      %v426 = vld [vmem:[%s376 + $0xc] sm:$0xe]
      %v427 = vld [vmem:[%s376 + $0x18] sm:$0xe]
      %v428 = vld [vmem:[%s376 + $0x24] sm:$0xe]
      %v429 = vld [vmem:[%s376 + $0x30] sm:$0xe]
      %v430 = vld [vmem:[%s376 + $0x3c] sm:$0xe]
      %v431 = vld [vmem:[%s376 + $0x48] sm:$0xe]
      %v432 = vld [vmem:[%s376 + $0x54] sm:$0xe]
      %v433 = vld [vmem:[%s376 + $0x60] sm:$0xe]
      %v434 = vld [vmem:[%s376 + $0x6c] sm:$0xe]
      %v435 = vld [vmem:[%s376 + $0x78] sm:$0xe]
      %v436 = vld [vmem:[%s376 + $0x84] sm:$0xe]
      %v437 = vld [vmem:[%s376 + $0x90] sm:$0xe]
      %v438 = vld [vmem:[%s376 + $0x9c] sm:$0xe]
      %v439 = vld [vmem:[%s376 + $0xa8] sm:$0xe]
      %v440 = vld [vmem:[%s376 + $0xb4] sm:$0xe]
      %v473 = vunpack.c.l.b16 %v247
      %v474 = vunpack.c.l.b16 %v248
      %v475 = vunpack.c.l.b16 %v249
      %v476 = vunpack.c.l.b16 %v250
      %v477 = vunpack.c.l.b16 %v251
      %v478 = vunpack.c.l.b16 %v252
      %v479 = vunpack.c.l.b16 %v253
      %v480 = vunpack.c.l.b16 %v254
      %v481 = vunpack.c.l.b16 %v255
      %v482 = vunpack.c.l.b16 %v256
      %v483 = vunpack.c.l.b16 %v257
      %v484 = vunpack.c.l.b16 %v258
      %v485 = vunpack.c.l.b16 %v259
      %v486 = vunpack.c.l.b16 %v260
      %v487 = vunpack.c.l.b16 %v261
      %v488 = vunpack.c.l.b16 %v262
      %v489 = vunpack.c.l.b16 %v263
      %v490 = vunpack.c.l.b16 %v264
      %v491 = vunpack.c.l.b16 %v265
      %v492 = vunpack.c.l.b16 %v266
      %v493 = vunpack.c.l.b16 %v267
      %v494 = vunpack.c.l.b16 %v268
      %v495 = vunpack.c.l.b16 %v269
      %v496 = vunpack.c.l.b16 %v270
      %v497 = vunpack.c.l.b16 %v271
      %v498 = vunpack.c.l.b16 %v272
      %v499 = vunpack.c.l.b16 %v273
      %v500 = vunpack.c.l.b16 %v274
      %v501 = vunpack.c.l.b16 %v275
      %v502 = vunpack.c.l.b16 %v276
      %v503 = vunpack.c.l.b16 %v277
      %v504 = vunpack.c.l.b16 %v278
      %v505 = vpack.c.b16 %v474, %v473
      %v506 = vpack.c.b16 %v476, %v475
      %v507 = vpack.c.b16 %v478, %v477
      %v508 = vpack.c.b16 %v480, %v479
      %v509 = vpack.c.b16 %v482, %v481
      %v510 = vpack.c.b16 %v484, %v483
      %v511 = vpack.c.b16 %v486, %v485
      %v512 = vpack.c.b16 %v488, %v487
      %v513 = vpack.c.b16 %v490, %v489
      %v514 = vpack.c.b16 %v492, %v491
      %v515 = vpack.c.b16 %v494, %v493
      %v516 = vpack.c.b16 %v496, %v495
      %v517 = vpack.c.b16 %v498, %v497
      %v518 = vpack.c.b16 %v500, %v499
      %v519 = vpack.c.b16 %v502, %v501
      %v520 = vpack.c.b16 %v504, %v503
      %v537 = vunpack.c.l.b16 %v279
      %v538 = vunpack.c.l.b16 %v280
      %v539 = vunpack.c.l.b16 %v281
      %v540 = vunpack.c.l.b16 %v282
      %v541 = vunpack.c.l.b16 %v283
      %v542 = vunpack.c.l.b16 %v284
      %v543 = vunpack.c.l.b16 %v285
      %v544 = vunpack.c.l.b16 %v286
      %v545 = vunpack.c.l.b16 %v287
      %v546 = vunpack.c.l.b16 %v288
      %v547 = vunpack.c.l.b16 %v289
      %v548 = vunpack.c.l.b16 %v290
      %v549 = vunpack.c.l.b16 %v291
      %v550 = vunpack.c.l.b16 %v292
      %v551 = vunpack.c.l.b16 %v293
      %v552 = vunpack.c.l.b16 %v294
      %v553 = vpack.c.b16 %v537, %v537
      %v554 = vpack.c.b16 %v538, %v538
      %v555 = vpack.c.b16 %v539, %v539
      %v556 = vpack.c.b16 %v540, %v540
      %v557 = vpack.c.b16 %v541, %v541
      %v558 = vpack.c.b16 %v542, %v542
      %v559 = vpack.c.b16 %v543, %v543
      %v560 = vpack.c.b16 %v544, %v544
      %v561 = vpack.c.b16 %v545, %v545
      %v562 = vpack.c.b16 %v546, %v546
      %v563 = vpack.c.b16 %v547, %v547
      %v564 = vpack.c.b16 %v548, %v548
      %v565 = vpack.c.b16 %v549, %v549
      %v566 = vpack.c.b16 %v550, %v550
      %v567 = vpack.c.b16 %v551, %v551
      %v568 = vpack.c.b16 %v552, %v552
      %vm569 = vsmask.f32 7424
      %v571 = vshrl.u32 %v505, 16
      %v573 = vshll.u32 %v505, 16
      %v575 = vrot.slane %v573, 1
      %v576 = vor.u32 %v571, %v575
      %v578 = vshll.u32 %v553, 16
      %v580 = vrot.slane %v578, 1
      %v581 = vsel %vm569, %v576, %v580
      %v583 = vshrl.u32 %v506, 16
      %v585 = vshll.u32 %v506, 16
      %v587 = vrot.slane %v585, 1
      %v588 = vor.u32 %v583, %v587
      %v590 = vshll.u32 %v554, 16
      %v592 = vrot.slane %v590, 1
      %v593 = vsel %vm569, %v588, %v592
      %v595 = vshrl.u32 %v507, 16
      %v597 = vshll.u32 %v507, 16
      %v599 = vrot.slane %v597, 1
      %v600 = vor.u32 %v595, %v599
      %v602 = vshll.u32 %v555, 16
      %v604 = vrot.slane %v602, 1
      %v605 = vsel %vm569, %v600, %v604
      %v607 = vshrl.u32 %v508, 16
      %v609 = vshll.u32 %v508, 16
      %v611 = vrot.slane %v609, 1
      %v612 = vor.u32 %v607, %v611
      %v614 = vshll.u32 %v556, 16
      %v616 = vrot.slane %v614, 1
      %v617 = vsel %vm569, %v612, %v616
      %v619 = vshrl.u32 %v509, 16
      %v621 = vshll.u32 %v509, 16
      %v623 = vrot.slane %v621, 1
      %v624 = vor.u32 %v619, %v623
      %v626 = vshll.u32 %v557, 16
      %v628 = vrot.slane %v626, 1
      %v629 = vsel %vm569, %v624, %v628
      %v631 = vshrl.u32 %v510, 16
      %v633 = vshll.u32 %v510, 16
      %v635 = vrot.slane %v633, 1
      %v636 = vor.u32 %v631, %v635
      %v638 = vshll.u32 %v558, 16
      %v640 = vrot.slane %v638, 1
      %v641 = vsel %vm569, %v636, %v640
      %v643 = vshrl.u32 %v511, 16
      %v645 = vshll.u32 %v511, 16
      %v647 = vrot.slane %v645, 1
      %v648 = vor.u32 %v643, %v647
      %v650 = vshll.u32 %v559, 16
      %v652 = vrot.slane %v650, 1
      %v653 = vsel %vm569, %v648, %v652
      %v655 = vshrl.u32 %v512, 16
      %v657 = vshll.u32 %v512, 16
      %v659 = vrot.slane %v657, 1
      %v660 = vor.u32 %v655, %v659
      %v662 = vshll.u32 %v560, 16
      %v664 = vrot.slane %v662, 1
      %v665 = vsel %vm569, %v660, %v664
      %v667 = vshrl.u32 %v513, 16
      %v669 = vshll.u32 %v513, 16
      %v671 = vrot.slane %v669, 1
      %v672 = vor.u32 %v667, %v671
      %v674 = vshll.u32 %v561, 16
      %v676 = vrot.slane %v674, 1
      %v677 = vsel %vm569, %v672, %v676
      %v679 = vshrl.u32 %v514, 16
      %v681 = vshll.u32 %v514, 16
      %v683 = vrot.slane %v681, 1
      %v684 = vor.u32 %v679, %v683
      %v686 = vshll.u32 %v562, 16
      %v688 = vrot.slane %v686, 1
      %v689 = vsel %vm569, %v684, %v688
      %v691 = vshrl.u32 %v515, 16
      %v693 = vshll.u32 %v515, 16
      %v695 = vrot.slane %v693, 1
      %v696 = vor.u32 %v691, %v695
      %v698 = vshll.u32 %v563, 16
      %v700 = vrot.slane %v698, 1
      %v701 = vsel %vm569, %v696, %v700
      %v703 = vshrl.u32 %v516, 16
      %v705 = vshll.u32 %v516, 16
      %v707 = vrot.slane %v705, 1
      %v708 = vor.u32 %v703, %v707
      %v710 = vshll.u32 %v564, 16
      %v712 = vrot.slane %v710, 1
      %v713 = vsel %vm569, %v708, %v712
      %v715 = vshrl.u32 %v517, 16
      %v717 = vshll.u32 %v517, 16
      %v719 = vrot.slane %v717, 1
      %v720 = vor.u32 %v715, %v719
      %v722 = vshll.u32 %v565, 16
      %v724 = vrot.slane %v722, 1
      %v725 = vsel %vm569, %v720, %v724
      %v727 = vshrl.u32 %v518, 16
      %v729 = vshll.u32 %v518, 16
      %v731 = vrot.slane %v729, 1
      %v732 = vor.u32 %v727, %v731
      %v734 = vshll.u32 %v566, 16
      %v736 = vrot.slane %v734, 1
      %v737 = vsel %vm569, %v732, %v736
      %v739 = vshrl.u32 %v519, 16
      %v741 = vshll.u32 %v519, 16
      %v743 = vrot.slane %v741, 1
      %v744 = vor.u32 %v739, %v743
      %v746 = vshll.u32 %v567, 16
      %v748 = vrot.slane %v746, 1
      %v749 = vsel %vm569, %v744, %v748
      %v751 = vshrl.u32 %v520, 16
      %v753 = vshll.u32 %v520, 16
      %v755 = vrot.slane %v753, 1
      %v756 = vor.u32 %v751, %v755
      %v758 = vshll.u32 %v568, 16
      %v760 = vrot.slane %v758, 1
      %v761 = vsel %vm569, %v756, %v760
      %762 = vrot.lane.b32.xlu0 %v581, 4
      %v763 = vpop.permute.xlu0 %762
      %764 = vrot.lane.b32.xlu0 %v593, 4
      %v765 = vpop.permute.xlu0 %764
      %766 = vrot.lane.b32.xlu0 %v605, 4
      %v767 = vpop.permute.xlu0 %766
      %768 = vrot.lane.b32.xlu0 %v617, 4
      %v769 = vpop.permute.xlu0 %768
      %770 = vrot.lane.b32.xlu0 %v629, 4
      %v771 = vpop.permute.xlu0 %770
      %772 = vrot.lane.b32.xlu0 %v641, 4
      %v773 = vpop.permute.xlu0 %772
      %774 = vrot.lane.b32.xlu0 %v653, 4
      %v775 = vpop.permute.xlu0 %774
      %776 = vrot.lane.b32.xlu0 %v665, 4
      %v777 = vpop.permute.xlu0 %776
      %778 = vrot.lane.b32.xlu0 %v677, 4
      %v779 = vpop.permute.xlu0 %778
      %780 = vrot.lane.b32.xlu0 %v689, 4
      %v781 = vpop.permute.xlu0 %780
      %782 = vrot.lane.b32.xlu0 %v701, 4
      %v783 = vpop.permute.xlu0 %782
      %784 = vrot.lane.b32.xlu0 %v713, 4
      %v785 = vpop.permute.xlu0 %784
      %786 = vrot.lane.b32.xlu0 %v725, 4
      %v787 = vpop.permute.xlu0 %786
      %788 = vrot.lane.b32.xlu0 %v737, 4
      %v789 = vpop.permute.xlu0 %788
      %790 = vrot.lane.b32.xlu0 %v749, 4
      %v791 = vpop.permute.xlu0 %790
      %792 = vrot.lane.b32.xlu0 %v761, 4
      %v793 = vpop.permute.xlu0 %792
      %v810 = vunpack.c.l.b16 %v295
      %v811 = vunpack.c.l.b16 %v296
      %v812 = vunpack.c.l.b16 %v297
      %v813 = vunpack.c.l.b16 %v298
      %v814 = vunpack.c.l.b16 %v299
      %v815 = vunpack.c.l.b16 %v300
      %v816 = vunpack.c.l.b16 %v301
      %v817 = vunpack.c.l.b16 %v302
      %v818 = vunpack.c.l.b16 %v303
      %v819 = vunpack.c.l.b16 %v304
      %v820 = vunpack.c.l.b16 %v305
      %v821 = vunpack.c.l.b16 %v306
      %v822 = vunpack.c.l.b16 %v307
      %v823 = vunpack.c.l.b16 %v308
      %v824 = vunpack.c.l.b16 %v309
      %v825 = vunpack.c.l.b16 %v310
      %v826 = vpack.c.b16 %v474, %v810
      %v827 = vpack.c.b16 %v476, %v811
      %v828 = vpack.c.b16 %v478, %v812
      %v829 = vpack.c.b16 %v480, %v813
      %v830 = vpack.c.b16 %v482, %v814
      %v831 = vpack.c.b16 %v484, %v815
      %v832 = vpack.c.b16 %v486, %v816
      %v833 = vpack.c.b16 %v488, %v817
      %v834 = vpack.c.b16 %v490, %v818
      %v835 = vpack.c.b16 %v492, %v819
      %v836 = vpack.c.b16 %v494, %v820
      %v837 = vpack.c.b16 %v496, %v821
      %v838 = vpack.c.b16 %v498, %v822
      %v839 = vpack.c.b16 %v500, %v823
      %v840 = vpack.c.b16 %v502, %v824
      %v841 = vpack.c.b16 %v504, %v825
      %vm842 = vcmask 1046528
      %v843 = vrot.slane %v826, 1
      %v844 = vrot.slane %v553, 1
      %v845 = vsel %vm842, %v843, %v844
      %v846 = vrot.slane %v827, 1
      %v847 = vrot.slane %v554, 1
      %v848 = vsel %vm842, %v846, %v847
      %v849 = vrot.slane %v828, 1
      %v850 = vrot.slane %v555, 1
      %v851 = vsel %vm842, %v849, %v850
      %v852 = vrot.slane %v829, 1
      %v853 = vrot.slane %v556, 1
      %v854 = vsel %vm842, %v852, %v853
      %v855 = vrot.slane %v830, 1
      %v856 = vrot.slane %v557, 1
      %v857 = vsel %vm842, %v855, %v856
      %v858 = vrot.slane %v831, 1
      %v859 = vrot.slane %v558, 1
      %v860 = vsel %vm842, %v858, %v859
      %v861 = vrot.slane %v832, 1
      %v862 = vrot.slane %v559, 1
      %v863 = vsel %vm842, %v861, %v862
      %v864 = vrot.slane %v833, 1
      %v865 = vrot.slane %v560, 1
      %v866 = vsel %vm842, %v864, %v865
      %v867 = vrot.slane %v834, 1
      %v868 = vrot.slane %v561, 1
      %v869 = vsel %vm842, %v867, %v868
      %v870 = vrot.slane %v835, 1
      %v871 = vrot.slane %v562, 1
      %v872 = vsel %vm842, %v870, %v871
      %v873 = vrot.slane %v836, 1
      %v874 = vrot.slane %v563, 1
      %v875 = vsel %vm842, %v873, %v874
      %v876 = vrot.slane %v837, 1
      %v877 = vrot.slane %v564, 1
      %v878 = vsel %vm842, %v876, %v877
      %v879 = vrot.slane %v838, 1
      %v880 = vrot.slane %v565, 1
      %v881 = vsel %vm842, %v879, %v880
      %v882 = vrot.slane %v839, 1
      %v883 = vrot.slane %v566, 1
      %v884 = vsel %vm842, %v882, %v883
      %v885 = vrot.slane %v840, 1
      %v886 = vrot.slane %v567, 1
      %v887 = vsel %vm842, %v885, %v886
      %v888 = vrot.slane %v841, 1
      %v889 = vrot.slane %v568, 1
      %v890 = vsel %vm842, %v888, %v889
      %891 = vrot.lane.b32.xlu0 %v845, 8
      %v892 = vpop.permute.xlu0 %891
      %893 = vrot.lane.b32.xlu0 %v848, 8
      %v894 = vpop.permute.xlu0 %893
      %895 = vrot.lane.b32.xlu0 %v851, 8
      %v896 = vpop.permute.xlu0 %895
      %897 = vrot.lane.b32.xlu0 %v854, 8
      %v898 = vpop.permute.xlu0 %897
      %899 = vrot.lane.b32.xlu0 %v857, 8
      %v900 = vpop.permute.xlu0 %899
      %901 = vrot.lane.b32.xlu0 %v860, 8
      %v902 = vpop.permute.xlu0 %901
      %903 = vrot.lane.b32.xlu0 %v863, 8
      %v904 = vpop.permute.xlu0 %903
      %905 = vrot.lane.b32.xlu0 %v866, 8
      %v906 = vpop.permute.xlu0 %905
      %907 = vrot.lane.b32.xlu0 %v869, 8
      %v908 = vpop.permute.xlu0 %907
      %909 = vrot.lane.b32.xlu0 %v872, 8
      %v910 = vpop.permute.xlu0 %909
      %911 = vrot.lane.b32.xlu0 %v875, 8
      %v912 = vpop.permute.xlu0 %911
      %913 = vrot.lane.b32.xlu0 %v878, 8
      %v914 = vpop.permute.xlu0 %913
      %915 = vrot.lane.b32.xlu0 %v881, 8
      %v916 = vpop.permute.xlu0 %915
      %917 = vrot.lane.b32.xlu0 %v884, 8
      %v918 = vpop.permute.xlu0 %917
      %919 = vrot.lane.b32.xlu0 %v887, 8
      %v920 = vpop.permute.xlu0 %919
      %921 = vrot.lane.b32.xlu0 %v890, 8
      %v922 = vpop.permute.xlu0 %921
      %v955 = vunpack.c.l.b16 %v312
      %v956 = vunpack.c.l.b16 %v313
      %v957 = vunpack.c.l.b16 %v314
      %v958 = vunpack.c.l.b16 %v315
      %v959 = vunpack.c.l.b16 %v316
      %v960 = vunpack.c.l.b16 %v317
      %v961 = vunpack.c.l.b16 %v318
      %v962 = vunpack.c.l.b16 %v319
      %v963 = vunpack.c.l.b16 %v320
      %v964 = vunpack.c.l.b16 %v321
      %v965 = vunpack.c.l.b16 %v322
      %v966 = vunpack.c.l.b16 %v323
      %v967 = vunpack.c.l.b16 %v324
      %v968 = vunpack.c.l.b16 %v325
      %v969 = vunpack.c.l.b16 %v326
      %v970 = vunpack.c.l.b16 %v327
      %v971 = vunpack.c.l.b16 %v328
      %v972 = vunpack.c.l.b16 %v329
      %v973 = vunpack.c.l.b16 %v330
      %v974 = vunpack.c.l.b16 %v331
      %v975 = vunpack.c.l.b16 %v332
      %v976 = vunpack.c.l.b16 %v333
      %v977 = vunpack.c.l.b16 %v334
      %v978 = vunpack.c.l.b16 %v335
      %v979 = vunpack.c.l.b16 %v336
      %v980 = vunpack.c.l.b16 %v337
      %v981 = vunpack.c.l.b16 %v338
      %v982 = vunpack.c.l.b16 %v339
      %v983 = vunpack.c.l.b16 %v340
      %v984 = vunpack.c.l.b16 %v341
      %v985 = vunpack.c.l.b16 %v342
      %v986 = vunpack.c.l.b16 %v343
      %v987 = vpack.c.b16 %v956, %v955
      %v988 = vpack.c.b16 %v958, %v957
      %v989 = vpack.c.b16 %v960, %v959
      %v990 = vpack.c.b16 %v962, %v961
      %v991 = vpack.c.b16 %v964, %v963
      %v992 = vpack.c.b16 %v966, %v965
      %v993 = vpack.c.b16 %v968, %v967
      %v994 = vpack.c.b16 %v970, %v969
      %v995 = vpack.c.b16 %v972, %v971
      %v996 = vpack.c.b16 %v974, %v973
      %v997 = vpack.c.b16 %v976, %v975
      %v998 = vpack.c.b16 %v978, %v977
      %v999 = vpack.c.b16 %v980, %v979
      %v1000 = vpack.c.b16 %v982, %v981
      %v1001 = vpack.c.b16 %v984, %v983
      %v1002 = vpack.c.b16 %v986, %v985
      %1003 = vrot.lane.b32.xlu0 %v987, 12
      %v1004 = vpop.permute.xlu0 %1003
      %1005 = vrot.lane.b32.xlu0 %v988, 12
      %v1006 = vpop.permute.xlu0 %1005
      %1007 = vrot.lane.b32.xlu0 %v989, 12
      %v1008 = vpop.permute.xlu0 %1007
      %1009 = vrot.lane.b32.xlu0 %v990, 12
      %v1010 = vpop.permute.xlu0 %1009
      %1011 = vrot.lane.b32.xlu0 %v991, 12
      %v1012 = vpop.permute.xlu0 %1011
      %1013 = vrot.lane.b32.xlu0 %v992, 12
      %v1014 = vpop.permute.xlu0 %1013
      %1015 = vrot.lane.b32.xlu0 %v993, 12
      %v1016 = vpop.permute.xlu0 %1015
      %1017 = vrot.lane.b32.xlu0 %v994, 12
      %v1018 = vpop.permute.xlu0 %1017
      %1019 = vrot.lane.b32.xlu0 %v995, 12
      %v1020 = vpop.permute.xlu0 %1019
      %1021 = vrot.lane.b32.xlu0 %v996, 12
      %v1022 = vpop.permute.xlu0 %1021
      %1023 = vrot.lane.b32.xlu0 %v997, 12
      %v1024 = vpop.permute.xlu0 %1023
      %1025 = vrot.lane.b32.xlu0 %v998, 12
      %v1026 = vpop.permute.xlu0 %1025
      %1027 = vrot.lane.b32.xlu0 %v999, 12
      %v1028 = vpop.permute.xlu0 %1027
      %1029 = vrot.lane.b32.xlu0 %v1000, 12
      %v1030 = vpop.permute.xlu0 %1029
      %1031 = vrot.lane.b32.xlu0 %v1001, 12
      %v1032 = vpop.permute.xlu0 %1031
      %1033 = vrot.lane.b32.xlu0 %v1002, 12
      %v1034 = vpop.permute.xlu0 %1033
      %v1051 = vunpack.c.l.b16 %v344
      %v1052 = vunpack.c.l.b16 %v345
      %v1053 = vunpack.c.l.b16 %v346
      %v1054 = vunpack.c.l.b16 %v347
      %v1055 = vunpack.c.l.b16 %v348
      %v1056 = vunpack.c.l.b16 %v349
      %v1057 = vunpack.c.l.b16 %v350
      %v1058 = vunpack.c.l.b16 %v351
      %v1059 = vunpack.c.l.b16 %v352
      %v1060 = vunpack.c.l.b16 %v353
      %v1061 = vunpack.c.l.b16 %v354
      %v1062 = vunpack.c.l.b16 %v355
      %v1063 = vunpack.c.l.b16 %v356
      %v1064 = vunpack.c.l.b16 %v357
      %v1065 = vunpack.c.l.b16 %v358
      %v1066 = vunpack.c.l.b16 %v359
      %v1067 = vpack.c.b16 %v1051, %v1051
      %v1068 = vpack.c.b16 %v1052, %v1052
      %v1069 = vpack.c.b16 %v1053, %v1053
      %v1070 = vpack.c.b16 %v1054, %v1054
      %v1071 = vpack.c.b16 %v1055, %v1055
      %v1072 = vpack.c.b16 %v1056, %v1056
      %v1073 = vpack.c.b16 %v1057, %v1057
      %v1074 = vpack.c.b16 %v1058, %v1058
      %v1075 = vpack.c.b16 %v1059, %v1059
      %v1076 = vpack.c.b16 %v1060, %v1060
      %v1077 = vpack.c.b16 %v1061, %v1061
      %v1078 = vpack.c.b16 %v1062, %v1062
      %v1079 = vpack.c.b16 %v1063, %v1063
      %v1080 = vpack.c.b16 %v1064, %v1064
      %v1081 = vpack.c.b16 %v1065, %v1065
      %v1082 = vpack.c.b16 %v1066, %v1066
      %v1084 = vshrl.u32 %v987, 16
      %v1086 = vshll.u32 %v987, 16
      %v1088 = vrot.slane %v1086, 1
      %v1089 = vor.u32 %v1084, %v1088
      %v1091 = vshll.u32 %v1067, 16
      %v1093 = vrot.slane %v1091, 1
      %v1094 = vsel %vm569, %v1089, %v1093
      %v1096 = vshrl.u32 %v988, 16
      %v1098 = vshll.u32 %v988, 16
      %v1100 = vrot.slane %v1098, 1
      %v1101 = vor.u32 %v1096, %v1100
      %v1103 = vshll.u32 %v1068, 16
      %v1105 = vrot.slane %v1103, 1
      %v1106 = vsel %vm569, %v1101, %v1105
      %v1108 = vshrl.u32 %v989, 16
      %v1110 = vshll.u32 %v989, 16
      %v1112 = vrot.slane %v1110, 1
      %v1113 = vor.u32 %v1108, %v1112
      %v1115 = vshll.u32 %v1069, 16
      %v1117 = vrot.slane %v1115, 1
      %v1118 = vsel %vm569, %v1113, %v1117
      %v1120 = vshrl.u32 %v990, 16
      %v1122 = vshll.u32 %v990, 16
      %v1124 = vrot.slane %v1122, 1
      %v1125 = vor.u32 %v1120, %v1124
      %v1127 = vshll.u32 %v1070, 16
      %v1129 = vrot.slane %v1127, 1
      %v1130 = vsel %vm569, %v1125, %v1129
      %v1132 = vshrl.u32 %v991, 16
      %v1134 = vshll.u32 %v991, 16
      %v1136 = vrot.slane %v1134, 1
      %v1137 = vor.u32 %v1132, %v1136
      %v1139 = vshll.u32 %v1071, 16
      %v1141 = vrot.slane %v1139, 1
      %v1142 = vsel %vm569, %v1137, %v1141
      %v1144 = vshrl.u32 %v992, 16
      %v1146 = vshll.u32 %v992, 16
      %v1148 = vrot.slane %v1146, 1
      %v1149 = vor.u32 %v1144, %v1148
      %v1151 = vshll.u32 %v1072, 16
      %v1153 = vrot.slane %v1151, 1
      %v1154 = vsel %vm569, %v1149, %v1153
      %v1156 = vshrl.u32 %v993, 16
      %v1158 = vshll.u32 %v993, 16
      %v1160 = vrot.slane %v1158, 1
      %v1161 = vor.u32 %v1156, %v1160
      %v1163 = vshll.u32 %v1073, 16
      %v1165 = vrot.slane %v1163, 1
      %v1166 = vsel %vm569, %v1161, %v1165
      %v1168 = vshrl.u32 %v994, 16
      %v1170 = vshll.u32 %v994, 16
      %v1172 = vrot.slane %v1170, 1
      %v1173 = vor.u32 %v1168, %v1172
      %v1175 = vshll.u32 %v1074, 16
      %v1177 = vrot.slane %v1175, 1
      %v1178 = vsel %vm569, %v1173, %v1177
      %v1180 = vshrl.u32 %v995, 16
      %v1182 = vshll.u32 %v995, 16
      %v1184 = vrot.slane %v1182, 1
      %v1185 = vor.u32 %v1180, %v1184
      %v1187 = vshll.u32 %v1075, 16
      %v1189 = vrot.slane %v1187, 1
      %v1190 = vsel %vm569, %v1185, %v1189
      %v1192 = vshrl.u32 %v996, 16
      %v1194 = vshll.u32 %v996, 16
      %v1196 = vrot.slane %v1194, 1
      %v1197 = vor.u32 %v1192, %v1196
      %v1199 = vshll.u32 %v1076, 16
      %v1201 = vrot.slane %v1199, 1
      %v1202 = vsel %vm569, %v1197, %v1201
      %v1204 = vshrl.u32 %v997, 16
      %v1206 = vshll.u32 %v997, 16
      %v1208 = vrot.slane %v1206, 1
      %v1209 = vor.u32 %v1204, %v1208
      %v1211 = vshll.u32 %v1077, 16
      %v1213 = vrot.slane %v1211, 1
      %v1214 = vsel %vm569, %v1209, %v1213
      %v1216 = vshrl.u32 %v998, 16
      %v1218 = vshll.u32 %v998, 16
      %v1220 = vrot.slane %v1218, 1
      %v1221 = vor.u32 %v1216, %v1220
      %v1223 = vshll.u32 %v1078, 16
      %v1225 = vrot.slane %v1223, 1
      %v1226 = vsel %vm569, %v1221, %v1225
      %v1228 = vshrl.u32 %v999, 16
      %v1230 = vshll.u32 %v999, 16
      %v1232 = vrot.slane %v1230, 1
      %v1233 = vor.u32 %v1228, %v1232
      %v1235 = vshll.u32 %v1079, 16
      %v1237 = vrot.slane %v1235, 1
      %v1238 = vsel %vm569, %v1233, %v1237
      %v1240 = vshrl.u32 %v1000, 16
      %v1242 = vshll.u32 %v1000, 16
      %v1244 = vrot.slane %v1242, 1
      %v1245 = vor.u32 %v1240, %v1244
      %v1247 = vshll.u32 %v1080, 16
      %v1249 = vrot.slane %v1247, 1
      %v1250 = vsel %vm569, %v1245, %v1249
      %v1252 = vshrl.u32 %v1001, 16
      %v1254 = vshll.u32 %v1001, 16
      %v1256 = vrot.slane %v1254, 1
      %v1257 = vor.u32 %v1252, %v1256
      %v1259 = vshll.u32 %v1081, 16
      %v1261 = vrot.slane %v1259, 1
      %v1262 = vsel %vm569, %v1257, %v1261
      %v1264 = vshrl.u32 %v1002, 16
      %v1266 = vshll.u32 %v1002, 16
      %v1268 = vrot.slane %v1266, 1
      %v1269 = vor.u32 %v1264, %v1268
      %v1271 = vshll.u32 %v1082, 16
      %v1273 = vrot.slane %v1271, 1
      %v1274 = vsel %vm569, %v1269, %v1273
      %1275 = vrot.lane.b32.xlu0 %v1094, 16
      %v1276 = vpop.permute.xlu0 %1275
      %1277 = vrot.lane.b32.xlu0 %v1106, 16
      %v1278 = vpop.permute.xlu0 %1277
      %1279 = vrot.lane.b32.xlu0 %v1118, 16
      %v1280 = vpop.permute.xlu0 %1279
      %1281 = vrot.lane.b32.xlu0 %v1130, 16
      %v1282 = vpop.permute.xlu0 %1281
      %1283 = vrot.lane.b32.xlu0 %v1142, 16
      %v1284 = vpop.permute.xlu0 %1283
      %1285 = vrot.lane.b32.xlu0 %v1154, 16
      %v1286 = vpop.permute.xlu0 %1285
      %1287 = vrot.lane.b32.xlu0 %v1166, 16
      %v1288 = vpop.permute.xlu0 %1287
      %1289 = vrot.lane.b32.xlu0 %v1178, 16
      %v1290 = vpop.permute.xlu0 %1289
      %1291 = vrot.lane.b32.xlu0 %v1190, 16
      %v1292 = vpop.permute.xlu0 %1291
      %1293 = vrot.lane.b32.xlu0 %v1202, 16
      %v1294 = vpop.permute.xlu0 %1293
      %1295 = vrot.lane.b32.xlu0 %v1214, 16
      %v1296 = vpop.permute.xlu0 %1295
      %1297 = vrot.lane.b32.xlu0 %v1226, 16
      %v1298 = vpop.permute.xlu0 %1297
      %1299 = vrot.lane.b32.xlu0 %v1238, 16
      %v1300 = vpop.permute.xlu0 %1299
      %1301 = vrot.lane.b32.xlu0 %v1250, 16
      %v1302 = vpop.permute.xlu0 %1301
      %1303 = vrot.lane.b32.xlu0 %v1262, 16
      %v1304 = vpop.permute.xlu0 %1303
      %1305 = vrot.lane.b32.xlu0 %v1274, 16
      %v1306 = vpop.permute.xlu0 %1305
      %v1323 = vunpack.c.l.b16 %v360
      %v1324 = vunpack.c.l.b16 %v361
      %v1325 = vunpack.c.l.b16 %v362
      %v1326 = vunpack.c.l.b16 %v363
      %v1327 = vunpack.c.l.b16 %v364
      %v1328 = vunpack.c.l.b16 %v365
      %v1329 = vunpack.c.l.b16 %v366
      %v1330 = vunpack.c.l.b16 %v367
      %v1331 = vunpack.c.l.b16 %v368
      %v1332 = vunpack.c.l.b16 %v369
      %v1333 = vunpack.c.l.b16 %v370
      %v1334 = vunpack.c.l.b16 %v371
      %v1335 = vunpack.c.l.b16 %v372
      %v1336 = vunpack.c.l.b16 %v373
      %v1337 = vunpack.c.l.b16 %v374
      %v1338 = vunpack.c.l.b16 %v375
      %v1339 = vpack.c.b16 %v956, %v1323
      %v1340 = vpack.c.b16 %v958, %v1324
      %v1341 = vpack.c.b16 %v960, %v1325
      %v1342 = vpack.c.b16 %v962, %v1326
      %v1343 = vpack.c.b16 %v964, %v1327
      %v1344 = vpack.c.b16 %v966, %v1328
      %v1345 = vpack.c.b16 %v968, %v1329
      %v1346 = vpack.c.b16 %v970, %v1330
      %v1347 = vpack.c.b16 %v972, %v1331
      %v1348 = vpack.c.b16 %v974, %v1332
      %v1349 = vpack.c.b16 %v976, %v1333
      %v1350 = vpack.c.b16 %v978, %v1334
      %v1351 = vpack.c.b16 %v980, %v1335
      %v1352 = vpack.c.b16 %v982, %v1336
      %v1353 = vpack.c.b16 %v984, %v1337
      %v1354 = vpack.c.b16 %v986, %v1338
      %v1355 = vrot.slane %v1339, 1
      %v1356 = vrot.slane %v1067, 1
      %v1357 = vsel %vm842, %v1355, %v1356
      %v1358 = vrot.slane %v1340, 1
      %v1359 = vrot.slane %v1068, 1
      %v1360 = vsel %vm842, %v1358, %v1359
      %v1361 = vrot.slane %v1341, 1
      %v1362 = vrot.slane %v1069, 1
      %v1363 = vsel %vm842, %v1361, %v1362
      %v1364 = vrot.slane %v1342, 1
      %v1365 = vrot.slane %v1070, 1
      %v1366 = vsel %vm842, %v1364, %v1365
      %v1367 = vrot.slane %v1343, 1
      %v1368 = vrot.slane %v1071, 1
      %v1369 = vsel %vm842, %v1367, %v1368
      %v1370 = vrot.slane %v1344, 1
      %v1371 = vrot.slane %v1072, 1
      %v1372 = vsel %vm842, %v1370, %v1371
      %v1373 = vrot.slane %v1345, 1
      %v1374 = vrot.slane %v1073, 1
      %v1375 = vsel %vm842, %v1373, %v1374
      %v1376 = vrot.slane %v1346, 1
      %v1377 = vrot.slane %v1074, 1
      %v1378 = vsel %vm842, %v1376, %v1377
      %v1379 = vrot.slane %v1347, 1
      %v1380 = vrot.slane %v1075, 1
      %v1381 = vsel %vm842, %v1379, %v1380
      %v1382 = vrot.slane %v1348, 1
      %v1383 = vrot.slane %v1076, 1
      %v1384 = vsel %vm842, %v1382, %v1383
      %v1385 = vrot.slane %v1349, 1
      %v1386 = vrot.slane %v1077, 1
      %v1387 = vsel %vm842, %v1385, %v1386
      %v1388 = vrot.slane %v1350, 1
      %v1389 = vrot.slane %v1078, 1
      %v1390 = vsel %vm842, %v1388, %v1389
      %v1391 = vrot.slane %v1351, 1
      %v1392 = vrot.slane %v1079, 1
      %v1393 = vsel %vm842, %v1391, %v1392
      %v1394 = vrot.slane %v1352, 1
      %v1395 = vrot.slane %v1080, 1
      %v1396 = vsel %vm842, %v1394, %v1395
      %v1397 = vrot.slane %v1353, 1
      %v1398 = vrot.slane %v1081, 1
      %v1399 = vsel %vm842, %v1397, %v1398
      %v1400 = vrot.slane %v1354, 1
      %v1401 = vrot.slane %v1082, 1
      %v1402 = vsel %vm842, %v1400, %v1401
      %1403 = vrot.lane.b32.xlu0 %v1357, 20
      %v1404 = vpop.permute.xlu0 %1403
      %1405 = vrot.lane.b32.xlu0 %v1360, 20
      %v1406 = vpop.permute.xlu0 %1405
      %1407 = vrot.lane.b32.xlu0 %v1363, 20
      %v1408 = vpop.permute.xlu0 %1407
      %1409 = vrot.lane.b32.xlu0 %v1366, 20
      %v1410 = vpop.permute.xlu0 %1409
      %1411 = vrot.lane.b32.xlu0 %v1369, 20
      %v1412 = vpop.permute.xlu0 %1411
      %1413 = vrot.lane.b32.xlu0 %v1372, 20
      %v1414 = vpop.permute.xlu0 %1413
      %1415 = vrot.lane.b32.xlu0 %v1375, 20
      %v1416 = vpop.permute.xlu0 %1415
      %1417 = vrot.lane.b32.xlu0 %v1378, 20
      %v1418 = vpop.permute.xlu0 %1417
      %1419 = vrot.lane.b32.xlu0 %v1381, 20
      %v1420 = vpop.permute.xlu0 %1419
      %1421 = vrot.lane.b32.xlu0 %v1384, 20
      %v1422 = vpop.permute.xlu0 %1421
      %1423 = vrot.lane.b32.xlu0 %v1387, 20
      %v1424 = vpop.permute.xlu0 %1423
      %1425 = vrot.lane.b32.xlu0 %v1390, 20
      %v1426 = vpop.permute.xlu0 %1425
      %1427 = vrot.lane.b32.xlu0 %v1393, 20
      %v1428 = vpop.permute.xlu0 %1427
      %1429 = vrot.lane.b32.xlu0 %v1396, 20
      %v1430 = vpop.permute.xlu0 %1429
      %1431 = vrot.lane.b32.xlu0 %v1399, 20
      %v1432 = vpop.permute.xlu0 %1431
      %1433 = vrot.lane.b32.xlu0 %v1402, 20
      %v1434 = vpop.permute.xlu0 %1433
      %v1467 = vunpack.c.l.b16 %v377
      %v1468 = vunpack.c.l.b16 %v378
      %v1469 = vunpack.c.l.b16 %v379
      %v1470 = vunpack.c.l.b16 %v380
      %v1471 = vunpack.c.l.b16 %v381
      %v1472 = vunpack.c.l.b16 %v382
      %v1473 = vunpack.c.l.b16 %v383
      %v1474 = vunpack.c.l.b16 %v384
      %v1475 = vunpack.c.l.b16 %v385
      %v1476 = vunpack.c.l.b16 %v386
      %v1477 = vunpack.c.l.b16 %v387
      %v1478 = vunpack.c.l.b16 %v388
      %v1479 = vunpack.c.l.b16 %v389
      %v1480 = vunpack.c.l.b16 %v390
      %v1481 = vunpack.c.l.b16 %v391
      %v1482 = vunpack.c.l.b16 %v392
      %v1483 = vunpack.c.l.b16 %v393
      %v1484 = vunpack.c.l.b16 %v394
      %v1485 = vunpack.c.l.b16 %v395
      %v1486 = vunpack.c.l.b16 %v396
      %v1487 = vunpack.c.l.b16 %v397
      %v1488 = vunpack.c.l.b16 %v398
      %v1489 = vunpack.c.l.b16 %v399
      %v1490 = vunpack.c.l.b16 %v400
      %v1491 = vunpack.c.l.b16 %v401
      %v1492 = vunpack.c.l.b16 %v402
      %v1493 = vunpack.c.l.b16 %v403
      %v1494 = vunpack.c.l.b16 %v404
      %v1495 = vunpack.c.l.b16 %v405
      %v1496 = vunpack.c.l.b16 %v406
      %v1497 = vunpack.c.l.b16 %v407
      %v1498 = vunpack.c.l.b16 %v408
      %v1499 = vpack.c.b16 %v1468, %v1467
      %v1500 = vpack.c.b16 %v1470, %v1469
      %v1501 = vpack.c.b16 %v1472, %v1471
      %v1502 = vpack.c.b16 %v1474, %v1473
      %v1503 = vpack.c.b16 %v1476, %v1475
      %v1504 = vpack.c.b16 %v1478, %v1477
      %v1505 = vpack.c.b16 %v1480, %v1479
      %v1506 = vpack.c.b16 %v1482, %v1481
      %v1507 = vpack.c.b16 %v1484, %v1483
      %v1508 = vpack.c.b16 %v1486, %v1485
      %v1509 = vpack.c.b16 %v1488, %v1487
      %v1510 = vpack.c.b16 %v1490, %v1489
      %v1511 = vpack.c.b16 %v1492, %v1491
      %v1512 = vpack.c.b16 %v1494, %v1493
      %v1513 = vpack.c.b16 %v1496, %v1495
      %v1514 = vpack.c.b16 %v1498, %v1497
      %1515 = vrot.lane.b32.xlu0 %v1499, 24
      %v1516 = vpop.permute.xlu0 %1515
      %1517 = vrot.lane.b32.xlu0 %v1500, 24
      %v1518 = vpop.permute.xlu0 %1517
      %1519 = vrot.lane.b32.xlu0 %v1501, 24
      %v1520 = vpop.permute.xlu0 %1519
      %1521 = vrot.lane.b32.xlu0 %v1502, 24
      %v1522 = vpop.permute.xlu0 %1521
      %1523 = vrot.lane.b32.xlu0 %v1503, 24
      %v1524 = vpop.permute.xlu0 %1523
      %1525 = vrot.lane.b32.xlu0 %v1504, 24
      %v1526 = vpop.permute.xlu0 %1525
      %1527 = vrot.lane.b32.xlu0 %v1505, 24
      %v1528 = vpop.permute.xlu0 %1527
      %1529 = vrot.lane.b32.xlu0 %v1506, 24
      %v1530 = vpop.permute.xlu0 %1529
      %1531 = vrot.lane.b32.xlu0 %v1507, 24
      %v1532 = vpop.permute.xlu0 %1531
      %1533 = vrot.lane.b32.xlu0 %v1508, 24
      %v1534 = vpop.permute.xlu0 %1533
      %1535 = vrot.lane.b32.xlu0 %v1509, 24
      %v1536 = vpop.permute.xlu0 %1535
      %1537 = vrot.lane.b32.xlu0 %v1510, 24
      %v1538 = vpop.permute.xlu0 %1537
      %1539 = vrot.lane.b32.xlu0 %v1511, 24
      %v1540 = vpop.permute.xlu0 %1539
      %1541 = vrot.lane.b32.xlu0 %v1512, 24
      %v1542 = vpop.permute.xlu0 %1541
      %1543 = vrot.lane.b32.xlu0 %v1513, 24
      %v1544 = vpop.permute.xlu0 %1543
      %1545 = vrot.lane.b32.xlu0 %v1514, 24
      %v1546 = vpop.permute.xlu0 %1545
      %v1563 = vunpack.c.l.b16 %v409
      %v1564 = vunpack.c.l.b16 %v410
      %v1565 = vunpack.c.l.b16 %v411
      %v1566 = vunpack.c.l.b16 %v412
      %v1567 = vunpack.c.l.b16 %v413
      %v1568 = vunpack.c.l.b16 %v414
      %v1569 = vunpack.c.l.b16 %v415
      %v1570 = vunpack.c.l.b16 %v416
      %v1571 = vunpack.c.l.b16 %v417
      %v1572 = vunpack.c.l.b16 %v418
      %v1573 = vunpack.c.l.b16 %v419
      %v1574 = vunpack.c.l.b16 %v420
      %v1575 = vunpack.c.l.b16 %v421
      %v1576 = vunpack.c.l.b16 %v422
      %v1577 = vunpack.c.l.b16 %v423
      %v1578 = vunpack.c.l.b16 %v424
      %v1579 = vpack.c.b16 %v1563, %v1563
      %v1580 = vpack.c.b16 %v1564, %v1564
      %v1581 = vpack.c.b16 %v1565, %v1565
      %v1582 = vpack.c.b16 %v1566, %v1566
      %v1583 = vpack.c.b16 %v1567, %v1567
      %v1584 = vpack.c.b16 %v1568, %v1568
      %v1585 = vpack.c.b16 %v1569, %v1569
      %v1586 = vpack.c.b16 %v1570, %v1570
      %v1587 = vpack.c.b16 %v1571, %v1571
      %v1588 = vpack.c.b16 %v1572, %v1572
      %v1589 = vpack.c.b16 %v1573, %v1573
      %v1590 = vpack.c.b16 %v1574, %v1574
      %v1591 = vpack.c.b16 %v1575, %v1575
      %v1592 = vpack.c.b16 %v1576, %v1576
      %v1593 = vpack.c.b16 %v1577, %v1577
      %v1594 = vpack.c.b16 %v1578, %v1578
      %v1596 = vshrl.u32 %v1499, 16
      %v1598 = vshll.u32 %v1499, 16
      %v1600 = vrot.slane %v1598, 1
      %v1601 = vor.u32 %v1596, %v1600
      %v1603 = vshll.u32 %v1579, 16
      %v1605 = vrot.slane %v1603, 1
      %v1606 = vsel %vm569, %v1601, %v1605
      %v1608 = vshrl.u32 %v1500, 16
      %v1610 = vshll.u32 %v1500, 16
      %v1612 = vrot.slane %v1610, 1
      %v1613 = vor.u32 %v1608, %v1612
      %v1615 = vshll.u32 %v1580, 16
      %v1617 = vrot.slane %v1615, 1
      %v1618 = vsel %vm569, %v1613, %v1617
      %v1620 = vshrl.u32 %v1501, 16
      %v1622 = vshll.u32 %v1501, 16
      %v1624 = vrot.slane %v1622, 1
      %v1625 = vor.u32 %v1620, %v1624
      %v1627 = vshll.u32 %v1581, 16
      %v1629 = vrot.slane %v1627, 1
      %v1630 = vsel %vm569, %v1625, %v1629
      %v1632 = vshrl.u32 %v1502, 16
      %v1634 = vshll.u32 %v1502, 16
      %v1636 = vrot.slane %v1634, 1
      %v1637 = vor.u32 %v1632, %v1636
      %v1639 = vshll.u32 %v1582, 16
      %v1641 = vrot.slane %v1639, 1
      %v1642 = vsel %vm569, %v1637, %v1641
      %v1644 = vshrl.u32 %v1503, 16
      %v1646 = vshll.u32 %v1503, 16
      %v1648 = vrot.slane %v1646, 1
      %v1649 = vor.u32 %v1644, %v1648
      %v1651 = vshll.u32 %v1583, 16
      %v1653 = vrot.slane %v1651, 1
      %v1654 = vsel %vm569, %v1649, %v1653
      %v1656 = vshrl.u32 %v1504, 16
      %v1658 = vshll.u32 %v1504, 16
      %v1660 = vrot.slane %v1658, 1
      %v1661 = vor.u32 %v1656, %v1660
      %v1663 = vshll.u32 %v1584, 16
      %v1665 = vrot.slane %v1663, 1
      %v1666 = vsel %vm569, %v1661, %v1665
      %v1668 = vshrl.u32 %v1505, 16
      %v1670 = vshll.u32 %v1505, 16
      %v1672 = vrot.slane %v1670, 1
      %v1673 = vor.u32 %v1668, %v1672
      %v1675 = vshll.u32 %v1585, 16
      %v1677 = vrot.slane %v1675, 1
      %v1678 = vsel %vm569, %v1673, %v1677
      %v1680 = vshrl.u32 %v1506, 16
      %v1682 = vshll.u32 %v1506, 16
      %v1684 = vrot.slane %v1682, 1
      %v1685 = vor.u32 %v1680, %v1684
      %v1687 = vshll.u32 %v1586, 16
      %v1689 = vrot.slane %v1687, 1
      %v1690 = vsel %vm569, %v1685, %v1689
      %v1692 = vshrl.u32 %v1507, 16
      %v1694 = vshll.u32 %v1507, 16
      %v1696 = vrot.slane %v1694, 1
      %v1697 = vor.u32 %v1692, %v1696
      %v1699 = vshll.u32 %v1587, 16
      %v1701 = vrot.slane %v1699, 1
      %v1702 = vsel %vm569, %v1697, %v1701
      %v1704 = vshrl.u32 %v1508, 16
      %v1706 = vshll.u32 %v1508, 16
      %v1708 = vrot.slane %v1706, 1
      %v1709 = vor.u32 %v1704, %v1708
      %v1711 = vshll.u32 %v1588, 16
      %v1713 = vrot.slane %v1711, 1
      %v1714 = vsel %vm569, %v1709, %v1713
      %v1716 = vshrl.u32 %v1509, 16
      %v1718 = vshll.u32 %v1509, 16
      %v1720 = vrot.slane %v1718, 1
      %v1721 = vor.u32 %v1716, %v1720
      %v1723 = vshll.u32 %v1589, 16
      %v1725 = vrot.slane %v1723, 1
      %v1726 = vsel %vm569, %v1721, %v1725
      %v1728 = vshrl.u32 %v1510, 16
      %v1730 = vshll.u32 %v1510, 16
      %v1732 = vrot.slane %v1730, 1
      %v1733 = vor.u32 %v1728, %v1732
      %v1735 = vshll.u32 %v1590, 16
      %v1737 = vrot.slane %v1735, 1
      %v1738 = vsel %vm569, %v1733, %v1737
      %v1740 = vshrl.u32 %v1511, 16
      %v1742 = vshll.u32 %v1511, 16
      %v1744 = vrot.slane %v1742, 1
      %v1745 = vor.u32 %v1740, %v1744
      %v1747 = vshll.u32 %v1591, 16
      %v1749 = vrot.slane %v1747, 1
      %v1750 = vsel %vm569, %v1745, %v1749
      %v1752 = vshrl.u32 %v1512, 16
      %v1754 = vshll.u32 %v1512, 16
      %v1756 = vrot.slane %v1754, 1
      %v1757 = vor.u32 %v1752, %v1756
      %v1759 = vshll.u32 %v1592, 16
      %v1761 = vrot.slane %v1759, 1
      %v1762 = vsel %vm569, %v1757, %v1761
      %v1764 = vshrl.u32 %v1513, 16
      %v1766 = vshll.u32 %v1513, 16
      %v1768 = vrot.slane %v1766, 1
      %v1769 = vor.u32 %v1764, %v1768
      %v1771 = vshll.u32 %v1593, 16
      %v1773 = vrot.slane %v1771, 1
      %v1774 = vsel %vm569, %v1769, %v1773
      %v1776 = vshrl.u32 %v1514, 16
      %v1778 = vshll.u32 %v1514, 16
      %v1780 = vrot.slane %v1778, 1
      %v1781 = vor.u32 %v1776, %v1780
      %v1783 = vshll.u32 %v1594, 16
      %v1785 = vrot.slane %v1783, 1
      %v1786 = vsel %vm569, %v1781, %v1785
      %1787 = vrot.lane.b32.xlu0 %v1606, 28
      %v1788 = vpop.permute.xlu0 %1787
      %1789 = vrot.lane.b32.xlu0 %v1618, 28
      %v1790 = vpop.permute.xlu0 %1789
      %1791 = vrot.lane.b32.xlu0 %v1630, 28
      %v1792 = vpop.permute.xlu0 %1791
      %1793 = vrot.lane.b32.xlu0 %v1642, 28
      %v1794 = vpop.permute.xlu0 %1793
      %1795 = vrot.lane.b32.xlu0 %v1654, 28
      %v1796 = vpop.permute.xlu0 %1795
      %1797 = vrot.lane.b32.xlu0 %v1666, 28
      %v1798 = vpop.permute.xlu0 %1797
      %1799 = vrot.lane.b32.xlu0 %v1678, 28
      %v1800 = vpop.permute.xlu0 %1799
      %1801 = vrot.lane.b32.xlu0 %v1690, 28
      %v1802 = vpop.permute.xlu0 %1801
      %1803 = vrot.lane.b32.xlu0 %v1702, 28
      %v1804 = vpop.permute.xlu0 %1803
      %1805 = vrot.lane.b32.xlu0 %v1714, 28
      %v1806 = vpop.permute.xlu0 %1805
      %1807 = vrot.lane.b32.xlu0 %v1726, 28
      %v1808 = vpop.permute.xlu0 %1807
      %1809 = vrot.lane.b32.xlu0 %v1738, 28
      %v1810 = vpop.permute.xlu0 %1809
      %1811 = vrot.lane.b32.xlu0 %v1750, 28
      %v1812 = vpop.permute.xlu0 %1811
      %1813 = vrot.lane.b32.xlu0 %v1762, 28
      %v1814 = vpop.permute.xlu0 %1813
      %1815 = vrot.lane.b32.xlu0 %v1774, 28
      %v1816 = vpop.permute.xlu0 %1815
      %1817 = vrot.lane.b32.xlu0 %v1786, 28
      %v1818 = vpop.permute.xlu0 %1817
      %v1835 = vunpack.c.l.b16 %v425
      %v1836 = vunpack.c.l.b16 %v426
      %v1837 = vunpack.c.l.b16 %v427
      %v1838 = vunpack.c.l.b16 %v428
      %v1839 = vunpack.c.l.b16 %v429
      %v1840 = vunpack.c.l.b16 %v430
      %v1841 = vunpack.c.l.b16 %v431
      %v1842 = vunpack.c.l.b16 %v432
      %v1843 = vunpack.c.l.b16 %v433
      %v1844 = vunpack.c.l.b16 %v434
      %v1845 = vunpack.c.l.b16 %v435
      %v1846 = vunpack.c.l.b16 %v436
      %v1847 = vunpack.c.l.b16 %v437
      %v1848 = vunpack.c.l.b16 %v438
      %v1849 = vunpack.c.l.b16 %v439
      %v1850 = vunpack.c.l.b16 %v440
      %v1851 = vpack.c.b16 %v1468, %v1835
      %v1852 = vpack.c.b16 %v1470, %v1836
      %v1853 = vpack.c.b16 %v1472, %v1837
      %v1854 = vpack.c.b16 %v1474, %v1838
      %v1855 = vpack.c.b16 %v1476, %v1839
      %v1856 = vpack.c.b16 %v1478, %v1840
      %v1857 = vpack.c.b16 %v1480, %v1841
      %v1858 = vpack.c.b16 %v1482, %v1842
      %v1859 = vpack.c.b16 %v1484, %v1843
      %v1860 = vpack.c.b16 %v1486, %v1844
      %v1861 = vpack.c.b16 %v1488, %v1845
      %v1862 = vpack.c.b16 %v1490, %v1846
      %v1863 = vpack.c.b16 %v1492, %v1847
      %v1864 = vpack.c.b16 %v1494, %v1848
      %v1865 = vpack.c.b16 %v1496, %v1849
      %v1866 = vpack.c.b16 %v1498, %v1850
      %v1867 = vrot.slane %v1851, 1
      %v1868 = vrot.slane %v1579, 1
      %v1869 = vsel %vm842, %v1867, %v1868
      %v1870 = vrot.slane %v1852, 1
      %v1871 = vrot.slane %v1580, 1
      %v1872 = vsel %vm842, %v1870, %v1871
      %v1873 = vrot.slane %v1853, 1
      %v1874 = vrot.slane %v1581, 1
      %v1875 = vsel %vm842, %v1873, %v1874
      %v1876 = vrot.slane %v1854, 1
      %v1877 = vrot.slane %v1582, 1
      %v1878 = vsel %vm842, %v1876, %v1877
      %v1879 = vrot.slane %v1855, 1
      %v1880 = vrot.slane %v1583, 1
      %v1881 = vsel %vm842, %v1879, %v1880
      %v1882 = vrot.slane %v1856, 1
      %v1883 = vrot.slane %v1584, 1
      %v1884 = vsel %vm842, %v1882, %v1883
      %v1885 = vrot.slane %v1857, 1
      %v1886 = vrot.slane %v1585, 1
      %v1887 = vsel %vm842, %v1885, %v1886
      %v1888 = vrot.slane %v1858, 1
      %v1889 = vrot.slane %v1586, 1
      %v1890 = vsel %vm842, %v1888, %v1889
      %v1891 = vrot.slane %v1859, 1
      %v1892 = vrot.slane %v1587, 1
      %v1893 = vsel %vm842, %v1891, %v1892
      %v1894 = vrot.slane %v1860, 1
      %v1895 = vrot.slane %v1588, 1
      %v1896 = vsel %vm842, %v1894, %v1895
      %v1897 = vrot.slane %v1861, 1
      %v1898 = vrot.slane %v1589, 1
      %v1899 = vsel %vm842, %v1897, %v1898
      %v1900 = vrot.slane %v1862, 1
      %v1901 = vrot.slane %v1590, 1
      %v1902 = vsel %vm842, %v1900, %v1901
      %v1903 = vrot.slane %v1863, 1
      %v1904 = vrot.slane %v1591, 1
      %v1905 = vsel %vm842, %v1903, %v1904
      %v1906 = vrot.slane %v1864, 1
      %v1907 = vrot.slane %v1592, 1
      %v1908 = vsel %vm842, %v1906, %v1907
      %v1909 = vrot.slane %v1865, 1
      %v1910 = vrot.slane %v1593, 1
      %v1911 = vsel %vm842, %v1909, %v1910
      %v1912 = vrot.slane %v1866, 1
      %v1913 = vrot.slane %v1594, 1
      %v1914 = vsel %vm842, %v1912, %v1913
      %1915 = vrot.lane.b32.xlu0 %v1869, 32
      %v1916 = vpop.permute.xlu0 %1915
      %1917 = vrot.lane.b32.xlu0 %v1872, 32
      %v1918 = vpop.permute.xlu0 %1917
      %1919 = vrot.lane.b32.xlu0 %v1875, 32
      %v1920 = vpop.permute.xlu0 %1919
      %1921 = vrot.lane.b32.xlu0 %v1878, 32
      %v1922 = vpop.permute.xlu0 %1921
      %1923 = vrot.lane.b32.xlu0 %v1881, 32
      %v1924 = vpop.permute.xlu0 %1923
      %1925 = vrot.lane.b32.xlu0 %v1884, 32
      %v1926 = vpop.permute.xlu0 %1925
      %1927 = vrot.lane.b32.xlu0 %v1887, 32
      %v1928 = vpop.permute.xlu0 %1927
      %1929 = vrot.lane.b32.xlu0 %v1890, 32
      %v1930 = vpop.permute.xlu0 %1929
      %1931 = vrot.lane.b32.xlu0 %v1893, 32
      %v1932 = vpop.permute.xlu0 %1931
      %1933 = vrot.lane.b32.xlu0 %v1896, 32
      %v1934 = vpop.permute.xlu0 %1933
      %1935 = vrot.lane.b32.xlu0 %v1899, 32
      %v1936 = vpop.permute.xlu0 %1935
      %1937 = vrot.lane.b32.xlu0 %v1902, 32
      %v1938 = vpop.permute.xlu0 %1937
      %1939 = vrot.lane.b32.xlu0 %v1905, 32
      %v1940 = vpop.permute.xlu0 %1939
      %1941 = vrot.lane.b32.xlu0 %v1908, 32
      %v1942 = vpop.permute.xlu0 %1941
      %1943 = vrot.lane.b32.xlu0 %v1911, 32
      %v1944 = vpop.permute.xlu0 %1943
      %1945 = vrot.lane.b32.xlu0 %v1914, 32
      %v1946 = vpop.permute.xlu0 %1945
      %vm1947 = vcmask 31744
      %v1949 = vsel %vm1947, %v505, %v763
      %v1951 = vsel %vm1947, %v506, %v765
      %v1953 = vsel %vm1947, %v507, %v767
      %v1955 = vsel %vm1947, %v508, %v769
      %v1957 = vsel %vm1947, %v509, %v771
      %v1959 = vsel %vm1947, %v510, %v773
      %v1961 = vsel %vm1947, %v511, %v775
      %v1963 = vsel %vm1947, %v512, %v777
      %v1965 = vsel %vm1947, %v513, %v779
      %v1967 = vsel %vm1947, %v514, %v781
      %v1969 = vsel %vm1947, %v515, %v783
      %v1971 = vsel %vm1947, %v516, %v785
      %v1973 = vsel %vm1947, %v517, %v787
      %v1975 = vsel %vm1947, %v518, %v789
      %v1977 = vsel %vm1947, %v519, %v791
      %v1979 = vsel %vm1947, %v520, %v793
      %vm1980 = vcmask 64512
      %v1982 = vsel %vm1980, %v1949, %v892
      %v1984 = vsel %vm1980, %v1951, %v894
      %v1986 = vsel %vm1980, %v1953, %v896
      %v1988 = vsel %vm1980, %v1955, %v898
      %v1990 = vsel %vm1980, %v1957, %v900
      %v1992 = vsel %vm1980, %v1959, %v902
      %v1994 = vsel %vm1980, %v1961, %v904
      %v1996 = vsel %vm1980, %v1963, %v906
      %v1998 = vsel %vm1980, %v1965, %v908
      %v2000 = vsel %vm1980, %v1967, %v910
      %v2002 = vsel %vm1980, %v1969, %v912
      %v2004 = vsel %vm1980, %v1971, %v914
      %v2006 = vsel %vm1980, %v1973, %v916
      %v2008 = vsel %vm1980, %v1975, %v918
      %v2010 = vsel %vm1980, %v1977, %v920
      %v2012 = vsel %vm1980, %v1979, %v922
      %vm2013 = vcmask 97280
      %v2015 = vsel %vm2013, %v1982, %v1004
      %v2017 = vsel %vm2013, %v1984, %v1006
      %v2019 = vsel %vm2013, %v1986, %v1008
      %v2021 = vsel %vm2013, %v1988, %v1010
      %v2023 = vsel %vm2013, %v1990, %v1012
      %v2025 = vsel %vm2013, %v1992, %v1014
      %v2027 = vsel %vm2013, %v1994, %v1016
      %v2029 = vsel %vm2013, %v1996, %v1018
      %v2031 = vsel %vm2013, %v1998, %v1020
      %v2033 = vsel %vm2013, %v2000, %v1022
      %v2035 = vsel %vm2013, %v2002, %v1024
      %v2037 = vsel %vm2013, %v2004, %v1026
      %v2039 = vsel %vm2013, %v2006, %v1028
      %v2041 = vsel %vm2013, %v2008, %v1030
      %v2043 = vsel %vm2013, %v2010, %v1032
      %v2045 = vsel %vm2013, %v2012, %v1034
      %vm2046 = vcmask 130048
      %v2048 = vsel %vm2046, %v2015, %v1276
      %v2050 = vsel %vm2046, %v2017, %v1278
      %v2052 = vsel %vm2046, %v2019, %v1280
      %v2054 = vsel %vm2046, %v2021, %v1282
      %v2056 = vsel %vm2046, %v2023, %v1284
      %v2058 = vsel %vm2046, %v2025, %v1286
      %v2060 = vsel %vm2046, %v2027, %v1288
      %v2062 = vsel %vm2046, %v2029, %v1290
      %v2064 = vsel %vm2046, %v2031, %v1292
      %v2066 = vsel %vm2046, %v2033, %v1294
      %v2068 = vsel %vm2046, %v2035, %v1296
      %v2070 = vsel %vm2046, %v2037, %v1298
      %v2072 = vsel %vm2046, %v2039, %v1300
      %v2074 = vsel %vm2046, %v2041, %v1302
      %v2076 = vsel %vm2046, %v2043, %v1304
      %v2078 = vsel %vm2046, %v2045, %v1306
      %vm2079 = vcmask 162816
      %v2081 = vsel %vm2079, %v2048, %v1404
      %v2083 = vsel %vm2079, %v2050, %v1406
      %v2085 = vsel %vm2079, %v2052, %v1408
      %v2087 = vsel %vm2079, %v2054, %v1410
      %v2089 = vsel %vm2079, %v2056, %v1412
      %v2091 = vsel %vm2079, %v2058, %v1414
      %v2093 = vsel %vm2079, %v2060, %v1416
      %v2095 = vsel %vm2079, %v2062, %v1418
      %v2097 = vsel %vm2079, %v2064, %v1420
      %v2099 = vsel %vm2079, %v2066, %v1422
      %v2101 = vsel %vm2079, %v2068, %v1424
      %v2103 = vsel %vm2079, %v2070, %v1426
      %v2105 = vsel %vm2079, %v2072, %v1428
      %v2107 = vsel %vm2079, %v2074, %v1430
      %v2109 = vsel %vm2079, %v2076, %v1432
      %v2111 = vsel %vm2079, %v2078, %v1434
      %vm2112 = vcmask 195584
      %v2114 = vsel %vm2112, %v2081, %v1516
      %v2116 = vsel %vm2112, %v2083, %v1518
      %v2118 = vsel %vm2112, %v2085, %v1520
      %v2120 = vsel %vm2112, %v2087, %v1522
      %v2122 = vsel %vm2112, %v2089, %v1524
      %v2124 = vsel %vm2112, %v2091, %v1526
      %v2126 = vsel %vm2112, %v2093, %v1528
      %v2128 = vsel %vm2112, %v2095, %v1530
      %v2130 = vsel %vm2112, %v2097, %v1532
      %v2132 = vsel %vm2112, %v2099, %v1534
      %v2134 = vsel %vm2112, %v2101, %v1536
      %v2136 = vsel %vm2112, %v2103, %v1538
      %v2138 = vsel %vm2112, %v2105, %v1540
      %v2140 = vsel %vm2112, %v2107, %v1542
      %v2142 = vsel %vm2112, %v2109, %v1544
      %v2144 = vsel %vm2112, %v2111, %v1546
      %vm2145 = vcmask 228352
      %v2147 = vsel %vm2145, %v2114, %v1788
      %v2149 = vsel %vm2145, %v2116, %v1790
      %v2151 = vsel %vm2145, %v2118, %v1792
      %v2153 = vsel %vm2145, %v2120, %v1794
      %v2155 = vsel %vm2145, %v2122, %v1796
      %v2157 = vsel %vm2145, %v2124, %v1798
      %v2159 = vsel %vm2145, %v2126, %v1800
      %v2161 = vsel %vm2145, %v2128, %v1802
      %v2163 = vsel %vm2145, %v2130, %v1804
      %v2165 = vsel %vm2145, %v2132, %v1806
      %v2167 = vsel %vm2145, %v2134, %v1808
      %v2169 = vsel %vm2145, %v2136, %v1810
      %v2171 = vsel %vm2145, %v2138, %v1812
      %v2173 = vsel %vm2145, %v2140, %v1814
      %v2175 = vsel %vm2145, %v2142, %v1816
      %v2177 = vsel %vm2145, %v2144, %v1818
      %vm2178 = vcmask 261120
      %v2180 = vsel %vm2178, %v2147, %v1916
      %v2182 = vsel %vm2178, %v2149, %v1918
      %v2184 = vsel %vm2178, %v2151, %v1920
      %v2186 = vsel %vm2178, %v2153, %v1922
      %v2188 = vsel %vm2178, %v2155, %v1924
      %v2190 = vsel %vm2178, %v2157, %v1926
      %v2192 = vsel %vm2178, %v2159, %v1928
      %v2194 = vsel %vm2178, %v2161, %v1930
      %v2196 = vsel %vm2178, %v2163, %v1932
      %v2198 = vsel %vm2178, %v2165, %v1934
      %v2200 = vsel %vm2178, %v2167, %v1936
      %v2202 = vsel %vm2178, %v2169, %v1938
      %v2204 = vsel %vm2178, %v2171, %v1940
      %v2206 = vsel %vm2178, %v2173, %v1942
      %v2208 = vsel %vm2178, %v2175, %v1944
      %v2210 = vsel %vm2178, %v2177, %v1946
      %v2211 = vld [vmem:[%s1] sm:$0xf]
      %v2212 = vld [vmem:[%s1 + $0x4] sm:$0xf]
      %v2213 = vld [vmem:[%s1 + $0x8] sm:$0xf]
      %v2214 = vld [vmem:[%s1 + $0xc] sm:$0xf]
      %v2215 = vld [vmem:[%s1 + $0x10] sm:$0x3]
      %v2221 = vunpack.c.l.b16 %v2211
      %v2222 = vunpack.c.l.b16 %v2212
      %v2223 = vunpack.c.l.b16 %v2213
      %v2224 = vunpack.c.l.b16 %v2214
      %v2225 = vunpack.c.l.b16 %v2215
      %v2226 = vpack.c.b16 %v2222, %v2221
      %v2227 = vpack.c.b16 %v2224, %v2223
      %v2228 = vpack.c.b16 %v2225, %v2225
      %vm2231 = vcmask 293888
      %v2232 = vsel %vm2231, %v2180, 0
      %v2234 = vsel %vm2231, %v2182, 0
      %v2236 = vsel %vm2231, %v2184, 0
      %v2238 = vsel %vm2231, %v2186, 0
      %v2240 = vsel %vm2231, %v2188, 0
      %v2242 = vsel %vm2231, %v2190, 0
      %v2244 = vsel %vm2231, %v2192, 0
      %v2246 = vsel %vm2231, %v2194, 0
      %v2248 = vsel %vm2231, %v2196, 0
      %v2250 = vsel %vm2231, %v2198, 0
      %v2252 = vsel %vm2231, %v2200, 0
      %v2254 = vsel %vm2231, %v2202, 0
      %v2256 = vsel %vm2231, %v2204, 0
      %v2258 = vsel %vm2231, %v2206, 0
      %v2260 = vsel %vm2231, %v2208, 0
      %v2262 = vsel %vm2231, %v2210, 0
      %vm2264 = vcmask 1041408
      %v2266 = vsel %vm2264, %v2228, 0
      %2268 = vmatprep.subr.bf16.mxu0 0
      %2269 = vmatpush1.bf16.msra.mxu0 %v2226
      %2270 = vmatprep.subr.bf16.mxu0 0
      %2271 = vmatpush1.bf16.msra.mxu0 %v2227
      %2272 = vmatprep.subr.bf16.mxu0 0
      %2273 = vmatpush1.bf16.msra.mxu0 %v2266
      %2274 = vmatprep.subr.bf16.mxu0 0
      %2275 = vmatpush1.bf16.msra.mxu0 0
      %2276 = vmatprep.subr.bf16.mxu0 0
      %2277 = vmatpush1.bf16.msra.mxu0 0
      %2278 = vmatprep.subr.bf16.mxu0 0
      %2279 = vmatpush1.bf16.msra.mxu0 0
      %2280 = vmatprep.subr.bf16.mxu0 0
      %2281 = vmatpush1.bf16.msra.mxu0 0
      %2282 = vmatprep.subr.bf16.mxu0 0
      %2283 = vmatpush1.bf16.msra.mxu0 0
      %2284 = vmatprep.subr.bf16.mxu0 0
      %2285 = vmatpush1.bf16.msra.mxu0 0
      %2286 = vmatprep.subr.bf16.mxu0 0
      %2287 = vmatpush1.bf16.msra.mxu0 0
      %2288 = vmatprep.subr.bf16.mxu0 0
      %2289 = vmatpush1.bf16.msra.mxu0 0
      %2290 = vmatprep.subr.bf16.mxu0 0
      %2291 = vmatpush1.bf16.msra.mxu0 0
      %2292 = vmatprep.subr.bf16.mxu0 0
      %2293 = vmatpush1.bf16.msra.mxu0 0
      %2294 = vmatprep.subr.bf16.mxu0 0
      %2295 = vmatpush1.bf16.msra.mxu0 0
      %2296 = vmatprep.subr.bf16.mxu0 0
      %2297 = vmatpush1.bf16.msra.mxu0 0
      %2298 = vmatprep.subr.bf16.mxu0 0
      %2299 = vmatpush1.bf16.msra.mxu0 0
      %2300 = vmatprep.mubr.bf16.mxu0 0
      %2301 = vmatmul.mubr.bf16.gmra.mrb[0].mxu0 %v2232
      %v2302 = vpop.f32.mrb[0].mxu0
      %v2303 = vadd.f32 0.0, %v2302
      %v2304 = vpop.f32.mrb[0].mxu0
      %v2305 = vpop.f32.mrb[0].mxu0
      %v2306 = vadd.f32 0.0, %v2305
      %v2307 = vpop.f32.mrb[0].mxu0
      %2308 = vmatprep.mubr.bf16.mxu0 0
      %2309 = vmatmul.mubr.bf16.gmra.mrb[0].mxu0 %v2234
      %v2310 = vpop.f32.mrb[0].mxu0
      %v2311 = vadd.f32 0.0, %v2310
      %v2312 = vpop.f32.mrb[0].mxu0
      %v2313 = vpop.f32.mrb[0].mxu0
      %v2314 = vadd.f32 0.0, %v2313
      %v2315 = vpop.f32.mrb[0].mxu0
      %2316 = vmatprep.mubr.bf16.mxu0 0
      %2317 = vmatmul.mubr.bf16.gmra.mrb[0].mxu0 %v2236
      %v2318 = vpop.f32.mrb[0].mxu0
      %v2319 = vadd.f32 0.0, %v2318
      %v2320 = vpop.f32.mrb[0].mxu0
      %v2321 = vpop.f32.mrb[0].mxu0
      %v2322 = vadd.f32 0.0, %v2321
      %v2323 = vpop.f32.mrb[0].mxu0
      %2324 = vmatprep.mubr.bf16.mxu0 0
      %2325 = vmatmul.mubr.bf16.gmra.mrb[0].mxu0 %v2238
      %v2326 = vpop.f32.mrb[0].mxu0
      %v2327 = vadd.f32 0.0, %v2326
      %v2328 = vpop.f32.mrb[0].mxu0
      %v2329 = vpop.f32.mrb[0].mxu0
      %v2330 = vadd.f32 0.0, %v2329
      %v2331 = vpop.f32.mrb[0].mxu0
      %2332 = vmatprep.mubr.bf16.mxu0 0
      %2333 = vmatmul.mubr.bf16.gmra.mrb[0].mxu0 %v2240
      %v2334 = vpop.f32.mrb[0].mxu0
      %v2335 = vadd.f32 0.0, %v2334
      %v2336 = vpop.f32.mrb[0].mxu0
      %v2337 = vpop.f32.mrb[0].mxu0
      %v2338 = vadd.f32 0.0, %v2337
      %v2339 = vpop.f32.mrb[0].mxu0
      %2340 = vmatprep.mubr.bf16.mxu0 0
      %2341 = vmatmul.mubr.bf16.gmra.mrb[0].mxu0 %v2242
      %v2342 = vpop.f32.mrb[0].mxu0
      %v2343 = vadd.f32 0.0, %v2342
      %v2344 = vpop.f32.mrb[0].mxu0
      %v2345 = vpop.f32.mrb[0].mxu0
      %v2346 = vadd.f32 0.0, %v2345
      %v2347 = vpop.f32.mrb[0].mxu0
      %2348 = vmatprep.mubr.bf16.mxu0 0
      %2349 = vmatmul.mubr.bf16.gmra.mrb[0].mxu0 %v2244
      %v2350 = vpop.f32.mrb[0].mxu0
      %v2351 = vadd.f32 0.0, %v2350
      %v2352 = vpop.f32.mrb[0].mxu0
      %v2353 = vpop.f32.mrb[0].mxu0
      %v2354 = vadd.f32 0.0, %v2353
      %v2355 = vpop.f32.mrb[0].mxu0
      %2356 = vmatprep.mubr.bf16.mxu0 0
      %2357 = vmatmul.mubr.bf16.gmra.mrb[0].mxu0 %v2246
      %v2358 = vpop.f32.mrb[0].mxu0
      %v2359 = vadd.f32 0.0, %v2358
      %v2360 = vpop.f32.mrb[0].mxu0
      %v2361 = vpop.f32.mrb[0].mxu0
      %v2362 = vadd.f32 0.0, %v2361
      %v2363 = vpop.f32.mrb[0].mxu0
      %2364 = vmatprep.mubr.bf16.mxu0 0
      %2365 = vmatmul.mubr.bf16.gmra.mrb[0].mxu0 %v2248
      %v2366 = vpop.f32.mrb[0].mxu0
      %v2367 = vadd.f32 0.0, %v2366
      %v2368 = vpop.f32.mrb[0].mxu0
      %v2369 = vpop.f32.mrb[0].mxu0
      %v2370 = vadd.f32 0.0, %v2369
      %v2371 = vpop.f32.mrb[0].mxu0
      %2372 = vmatprep.mubr.bf16.mxu0 0
      %2373 = vmatmul.mubr.bf16.gmra.mrb[0].mxu0 %v2250
      %v2374 = vpop.f32.mrb[0].mxu0
      %v2375 = vadd.f32 0.0, %v2374
      %v2376 = vpop.f32.mrb[0].mxu0
      %v2377 = vpop.f32.mrb[0].mxu0
      %v2378 = vadd.f32 0.0, %v2377
      %v2379 = vpop.f32.mrb[0].mxu0
      %2380 = vmatprep.mubr.bf16.mxu0 0
      %2381 = vmatmul.mubr.bf16.gmra.mrb[0].mxu0 %v2252
      %v2382 = vpop.f32.mrb[0].mxu0
      %v2383 = vadd.f32 0.0, %v2382
      %v2384 = vpop.f32.mrb[0].mxu0
      %v2385 = vpop.f32.mrb[0].mxu0
      %v2386 = vadd.f32 0.0, %v2385
      %v2387 = vpop.f32.mrb[0].mxu0
      %2388 = vmatprep.mubr.bf16.mxu0 0
      %2389 = vmatmul.mubr.bf16.gmra.mrb[0].mxu0 %v2254
      %v2390 = vpop.f32.mrb[0].mxu0
      %v2391 = vadd.f32 0.0, %v2390
      %v2392 = vpop.f32.mrb[0].mxu0
      %v2393 = vpop.f32.mrb[0].mxu0
      %v2394 = vadd.f32 0.0, %v2393
      %v2395 = vpop.f32.mrb[0].mxu0
      %2396 = vmatprep.mubr.bf16.mxu0 0
      %2397 = vmatmul.mubr.bf16.gmra.mrb[0].mxu0 %v2256
      %v2398 = vpop.f32.mrb[0].mxu0
      %v2399 = vadd.f32 0.0, %v2398
      %v2400 = vpop.f32.mrb[0].mxu0
      %v2401 = vpop.f32.mrb[0].mxu0
      %v2402 = vadd.f32 0.0, %v2401
      %v2403 = vpop.f32.mrb[0].mxu0
      %2404 = vmatprep.mubr.bf16.mxu0 0
      %2405 = vmatmul.mubr.bf16.gmra.mrb[0].mxu0 %v2258
      %v2406 = vpop.f32.mrb[0].mxu0
      %v2407 = vadd.f32 0.0, %v2406
      %v2408 = vpop.f32.mrb[0].mxu0
      %v2409 = vpop.f32.mrb[0].mxu0
      %v2410 = vadd.f32 0.0, %v2409
      %v2411 = vpop.f32.mrb[0].mxu0
      %2412 = vmatprep.mubr.bf16.mxu0 0
      %2413 = vmatmul.mubr.bf16.gmra.mrb[0].mxu0 %v2260
      %v2414 = vpop.f32.mrb[0].mxu0
      %v2415 = vadd.f32 0.0, %v2414
      %v2416 = vpop.f32.mrb[0].mxu0
      %v2417 = vpop.f32.mrb[0].mxu0
      %v2418 = vadd.f32 0.0, %v2417
      %v2419 = vpop.f32.mrb[0].mxu0
      %2420 = vmatprep.mubr.bf16.mxu0 0
      %2421 = vmatmul.mubr.bf16.gmra.mrb[0].mxu0 %v2262
      %v2422 = vpop.f32.mrb[0].mxu0
      %v2423 = vadd.f32 0.0, %v2422
      %v2424 = vpop.f32.mrb[0].mxu0
      %v2425 = vpop.f32.mrb[0].mxu0
      %v2426 = vadd.f32 0.0, %v2425
      %v2427 = vpop.f32.mrb[0].mxu0
      %2428 = vdwg.mxu0
      %v2429 = vpack.c.bf16 %v2306, %v2303
      %v2430 = vpack.c.bf16 %v2314, %v2311
      %v2431 = vpack.c.bf16 %v2322, %v2319
      %v2432 = vpack.c.bf16 %v2330, %v2327
      %v2433 = vpack.c.bf16 %v2338, %v2335
      %v2434 = vpack.c.bf16 %v2346, %v2343
      %v2435 = vpack.c.bf16 %v2354, %v2351
      %v2436 = vpack.c.bf16 %v2362, %v2359
      %v2437 = vpack.c.bf16 %v2370, %v2367
      %v2438 = vpack.c.bf16 %v2378, %v2375
      %v2439 = vpack.c.bf16 %v2386, %v2383
      %v2440 = vpack.c.bf16 %v2394, %v2391
      %v2441 = vpack.c.bf16 %v2402, %v2399
      %v2442 = vpack.c.bf16 %v2410, %v2407
      %v2443 = vpack.c.bf16 %v2418, %v2415
      %v2444 = vpack.c.bf16 %v2426, %v2423
      %v2461 = vunpack.c.l.b16 %v2429
      %v2462 = vunpack.c.h.b16 %v2429
      %v2463 = vunpack.c.l.b16 %v2430
      %v2464 = vunpack.c.h.b16 %v2430
      %v2465 = vunpack.c.l.b16 %v2431
      %v2466 = vunpack.c.h.b16 %v2431
      %v2467 = vunpack.c.l.b16 %v2432
      %v2468 = vunpack.c.h.b16 %v2432
      %v2469 = vunpack.c.l.b16 %v2433
      %v2470 = vunpack.c.h.b16 %v2433
      %v2471 = vunpack.c.l.b16 %v2434
      %v2472 = vunpack.c.h.b16 %v2434
      %v2473 = vunpack.c.l.b16 %v2435
      %v2474 = vunpack.c.h.b16 %v2435
      %v2475 = vunpack.c.l.b16 %v2436
      %v2476 = vunpack.c.h.b16 %v2436
      %v2477 = vunpack.c.l.b16 %v2437
      %v2478 = vunpack.c.h.b16 %v2437
      %v2479 = vunpack.c.l.b16 %v2438
      %v2480 = vunpack.c.h.b16 %v2438
      %v2481 = vunpack.c.l.b16 %v2439
      %v2482 = vunpack.c.h.b16 %v2439
      %v2483 = vunpack.c.l.b16 %v2440
      %v2484 = vunpack.c.h.b16 %v2440
      %v2485 = vunpack.c.l.b16 %v2441
      %v2486 = vunpack.c.h.b16 %v2441
      %v2487 = vunpack.c.l.b16 %v2442
      %v2488 = vunpack.c.h.b16 %v2442
      %v2489 = vunpack.c.l.b16 %v2443
      %v2490 = vunpack.c.h.b16 %v2443
      %v2491 = vunpack.c.l.b16 %v2444
      %v2492 = vunpack.c.h.b16 %v2444
      %v2493 = vpack.c.b16 %v2461, %v2461
      %v2494 = vpack.c.b16 %v2462, %v2462
      %v2495 = vpack.c.b16 %v2463, %v2463
      %v2496 = vpack.c.b16 %v2464, %v2464
      %v2497 = vpack.c.b16 %v2465, %v2465
      %v2498 = vpack.c.b16 %v2466, %v2466
      %v2499 = vpack.c.b16 %v2467, %v2467
      %v2500 = vpack.c.b16 %v2468, %v2468
      %v2501 = vpack.c.b16 %v2469, %v2469
      %v2502 = vpack.c.b16 %v2470, %v2470
      %v2503 = vpack.c.b16 %v2471, %v2471
      %v2504 = vpack.c.b16 %v2472, %v2472
      %v2505 = vpack.c.b16 %v2473, %v2473
      %v2506 = vpack.c.b16 %v2474, %v2474
      %v2507 = vpack.c.b16 %v2475, %v2475
      %v2508 = vpack.c.b16 %v2476, %v2476
      %v2509 = vpack.c.b16 %v2477, %v2477
      %v2510 = vpack.c.b16 %v2478, %v2478
      %v2511 = vpack.c.b16 %v2479, %v2479
      %v2512 = vpack.c.b16 %v2480, %v2480
      %v2513 = vpack.c.b16 %v2481, %v2481
      %v2514 = vpack.c.b16 %v2482, %v2482
      %v2515 = vpack.c.b16 %v2483, %v2483
      %v2516 = vpack.c.b16 %v2484, %v2484
      %v2517 = vpack.c.b16 %v2485, %v2485
      %v2518 = vpack.c.b16 %v2486, %v2486
      %v2519 = vpack.c.b16 %v2487, %v2487
      %v2520 = vpack.c.b16 %v2488, %v2488
      %v2521 = vpack.c.b16 %v2489, %v2489
      %v2522 = vpack.c.b16 %v2490, %v2490
      %v2523 = vpack.c.b16 %v2491, %v2491
      %v2524 = vpack.c.b16 %v2492, %v2492
      %vm2557 = vcmask 27648
      %2558 = vst.msk [vmem:[%s231] sm:$0xf] %vm2557, %v2493
      %2559 = vst.msk [vmem:[%s231 + $0x4] sm:$0xf] %vm2557, %v2494
      %2560 = vst.msk [vmem:[%s231 + $0x8] sm:$0xf] %vm2557, %v2495
      %2561 = vst.msk [vmem:[%s231 + $0xc] sm:$0xf] %vm2557, %v2496
      %2562 = vst.msk [vmem:[%s231 + $0x10] sm:$0xf] %vm2557, %v2497
      %2563 = vst.msk [vmem:[%s231 + $0x14] sm:$0xf] %vm2557, %v2498
      %2564 = vst.msk [vmem:[%s231 + $0x18] sm:$0xf] %vm2557, %v2499
      %2565 = vst.msk [vmem:[%s231 + $0x1c] sm:$0xf] %vm2557, %v2500
      %2566 = vst.msk [vmem:[%s231 + $0x20] sm:$0xf] %vm2557, %v2501
      %2567 = vst.msk [vmem:[%s231 + $0x24] sm:$0xf] %vm2557, %v2502
      %2568 = vst.msk [vmem:[%s231 + $0x28] sm:$0xf] %vm2557, %v2503
      %2569 = vst.msk [vmem:[%s231 + $0x2c] sm:$0xf] %vm2557, %v2504
      %2570 = vst.msk [vmem:[%s231 + $0x30] sm:$0xf] %vm2557, %v2505
      %2571 = vst.msk [vmem:[%s231 + $0x34] sm:$0xf] %vm2557, %v2506
      %2572 = vst.msk [vmem:[%s231 + $0x38] sm:$0xf] %vm2557, %v2507
      %2573 = vst.msk [vmem:[%s231 + $0x3c] sm:$0xf] %vm2557, %v2508
      %2574 = vst.msk [vmem:[%s231 + $0x40] sm:$0xf] %vm2557, %v2509
      %2575 = vst.msk [vmem:[%s231 + $0x44] sm:$0xf] %vm2557, %v2510
      %2576 = vst.msk [vmem:[%s231 + $0x48] sm:$0xf] %vm2557, %v2511
      %2577 = vst.msk [vmem:[%s231 + $0x4c] sm:$0xf] %vm2557, %v2512
      %2578 = vst.msk [vmem:[%s231 + $0x50] sm:$0xf] %vm2557, %v2513
      %2579 = vst.msk [vmem:[%s231 + $0x54] sm:$0xf] %vm2557, %v2514
      %2580 = vst.msk [vmem:[%s231 + $0x58] sm:$0xf] %vm2557, %v2515
      %2581 = vst.msk [vmem:[%s231 + $0x5c] sm:$0xf] %vm2557, %v2516
      %2582 = vst.msk [vmem:[%s231 + $0x60] sm:$0xf] %vm2557, %v2517
      %2583 = vst.msk [vmem:[%s231 + $0x64] sm:$0xf] %vm2557, %v2518
      %2584 = vst.msk [vmem:[%s231 + $0x68] sm:$0xf] %vm2557, %v2519
      %2585 = vst.msk [vmem:[%s231 + $0x6c] sm:$0xf] %vm2557, %v2520
      %2586 = vst.msk [vmem:[%s231 + $0x70] sm:$0xf] %vm2557, %v2521
      %2587 = vst.msk [vmem:[%s231 + $0x74] sm:$0xf] %vm2557, %v2522
      %2588 = vst.msk [vmem:[%s231 + $0x78] sm:$0xf] %vm2557, %v2523
      %2589 = vst.msk [vmem:[%s231 + $0x7c] sm:$0xf] %vm2557, %v2524
      %v2590 = vld [vmem:[%s235] sm:$0x1]
      %v2591 = vsel %vm1947, %v2303, 0.0
      %v2592 = vsel %vm1947, %v2306, 0.0
      %v2593 = vadd.f32 %v2591, %v2592
      %v2594 = vsel %vm1947, %v2311, 0.0
      %v2595 = vadd.f32 %v2593, %v2594
      %v2596 = vsel %vm1947, %v2314, 0.0
      %v2597 = vadd.f32 %v2595, %v2596
      %v2598 = vsel %vm1947, %v2319, 0.0
      %v2599 = vadd.f32 %v2597, %v2598
      %v2600 = vsel %vm1947, %v2322, 0.0
      %v2601 = vadd.f32 %v2599, %v2600
      %v2602 = vsel %vm1947, %v2327, 0.0
      %v2603 = vadd.f32 %v2601, %v2602
      %v2604 = vsel %vm1947, %v2330, 0.0
      %v2605 = vadd.f32 %v2603, %v2604
      %v2606 = vsel %vm1947, %v2335, 0.0
      %v2607 = vadd.f32 %v2605, %v2606
      %v2608 = vsel %vm1947, %v2338, 0.0
      %v2609 = vadd.f32 %v2607, %v2608
      %v2610 = vsel %vm1947, %v2343, 0.0
      %v2611 = vadd.f32 %v2609, %v2610
      %v2612 = vsel %vm1947, %v2346, 0.0
      %v2613 = vadd.f32 %v2611, %v2612
      %v2614 = vsel %vm1947, %v2351, 0.0
      %v2615 = vadd.f32 %v2613, %v2614
      %v2616 = vsel %vm1947, %v2354, 0.0
      %v2617 = vadd.f32 %v2615, %v2616
      %v2618 = vsel %vm1947, %v2359, 0.0
      %v2619 = vadd.f32 %v2617, %v2618
      %v2620 = vsel %vm1947, %v2362, 0.0
      %v2621 = vadd.f32 %v2619, %v2620
      %v2622 = vsel %vm1947, %v2367, 0.0
      %v2623 = vadd.f32 %v2621, %v2622
      %v2624 = vsel %vm1947, %v2370, 0.0
      %v2625 = vadd.f32 %v2623, %v2624
      %v2626 = vsel %vm1947, %v2375, 0.0
      %v2627 = vadd.f32 %v2625, %v2626
      %v2628 = vsel %vm1947, %v2378, 0.0
      %v2629 = vadd.f32 %v2627, %v2628
      %v2630 = vsel %vm1947, %v2383, 0.0
      %v2631 = vadd.f32 %v2629, %v2630
      %v2632 = vsel %vm1947, %v2386, 0.0
      %v2633 = vadd.f32 %v2631, %v2632
      %v2634 = vsel %vm1947, %v2391, 0.0
      %v2635 = vadd.f32 %v2633, %v2634
      %v2636 = vsel %vm1947, %v2394, 0.0
      %v2637 = vadd.f32 %v2635, %v2636
      %v2638 = vsel %vm1947, %v2399, 0.0
      %v2639 = vadd.f32 %v2637, %v2638
      %v2640 = vsel %vm1947, %v2402, 0.0
      %v2641 = vadd.f32 %v2639, %v2640
      %v2642 = vsel %vm1947, %v2407, 0.0
      %v2643 = vadd.f32 %v2641, %v2642
      %v2644 = vsel %vm1947, %v2410, 0.0
      %v2645 = vadd.f32 %v2643, %v2644
      %v2646 = vsel %vm1947, %v2415, 0.0
      %v2647 = vadd.f32 %v2645, %v2646
      %v2648 = vsel %vm1947, %v2418, 0.0
      %v2649 = vadd.f32 %v2647, %v2648
      %v2650 = vsel %vm1947, %v2423, 0.0
      %v2651 = vadd.f32 %v2649, %v2650
      %v2652 = vsel %vm1947, %v2426, 0.0
      %v2653 = vadd.f32 %v2651, %v2652
      %v2654 = vrot.slane %v2653, 4
      %v2655 = vadd.f32 %v2653, %v2654
      %v2656 = vrot.slane %v2655, 2
      %v2657 = vadd.f32 %v2655, %v2656
      %v2658 = vrot.slane %v2657, 1
      %v2659 = vadd.f32 %v2657, %v2658
      %v2660 = vadd.f32 %v2590, %v2659
      %vm2661 = vcmask 24576
      %2662 = vst.msk [vmem:[%s235] sm:$0x1] %vm2661, %v2660
      %v2663 = vld [vmem:[%s238] sm:$0x1]
      %v2664 = vmul.f32 %v2303, %v2303
      %v2665 = vmul.f32 %v2306, %v2306
      %v2666 = vmul.f32 %v2311, %v2311
      %v2667 = vmul.f32 %v2314, %v2314
      %v2668 = vmul.f32 %v2319, %v2319
      %v2669 = vmul.f32 %v2322, %v2322
      %v2670 = vmul.f32 %v2327, %v2327
      %v2671 = vmul.f32 %v2330, %v2330
      %v2672 = vmul.f32 %v2335, %v2335
      %v2673 = vmul.f32 %v2338, %v2338
      %v2674 = vmul.f32 %v2343, %v2343
      %v2675 = vmul.f32 %v2346, %v2346
      %v2676 = vmul.f32 %v2351, %v2351
      %v2677 = vmul.f32 %v2354, %v2354
      %v2678 = vmul.f32 %v2359, %v2359
      %v2679 = vmul.f32 %v2362, %v2362
      %v2680 = vmul.f32 %v2367, %v2367
      %v2681 = vmul.f32 %v2370, %v2370
      %v2682 = vmul.f32 %v2375, %v2375
      %v2683 = vmul.f32 %v2378, %v2378
      %v2684 = vmul.f32 %v2383, %v2383
      %v2685 = vmul.f32 %v2386, %v2386
      %v2686 = vmul.f32 %v2391, %v2391
      %v2687 = vmul.f32 %v2394, %v2394
      %v2688 = vmul.f32 %v2399, %v2399
      %v2689 = vmul.f32 %v2402, %v2402
      %v2690 = vmul.f32 %v2407, %v2407
      %v2691 = vmul.f32 %v2410, %v2410
      %v2692 = vmul.f32 %v2415, %v2415
      %v2693 = vmul.f32 %v2418, %v2418
      %v2694 = vmul.f32 %v2423, %v2423
      %v2695 = vmul.f32 %v2426, %v2426
      %v2696 = vsel %vm1947, %v2664, 0.0
      %v2697 = vsel %vm1947, %v2665, 0.0
      %v2698 = vadd.f32 %v2696, %v2697
      %v2699 = vsel %vm1947, %v2666, 0.0
      %v2700 = vadd.f32 %v2698, %v2699
      %v2701 = vsel %vm1947, %v2667, 0.0
      %v2702 = vadd.f32 %v2700, %v2701
      %v2703 = vsel %vm1947, %v2668, 0.0
      %v2704 = vadd.f32 %v2702, %v2703
      %v2705 = vsel %vm1947, %v2669, 0.0
      %v2706 = vadd.f32 %v2704, %v2705
      %v2707 = vsel %vm1947, %v2670, 0.0
      %v2708 = vadd.f32 %v2706, %v2707
      %v2709 = vsel %vm1947, %v2671, 0.0
      %v2710 = vadd.f32 %v2708, %v2709
      %v2711 = vsel %vm1947, %v2672, 0.0
      %v2712 = vadd.f32 %v2710, %v2711
      %v2713 = vsel %vm1947, %v2673, 0.0
      %v2714 = vadd.f32 %v2712, %v2713
      %v2715 = vsel %vm1947, %v2674, 0.0
      %v2716 = vadd.f32 %v2714, %v2715
      %v2717 = vsel %vm1947, %v2675, 0.0
      %v2718 = vadd.f32 %v2716, %v2717
      %v2719 = vsel %vm1947, %v2676, 0.0
      %v2720 = vadd.f32 %v2718, %v2719
      %v2721 = vsel %vm1947, %v2677, 0.0
      %v2722 = vadd.f32 %v2720, %v2721
      %v2723 = vsel %vm1947, %v2678, 0.0
      %v2724 = vadd.f32 %v2722, %v2723
      %v2725 = vsel %vm1947, %v2679, 0.0
      %v2726 = vadd.f32 %v2724, %v2725
      %v2727 = vsel %vm1947, %v2680, 0.0
      %v2728 = vadd.f32 %v2726, %v2727
      %v2729 = vsel %vm1947, %v2681, 0.0
      %v2730 = vadd.f32 %v2728, %v2729
      %v2731 = vsel %vm1947, %v2682, 0.0
      %v2732 = vadd.f32 %v2730, %v2731
      %v2733 = vsel %vm1947, %v2683, 0.0
      %v2734 = vadd.f32 %v2732, %v2733
      %v2735 = vsel %vm1947, %v2684, 0.0
      %v2736 = vadd.f32 %v2734, %v2735
      %v2737 = vsel %vm1947, %v2685, 0.0
      %v2738 = vadd.f32 %v2736, %v2737
      %v2739 = vsel %vm1947, %v2686, 0.0
      %v2740 = vadd.f32 %v2738, %v2739
      %v2741 = vsel %vm1947, %v2687, 0.0
      %v2742 = vadd.f32 %v2740, %v2741
      %v2743 = vsel %vm1947, %v2688, 0.0
      %v2744 = vadd.f32 %v2742, %v2743
      %v2745 = vsel %vm1947, %v2689, 0.0
      %v2746 = vadd.f32 %v2744, %v2745
      %v2747 = vsel %vm1947, %v2690, 0.0
      %v2748 = vadd.f32 %v2746, %v2747
      %v2749 = vsel %vm1947, %v2691, 0.0
      %v2750 = vadd.f32 %v2748, %v2749
      %v2751 = vsel %vm1947, %v2692, 0.0
      %v2752 = vadd.f32 %v2750, %v2751
      %v2753 = vsel %vm1947, %v2693, 0.0
      %v2754 = vadd.f32 %v2752, %v2753
      %v2755 = vsel %vm1947, %v2694, 0.0
      %v2756 = vadd.f32 %v2754, %v2755
      %v2757 = vsel %vm1947, %v2695, 0.0
      %v2758 = vadd.f32 %v2756, %v2757
      %v2759 = vrot.slane %v2758, 4
      %v2760 = vadd.f32 %v2758, %v2759
      %v2761 = vrot.slane %v2760, 2
      %v2762 = vadd.f32 %v2760, %v2761
      %v2763 = vrot.slane %v2762, 1
      %v2764 = vadd.f32 %v2762, %v2763
      %v2765 = vadd.f32 %v2663, %v2764
      %2766 = vst.msk [vmem:[%s238] sm:$0x1] %vm2661, %v2765
      %s2767 = sadd.s32 %s20, %s21
      %p2768 = scmp.lt.s32.totalorder %s2767, 1
      %s2769 = scalar_select %p2768, %s2767, 1
      %s2770 = smul.addr %s2769, 32
      %s2771 = smul.addr %s2770, 4
      %s2772 = scalar_lea.vmem %s2, %s2771
      %p2773 = scmp.lt.s32.totalorder %s20, 1
      %s2774 = scalar_select %p2773, %s20, 1
      %s2775 = scalar_lea.vmem %s3, %s2774
      %p2776 = scmp.lt.s32.totalorder %s20, 1
      %s2777 = scalar_select %p2776, %s20, 1
      %s2778 = scalar_lea.vmem %s4, %s2777
      // Predicated region
      $region33: #{basic_block_forward.3} parent=27 // pred_check
        %p2779 = pneg %p97
      $region34: #{basic_block_forward.3} parent=27 // pred_check_branch
        %2781 = sbr.rel (%p2779) target = $region36
      $region35: #{basic_block_forward.3} parent=27 // pred_region
        %s2782 = sadd.s32 %s20, %s21
      $region36: #{basic_block_forward.3} parent=27 // pred_fallthru
        _
      // Predicated region
      $region37: #{basic_block_forward.3} parent=27 // pred_check
        %p2783 = pneg %p123
      $region38: #{basic_block_forward.3} parent=27 // pred_check_branch
        %2785 = sbr.rel (%p2783) target = $region40
      $region39: #{basic_block_forward.3} parent=27 // pred_region
        _
      $region40: #{basic_block_forward.3} parent=27 // pred_fallthru
        _
      // Predicated region
      $region41: #{basic_block_forward.3} parent=27 // pred_check
        %p2786 = pneg %p149
      $region42: #{basic_block_forward.3} parent=27 // pred_check_branch
        %2788 = sbr.rel (%p2786) target = $region44
      $region43: #{basic_block_forward.3} parent=27 // pred_region
        _
      $region44: #{basic_block_forward.3} parent=27 // pred_fallthru
        _
    $region28: #{basic_block_forward.3} parent=5 // pred_fallthru
      _
    %p2789 = scmp.le.s32.totalorder 2, %s11
    // Predicated region
    $region45: #{basic_block_forward.3} parent=5 // pred_check
      %p2790 = pneg %p2789
    $region46: #{basic_block_forward.3} parent=5 // pred_check_branch
      %2792 = sbr.rel (%p2790) target = $region48
    $region47: #{basic_block_forward.3} parent=5 // pred_region
      %s2793 = ssub.s32 %s11, 2
      // Predicated region
      $region49: #{basic_block_forward.3} parent=47 // pred_check
        %p2794 = pneg %p103
      $region50: #{basic_block_forward.3} parent=47 // pred_check_branch
        %2796 = sbr.rel (%p2794) target = $region52
      $region51: #{basic_block_forward.3} parent=47 // pred_region
        %s2797 = sadd.s32 %s22, %s23
        %p2798 = scmp.lt.s32.totalorder %s2797, 1
        %s2799 = scalar_select %p2798, %s2797, 1
        %s2800 = smul.addr %s2799, 32
        %s2801 = smul.addr %s2800, 4
        %s2802 = scalar_lea.vmem %s2, %s2801
      $region52: #{basic_block_forward.3} parent=47 // pred_fallthru
        _
      // Predicated region
      $region53: #{basic_block_forward.3} parent=47 // pred_check
        %p2803 = pneg %p129
      $region54: #{basic_block_forward.3} parent=47 // pred_check_branch
        %2805 = sbr.rel (%p2803) target = $region56
      $region55: #{basic_block_forward.3} parent=47 // pred_region
        %p2806 = scmp.lt.s32.totalorder %s22, 1
        %s2807 = scalar_select %p2806, %s22, 1
        %s2808 = scalar_lea.vmem %s3, %s2807
      $region56: #{basic_block_forward.3} parent=47 // pred_fallthru
        _
      // Predicated region
      $region57: #{basic_block_forward.3} parent=47 // pred_check
        %p2809 = pneg %p155
      $region58: #{basic_block_forward.3} parent=47 // pred_check_branch
        %2811 = sbr.rel (%p2809) target = $region60
      $region59: #{basic_block_forward.3} parent=47 // pred_region
        %p2812 = scmp.lt.s32.totalorder %s22, 1
        %s2813 = scalar_select %p2812, %s22, 1
        %s2814 = scalar_lea.vmem %s4, %s2813
      $region60: #{basic_block_forward.3} parent=47 // pred_fallthru
        _
    $region48: #{basic_block_forward.3} parent=5 // pred_fallthru
      _
  $region6: #{basic_block_forward.3} parent=0 // loop_footer
    %s15 = sadd.s32 1, %s11
  $region7: #{basic_block_forward.3} parent=0 // loop_footer_branch
    %10 = sbr.rel target = $region3
  $region8: #{basic_block_forward.3} parent=0 // loop_exit
    _

// kernel: basic_block_forward.4
$region0: #{basic_block_forward.4}
  #allocation0 [shape = 'u32[]', space=smem, size = 0x4, offset = 0x4, fixed_abs, tag = 'smem constant byte address 0x4 - core index']
  #allocation1 [shape = 'u32[144,128]{1,0:T(1,128)}', space=vmem, size = 0x12000, scoped, tag = 'internal scratch']
  #allocation2 [shape = 'f32[18,18,4]{2,1,0:T(8,128)}', space=vmem, size = 0x36000, scoped, tag = 'scratch operand']
  %s0 = inlined_call_operand.vmem [shape: bf16[2,256,4], index: 0, kind: input, shape index: {}]
  %s1 = inlined_call_operand.vmem [shape: f32[1,4], index: 1, kind: input, shape index: {}]
  %s2 = inlined_call_operand.vmem [shape: f32[1,4], index: 2, kind: input, shape index: {}]
  %s3 = inlined_call_operand.vmem [shape: bf16[36,4], index: 3, kind: input, shape index: {}]
  %s4 = inlined_call_operand.vmem [shape: bf16[2,256,4], index: 4, kind: output, shape index: {0}]
  %s5 = inlined_call_operand.vmem [shape: f32[2,1,4], index: 5, kind: output, shape index: {1}]
  %s6 = inlined_call_operand.vmem [shape: f32[2,1,4], index: 6, kind: output, shape index: {2}]
  %7 = xla_tuple %s4, %s5, %s6
  %s8 = sld [smem:[#allocation0]]
  $region69: #{basic_block_forward.4} parent=0
    _
  %s10 = ssub.s32 1, %s8
  %s11 = scalar_select 0, %s10, %s8
  loop: start=0, step=1, limit=4
  $region2: #{basic_block_forward.4} parent=0 // loop_pre_header
    _
  $region3: #{basic_block_forward.4} parent=0 // loop_header
    %s13 = sphi 0, %s17
    %p14 = scmp.ge.s32.totalorder %s13, 4
    %s20 = sphi 0, %s32
    %s21 = sphi 0, %s28
    %s22 = sphi 0, %s20
    %s23 = sphi 0, %s21
    %s24 = sphi 0, %s22
    %s25 = sphi 0, %s23
    %s37 = sphi 0, %s39
    %s40 = sphi 0, %s37
    %s41 = sphi 0, %s40
    %s57 = sphi 0, %s41
    %s61 = sphi 0, %s61
    %s63 = sphi 0, %s61
    %s64 = sphi 0, %s63
    %s78 = sphi 0, %s64
    %s82 = sphi 0, %s82
    %s84 = sphi 0, %s82
    %s85 = sphi 0, %s84
    %s99 = sphi 0, %s85
    %s103 = sphi 0, %s103
    %s105 = sphi 0, %s103
    %s106 = sphi 0, %s105
    %s120 = sphi 0, %s106
    %s128 = sphi 0, %s130
    %s131 = sphi 0, %s128
    %s132 = sphi 0, %s131
    %s148 = sphi 0, %s132
    %s154 = sphi 0, %s156
    %s157 = sphi 0, %s154
    %s158 = sphi 0, %s157
    %s174 = sphi 0, %s158
    %s180 = sphi 0, %s182
    %s183 = sphi 0, %s180
    %s184 = sphi 0, %s183
    %s200 = sphi 0, %s184
  $region4: #{basic_block_forward.4} parent=0 // loop_header_branch
    %16 = sbr.rel (%p14) target = $region8
  $region5: #{basic_block_forward.4} parent=0 // loop_body
    %s18 = ssub.s32 %s13, 1
    %s19 = ssub.s32 %s13, 2
    %s26 = sadd.s32 1, %s21
    %p27 = scmp.ge.s32.totalorder %s26, 1
    %s28 = scalar_select %p27, 0, %s26
    %s29 = sadd.s32 1, %s20
    %s30 = scalar_select %p27, %s29, %s20
    %p31 = scmp.ge.s32.totalorder %s30, 2
    %s32 = scalar_select %p31, 0, %s30
    %s33 = sadd.s32 %s20, %s21
    %s34 = sadd.s32 %s32, %s28
    %s35 = ssub.s32 %s33, %s34
    %p36 = scmp.eq.s32.totalorder %s35, 0
    %s38 = sadd.s32 %s37, 1
    %s39 = scalar_select %p36, %s37, %s38
    %p42 = pneg %p36
    %p43 = scmp.eq.s32.totalorder %s13, 1
    %p44 = por %p42, %p43
    %p45 = scmp.ne.s32.totalorder %s37, %s40
    %p46 = scmp.eq.s32.totalorder %s13, 0
    %p47 = por %p45, %p46
    %p48 = scmp.ne.s32.totalorder %s37, %s40
    %p49 = scmp.eq.s32.totalorder %s18, 1
    %p50 = por %p48, %p49
    %p51 = scmp.ne.s32.totalorder %s40, %s41
    %p52 = scmp.eq.s32.totalorder %s18, 0
    %p53 = por %p51, %p52
    %p54 = scmp.ne.s32.totalorder %s40, %s41
    %p55 = scmp.eq.s32.totalorder %s19, 1
    %p56 = por %p54, %p55
    %p58 = scmp.ne.s32.totalorder %s41, %s57
    %p59 = scmp.eq.s32.totalorder %s19, 0
    %p60 = por %p58, %p59
    %s62 = sadd.s32 %s61, 1
    %p65 = scmp.eq.s32.totalorder %s13, 1
    %p66 = scmp.ne.s32.totalorder %s61, %s63
    %p67 = scmp.eq.s32.totalorder %s13, 0
    %p68 = por %p66, %p67
    %p69 = scmp.ne.s32.totalorder %s61, %s63
    %p70 = scmp.eq.s32.totalorder %s18, 1
    %p71 = por %p69, %p70
    %p72 = scmp.ne.s32.totalorder %s63, %s64
    %p73 = scmp.eq.s32.totalorder %s18, 0
    %p74 = por %p72, %p73
    %p75 = scmp.ne.s32.totalorder %s63, %s64
    %p76 = scmp.eq.s32.totalorder %s19, 1
    %p77 = por %p75, %p76
    %p79 = scmp.ne.s32.totalorder %s64, %s78
    %p80 = scmp.eq.s32.totalorder %s19, 0
    %p81 = por %p79, %p80
    %s83 = sadd.s32 %s82, 1
    %p86 = scmp.eq.s32.totalorder %s13, 1
    %p87 = scmp.ne.s32.totalorder %s82, %s84
    %p88 = scmp.eq.s32.totalorder %s13, 0
    %p89 = por %p87, %p88
    %p90 = scmp.ne.s32.totalorder %s82, %s84
    %p91 = scmp.eq.s32.totalorder %s18, 1
    %p92 = por %p90, %p91
    %p93 = scmp.ne.s32.totalorder %s84, %s85
    %p94 = scmp.eq.s32.totalorder %s18, 0
    %p95 = por %p93, %p94
    %p96 = scmp.ne.s32.totalorder %s84, %s85
    %p97 = scmp.eq.s32.totalorder %s19, 1
    %p98 = por %p96, %p97
    %p100 = scmp.ne.s32.totalorder %s85, %s99
    %p101 = scmp.eq.s32.totalorder %s19, 0
    %p102 = por %p100, %p101
    %s104 = sadd.s32 %s103, 1
    %p107 = scmp.eq.s32.totalorder %s13, 1
    %p108 = scmp.ne.s32.totalorder %s103, %s105
    %p109 = scmp.eq.s32.totalorder %s13, 0
    %p110 = por %p108, %p109
    %p111 = scmp.ne.s32.totalorder %s103, %s105
    %p112 = scmp.eq.s32.totalorder %s18, 1
    %p113 = por %p111, %p112
    %p114 = scmp.ne.s32.totalorder %s105, %s106
    %p115 = scmp.eq.s32.totalorder %s18, 0
    %p116 = por %p114, %p115
    %p117 = scmp.ne.s32.totalorder %s105, %s106
    %p118 = scmp.eq.s32.totalorder %s19, 1
    %p119 = por %p117, %p118
    %p121 = scmp.ne.s32.totalorder %s106, %s120
    %p122 = scmp.eq.s32.totalorder %s19, 0
    %p123 = por %p121, %p122
    %s124 = sadd.s32 %s20, %s21
    %s125 = sadd.s32 %s32, %s28
    %s126 = ssub.s32 %s124, %s125
    %p127 = scmp.eq.s32.totalorder %s126, 0
    %s129 = sadd.s32 %s128, 1
    %s130 = scalar_select %p127, %s128, %s129
    %p133 = pneg %p127
    %p134 = scmp.eq.s32.totalorder %s13, 1
    %p135 = por %p133, %p134
    %p136 = scmp.ne.s32.totalorder %s128, %s131
    %p137 = scmp.eq.s32.totalorder %s13, 0
    %p138 = por %p136, %p137
    %p139 = scmp.ne.s32.totalorder %s128, %s131
    %p140 = scmp.eq.s32.totalorder %s18, 1
    %p141 = por %p139, %p140
    %p142 = scmp.ne.s32.totalorder %s131, %s132
    %p143 = scmp.eq.s32.totalorder %s18, 0
    %p144 = por %p142, %p143
    %p145 = scmp.ne.s32.totalorder %s131, %s132
    %p146 = scmp.eq.s32.totalorder %s19, 1
    %p147 = por %p145, %p146
    %p149 = scmp.ne.s32.totalorder %s132, %s148
    %p150 = scmp.eq.s32.totalorder %s19, 0
    %p151 = por %p149, %p150
    %s152 = ssub.s32 %s20, %s32
    %p153 = scmp.eq.s32.totalorder %s152, 0
    %s155 = sadd.s32 %s154, 1
    %s156 = scalar_select %p153, %s154, %s155
    %p159 = pneg %p153
    %p160 = scmp.eq.s32.totalorder %s13, 1
    %p161 = por %p159, %p160
    %p162 = scmp.ne.s32.totalorder %s154, %s157
    %p163 = scmp.eq.s32.totalorder %s13, 0
    %p164 = por %p162, %p163
    %p165 = scmp.ne.s32.totalorder %s154, %s157
    %p166 = scmp.eq.s32.totalorder %s18, 1
    %p167 = por %p165, %p166
    %p168 = scmp.ne.s32.totalorder %s157, %s158
    %p169 = scmp.eq.s32.totalorder %s18, 0
    %p170 = por %p168, %p169
    %p171 = scmp.ne.s32.totalorder %s157, %s158
    %p172 = scmp.eq.s32.totalorder %s19, 1
    %p173 = por %p171, %p172
    %p175 = scmp.ne.s32.totalorder %s158, %s174
    %p176 = scmp.eq.s32.totalorder %s19, 0
    %p177 = por %p175, %p176
    %s178 = ssub.s32 %s20, %s32
    %p179 = scmp.eq.s32.totalorder %s178, 0
    %s181 = sadd.s32 %s180, 1
    %s182 = scalar_select %p179, %s180, %s181
    %p185 = pneg %p179
    %p186 = scmp.eq.s32.totalorder %s13, 1
    %p187 = por %p185, %p186
    %p188 = scmp.ne.s32.totalorder %s180, %s183
    %p189 = scmp.eq.s32.totalorder %s13, 0
    %p190 = por %p188, %p189
    %p191 = scmp.ne.s32.totalorder %s180, %s183
    %p192 = scmp.eq.s32.totalorder %s18, 1
    %p193 = por %p191, %p192
    %p194 = scmp.ne.s32.totalorder %s183, %s184
    %p195 = scmp.eq.s32.totalorder %s18, 0
    %p196 = por %p194, %p195
    %p197 = scmp.ne.s32.totalorder %s183, %s184
    %p198 = scmp.eq.s32.totalorder %s19, 1
    %p199 = por %p197, %p198
    %p201 = scmp.ne.s32.totalorder %s184, %s200
    %p202 = scmp.eq.s32.totalorder %s19, 0
    %p203 = por %p201, %p202
    %p204 = scmp.le.s32.totalorder 1, %s13
    %p205 = scmp.lt.s32.totalorder %s13, 3
    %p206 = pnand %p204, %p205
    %p207 = pneg %p206
    // Predicated region
    $region9: #{basic_block_forward.4} parent=5 // pred_check
      _
    $region10: #{basic_block_forward.4} parent=5 // pred_check_branch
      %209 = sbr.rel (%p206) target = $region12
    $region11: #{basic_block_forward.4} parent=5 // pred_region
      %s210 = ssub.s32 %s13, 1
      // Predicated region
      $region13: #{basic_block_forward.4} parent=11 // pred_check
        %p211 = pneg %p74
      $region14: #{basic_block_forward.4} parent=11 // pred_check_branch
        %213 = sbr.rel (%p211) target = $region16
      $region15: #{basic_block_forward.4} parent=11 // pred_region
        _
      $region16: #{basic_block_forward.4} parent=11 // pred_fallthru
        _
      // Predicated region
      $region17: #{basic_block_forward.4} parent=11 // pred_check
        %p214 = pneg %p95
      $region18: #{basic_block_forward.4} parent=11 // pred_check_branch
        %216 = sbr.rel (%p214) target = $region20
      $region19: #{basic_block_forward.4} parent=11 // pred_region
        _
      $region20: #{basic_block_forward.4} parent=11 // pred_fallthru
        _
      // Predicated region
      $region21: #{basic_block_forward.4} parent=11 // pred_check
        %p217 = pneg %p116
      $region22: #{basic_block_forward.4} parent=11 // pred_check_branch
        %219 = sbr.rel (%p217) target = $region24
      $region23: #{basic_block_forward.4} parent=11 // pred_region
        _
      $region24: #{basic_block_forward.4} parent=11 // pred_fallthru
        _
    $region12: #{basic_block_forward.4} parent=5 // pred_fallthru
      _
    %p220 = scmp.lt.s32.totalorder %s13, 2
    // Predicated region
    $region25: #{basic_block_forward.4} parent=5 // pred_check
      %p221 = pneg %p220
    $region26: #{basic_block_forward.4} parent=5 // pred_check_branch
      %223 = sbr.rel (%p221) target = $region28
    $region27: #{basic_block_forward.4} parent=5 // pred_region
      // Predicated region
      $region29: #{basic_block_forward.4} parent=27 // pred_check
        %p224 = pneg %p47
      $region30: #{basic_block_forward.4} parent=27 // pred_check_branch
        %226 = sbr.rel (%p224) target = $region32
      $region31: #{basic_block_forward.4} parent=27 // pred_region
        %s227 = sadd.s32 %s20, %s21
        %p228 = scmp.lt.s32.totalorder %s227, 1
        %s229 = scalar_select %p228, %s227, 1
        %s230 = smul.addr %s229, 32
        %s231 = smul.addr %s230, 4
        %s232 = scalar_lea.vmem %s0, %s231
        %s233 = sadd.s32 %s20, %s21
      $region32: #{basic_block_forward.4} parent=27 // pred_fallthru
        _
    $region28: #{basic_block_forward.4} parent=5 // pred_fallthru
      _
    %p234 = scmp.le.s32.totalorder 1, %s13
    %p235 = scmp.lt.s32.totalorder %s13, 3
    %p236 = pnand %p234, %p235
    %p237 = pneg %p236
    // Predicated region
    $region33: #{basic_block_forward.4} parent=5 // pred_check
      _
    $region34: #{basic_block_forward.4} parent=5 // pred_check_branch
      %239 = sbr.rel (%p236) target = $region36
    $region35: #{basic_block_forward.4} parent=5 // pred_region
      %s240 = ssub.s32 %s13, 1
      %s241 = sadd.s32 %s22, %s23
      %p242 = scmp.lt.s32.totalorder %s241, 1
      %s243 = scalar_select %p242, %s241, 1
      %s244 = smul.addr %s243, 32
      %s245 = smul.addr %s244, 4
      %s246 = scalar_lea.vmem %s0, %s245
      %p247 = pneg %p53
      %p248 = pneg %p50
      %p249 = pneg %p74
      %p250 = pneg %p71
      %p251 = pneg %p95
      %p252 = pneg %p92
      %p253 = pneg %p116
      %p254 = pneg %p113
      %p255 = pneg %p144
      %p256 = pneg %p141
      %s257 = sadd.s32 %s22, %s23
      %p258 = scmp.lt.s32.totalorder %s257, 1
      %s259 = scalar_select %p258, %s257, 1
      %s260 = smul.addr %s259, 32
      %s261 = smul.addr %s260, 4
      %s262 = scalar_lea.vmem %s4, %s261
      %p263 = pneg %p170
      %p264 = pneg %p167
      %p265 = scmp.lt.s32.totalorder %s22, 1
      %s266 = scalar_select %p265, %s22, 1
      %s267 = scalar_lea.vmem %s5, %s266
      %p268 = pneg %p196
      %p269 = pneg %p193
      %p270 = scmp.lt.s32.totalorder %s22, 1
      %s271 = scalar_select %p270, %s22, 1
      %s272 = scalar_lea.vmem %s6, %s271
      %s273 = sadd.s32 %s22, %s23
      %p274 = scmp.lt.s32.totalorder %s273, 1
      %s275 = scalar_select %p274, %s273, 1
      %s276 = smul.addr %s275, 32
      %s277 = smul.addr %s276, 4
      %s278 = scalar_lea.vmem %s0, %s277
      %s279 = sadd.s32 %s22, %s23
      %s280 = sadd.s32 %s22, %s23
      %p281 = scmp.lt.s32.totalorder %s280, 1
      %s282 = scalar_select %p281, %s280, 1
      %s283 = smul.addr %s282, 32
      %s284 = smul.addr %s283, 4
      %s285 = scalar_lea.vmem %s4, %s284
      %s286 = sadd.s32 %s22, %s23
      %p287 = scmp.lt.s32.totalorder %s22, 1
      %s288 = scalar_select %p287, %s22, 1
      %s289 = scalar_lea.vmem %s5, %s288
      %p290 = scmp.lt.s32.totalorder %s22, 1
      %s291 = scalar_select %p290, %s22, 1
      %s292 = scalar_lea.vmem %s6, %s291
      %p294 = scmp.eq.s32.totalorder %s23, 0
      // Predicated region
      $region37: #{basic_block_forward.4} parent=35 // pred_check
        %p295 = pneg %p294
      $region38: #{basic_block_forward.4} parent=35 // pred_check_branch
        %297 = sbr.rel (%p295) target = $region40
      $region39: #{basic_block_forward.4} parent=35 // pred_region
        %vm298 = vcmask 24576
        %299 = vst.msk [vmem:[%s289] sm:$0x1] %vm298, 0.0
        %300 = vst.msk [vmem:[%s292] sm:$0x1] %vm298, 0.0
        %vm301 = vcmask 31744
        %302 = vst.msk [vmem:[#allocation2] sm:$0xff] %vm301, 0.0
        %303 = vst.msk [vmem:[#allocation2 + $0x8] sm:$0xff] %vm301, 0.0
        %vm304 = vcmask 25600
        %305 = vst.msk [vmem:[#allocation2 + $0x10] sm:$0x3] %vm304, 0.0
        %306 = vst.msk [vmem:[#allocation2 + $0x18] sm:$0xff] %vm301, 0.0
        %307 = vst.msk [vmem:[#allocation2 + $0x20] sm:$0xff] %vm301, 0.0
        %308 = vst.msk [vmem:[#allocation2 + $0x28] sm:$0x3] %vm304, 0.0
        %309 = vst.msk [vmem:[#allocation2 + $0x30] sm:$0xff] %vm301, 0.0
        %310 = vst.msk [vmem:[#allocation2 + $0x38] sm:$0xff] %vm301, 0.0
        %311 = vst.msk [vmem:[#allocation2 + $0x40] sm:$0x3] %vm304, 0.0
        %312 = vst.msk [vmem:[#allocation2 + $0x48] sm:$0xff] %vm301, 0.0
        %313 = vst.msk [vmem:[#allocation2 + $0x50] sm:$0xff] %vm301, 0.0
        %314 = vst.msk [vmem:[#allocation2 + $0x58] sm:$0x3] %vm304, 0.0
        %315 = vst.msk [vmem:[#allocation2 + $0x60] sm:$0xff] %vm301, 0.0
        %316 = vst.msk [vmem:[#allocation2 + $0x68] sm:$0xff] %vm301, 0.0
        %317 = vst.msk [vmem:[#allocation2 + $0x70] sm:$0x3] %vm304, 0.0
        %318 = vst.msk [vmem:[#allocation2 + $0x78] sm:$0xff] %vm301, 0.0
        %319 = vst.msk [vmem:[#allocation2 + $0x80] sm:$0xff] %vm301, 0.0
        %320 = vst.msk [vmem:[#allocation2 + $0x88] sm:$0x3] %vm304, 0.0
        %321 = vst.msk [vmem:[#allocation2 + $0x90] sm:$0xff] %vm301, 0.0
        %322 = vst.msk [vmem:[#allocation2 + $0x98] sm:$0xff] %vm301, 0.0
        %323 = vst.msk [vmem:[#allocation2 + $0xa0] sm:$0x3] %vm304, 0.0
        %324 = vst.msk [vmem:[#allocation2 + $0xa8] sm:$0xff] %vm301, 0.0
        %325 = vst.msk [vmem:[#allocation2 + $0xb0] sm:$0xff] %vm301, 0.0
        %326 = vst.msk [vmem:[#allocation2 + $0xb8] sm:$0x3] %vm304, 0.0
        %327 = vst.msk [vmem:[#allocation2 + $0xc0] sm:$0xff] %vm301, 0.0
        %328 = vst.msk [vmem:[#allocation2 + $0xc8] sm:$0xff] %vm301, 0.0
        %329 = vst.msk [vmem:[#allocation2 + $0xd0] sm:$0x3] %vm304, 0.0
        %330 = vst.msk [vmem:[#allocation2 + $0xd8] sm:$0xff] %vm301, 0.0
        %331 = vst.msk [vmem:[#allocation2 + $0xe0] sm:$0xff] %vm301, 0.0
        %332 = vst.msk [vmem:[#allocation2 + $0xe8] sm:$0x3] %vm304, 0.0
        %333 = vst.msk [vmem:[#allocation2 + $0xf0] sm:$0xff] %vm301, 0.0
        %334 = vst.msk [vmem:[#allocation2 + $0xf8] sm:$0xff] %vm301, 0.0
        %335 = vst.msk [vmem:[#allocation2 + $0x100] sm:$0x3] %vm304, 0.0
        %336 = vst.msk [vmem:[#allocation2 + $0x108] sm:$0xff] %vm301, 0.0
        %337 = vst.msk [vmem:[#allocation2 + $0x110] sm:$0xff] %vm301, 0.0
        %338 = vst.msk [vmem:[#allocation2 + $0x118] sm:$0x3] %vm304, 0.0
        %339 = vst.msk [vmem:[#allocation2 + $0x120] sm:$0xff] %vm301, 0.0
        %340 = vst.msk [vmem:[#allocation2 + $0x128] sm:$0xff] %vm301, 0.0
        %341 = vst.msk [vmem:[#allocation2 + $0x130] sm:$0x3] %vm304, 0.0
        %342 = vst.msk [vmem:[#allocation2 + $0x138] sm:$0xff] %vm301, 0.0
        %343 = vst.msk [vmem:[#allocation2 + $0x140] sm:$0xff] %vm301, 0.0
        %344 = vst.msk [vmem:[#allocation2 + $0x148] sm:$0x3] %vm304, 0.0
        %345 = vst.msk [vmem:[#allocation2 + $0x150] sm:$0xff] %vm301, 0.0
        %346 = vst.msk [vmem:[#allocation2 + $0x158] sm:$0xff] %vm301, 0.0
        %347 = vst.msk [vmem:[#allocation2 + $0x160] sm:$0x3] %vm304, 0.0
        %348 = vst.msk [vmem:[#allocation2 + $0x168] sm:$0xff] %vm301, 0.0
        %349 = vst.msk [vmem:[#allocation2 + $0x170] sm:$0xff] %vm301, 0.0
        %350 = vst.msk [vmem:[#allocation2 + $0x178] sm:$0x3] %vm304, 0.0
        %351 = vst.msk [vmem:[#allocation2 + $0x180] sm:$0xff] %vm301, 0.0
        %352 = vst.msk [vmem:[#allocation2 + $0x188] sm:$0xff] %vm301, 0.0
        %353 = vst.msk [vmem:[#allocation2 + $0x190] sm:$0x3] %vm304, 0.0
        %354 = vst.msk [vmem:[#allocation2 + $0x198] sm:$0xff] %vm301, 0.0
        %355 = vst.msk [vmem:[#allocation2 + $0x1a0] sm:$0xff] %vm301, 0.0
        %356 = vst.msk [vmem:[#allocation2 + $0x1a8] sm:$0x3] %vm304, 0.0
      $region40: #{basic_block_forward.4} parent=35 // pred_fallthru
        _
      %v357 = vld [vmem:[%s278] sm:$0xf]
      %v358 = vld [vmem:[%s278 + $0x4] sm:$0xf]
      %v359 = vld [vmem:[%s278 + $0x8] sm:$0xf]
      %v360 = vld [vmem:[%s278 + $0xc] sm:$0xf]
      %v361 = vld [vmem:[%s278 + $0x10] sm:$0xf]
      %v362 = vld [vmem:[%s278 + $0x14] sm:$0xf]
      %v363 = vld [vmem:[%s278 + $0x18] sm:$0xf]
      %v364 = vld [vmem:[%s278 + $0x1c] sm:$0xf]
      %v365 = vld [vmem:[%s278 + $0x20] sm:$0xf]
      %v366 = vld [vmem:[%s278 + $0x24] sm:$0xf]
      %v367 = vld [vmem:[%s278 + $0x28] sm:$0xf]
      %v368 = vld [vmem:[%s278 + $0x2c] sm:$0xf]
      %v369 = vld [vmem:[%s278 + $0x30] sm:$0xf]
      %v370 = vld [vmem:[%s278 + $0x34] sm:$0xf]
      %v371 = vld [vmem:[%s278 + $0x38] sm:$0xf]
      %v372 = vld [vmem:[%s278 + $0x3c] sm:$0xf]
      %v373 = vld [vmem:[%s278 + $0x40] sm:$0xf]
      %v374 = vld [vmem:[%s278 + $0x44] sm:$0xf]
      %v375 = vld [vmem:[%s278 + $0x48] sm:$0xf]
      %v376 = vld [vmem:[%s278 + $0x4c] sm:$0xf]
      %v377 = vld [vmem:[%s278 + $0x50] sm:$0xf]
      %v378 = vld [vmem:[%s278 + $0x54] sm:$0xf]
      %v379 = vld [vmem:[%s278 + $0x58] sm:$0xf]
      %v380 = vld [vmem:[%s278 + $0x5c] sm:$0xf]
      %v381 = vld [vmem:[%s278 + $0x60] sm:$0xf]
      %v382 = vld [vmem:[%s278 + $0x64] sm:$0xf]
      %v383 = vld [vmem:[%s278 + $0x68] sm:$0xf]
      %v384 = vld [vmem:[%s278 + $0x6c] sm:$0xf]
      %v385 = vld [vmem:[%s278 + $0x70] sm:$0xf]
      %v386 = vld [vmem:[%s278 + $0x74] sm:$0xf]
      %v387 = vld [vmem:[%s278 + $0x78] sm:$0xf]
      %v388 = vld [vmem:[%s278 + $0x7c] sm:$0xf]
      %v389 = vunpack.c.l.bf16 %v357
      %v390 = vunpack.c.l.bf16 %v358
      %v391 = vunpack.c.l.bf16 %v359
      %v392 = vunpack.c.l.bf16 %v360
      %v393 = vunpack.c.l.bf16 %v361
      %v394 = vunpack.c.l.bf16 %v362
      %v395 = vunpack.c.l.bf16 %v363
      %v396 = vunpack.c.l.bf16 %v364
      %v397 = vunpack.c.l.bf16 %v365
      %v398 = vunpack.c.l.bf16 %v366
      %v399 = vunpack.c.l.bf16 %v367
      %v400 = vunpack.c.l.bf16 %v368
      %v401 = vunpack.c.l.bf16 %v369
      %v402 = vunpack.c.l.bf16 %v370
      %v403 = vunpack.c.l.bf16 %v371
      %v404 = vunpack.c.l.bf16 %v372
      %v405 = vunpack.c.l.bf16 %v373
      %v406 = vunpack.c.l.bf16 %v374
      %v407 = vunpack.c.l.bf16 %v375
      %v408 = vunpack.c.l.bf16 %v376
      %v409 = vunpack.c.l.bf16 %v377
      %v410 = vunpack.c.l.bf16 %v378
      %v411 = vunpack.c.l.bf16 %v379
      %v412 = vunpack.c.l.bf16 %v380
      %v413 = vunpack.c.l.bf16 %v381
      %v414 = vunpack.c.l.bf16 %v382
      %v415 = vunpack.c.l.bf16 %v383
      %v416 = vunpack.c.l.bf16 %v384
      %v417 = vunpack.c.l.bf16 %v385
      %v418 = vunpack.c.l.bf16 %v386
      %v419 = vunpack.c.l.bf16 %v387
      %v420 = vunpack.c.l.bf16 %v388
      %v421 = vld [vmem:[%s1] sm:$0x1]
      %v423 = vlaneseq
      %v424 = vshrl.u32 %v423, 7
      %v425 = vsub.s32 0, %v424
      %v426 = vrot.slane %v421, %v425
      %v428 = vmul.f32 %v389, %v426
      %v429 = vmul.f32 %v390, %v426
      %v430 = vmul.f32 %v391, %v426
      %v431 = vmul.f32 %v392, %v426
      %v432 = vmul.f32 %v393, %v426
      %v433 = vmul.f32 %v394, %v426
      %v434 = vmul.f32 %v395, %v426
      %v435 = vmul.f32 %v396, %v426
      %v436 = vmul.f32 %v397, %v426
      %v437 = vmul.f32 %v398, %v426
      %v438 = vmul.f32 %v399, %v426
      %v439 = vmul.f32 %v400, %v426
      %v440 = vmul.f32 %v401, %v426
      %v441 = vmul.f32 %v402, %v426
      %v442 = vmul.f32 %v403, %v426
      %v443 = vmul.f32 %v404, %v426
      %v444 = vmul.f32 %v405, %v426
      %v445 = vmul.f32 %v406, %v426
      %v446 = vmul.f32 %v407, %v426
      %v447 = vmul.f32 %v408, %v426
      %v448 = vmul.f32 %v409, %v426
      %v449 = vmul.f32 %v410, %v426
      %v450 = vmul.f32 %v411, %v426
      %v451 = vmul.f32 %v412, %v426
      %v452 = vmul.f32 %v413, %v426
      %v453 = vmul.f32 %v414, %v426
      %v454 = vmul.f32 %v415, %v426
      %v455 = vmul.f32 %v416, %v426
      %v456 = vmul.f32 %v417, %v426
      %v457 = vmul.f32 %v418, %v426
      %v458 = vmul.f32 %v419, %v426
      %v459 = vmul.f32 %v420, %v426
      %v460 = vld [vmem:[%s2] sm:$0x1]
      %v462 = vlaneseq
      %v463 = vshrl.u32 %v462, 7
      %v464 = vsub.s32 0, %v463
      %v465 = vrot.slane %v460, %v464
      %v467 = vadd.f32 %v428, %v465
      %v468 = vadd.f32 %v429, %v465
      %v469 = vadd.f32 %v430, %v465
      %v470 = vadd.f32 %v431, %v465
      %v471 = vadd.f32 %v432, %v465
      %v472 = vadd.f32 %v433, %v465
      %v473 = vadd.f32 %v434, %v465
      %v474 = vadd.f32 %v435, %v465
      %v475 = vadd.f32 %v436, %v465
      %v476 = vadd.f32 %v437, %v465
      %v477 = vadd.f32 %v438, %v465
      %v478 = vadd.f32 %v439, %v465
      %v479 = vadd.f32 %v440, %v465
      %v480 = vadd.f32 %v441, %v465
      %v481 = vadd.f32 %v442, %v465
      %v482 = vadd.f32 %v443, %v465
      %v483 = vadd.f32 %v444, %v465
      %v484 = vadd.f32 %v445, %v465
      %v485 = vadd.f32 %v446, %v465
      %v486 = vadd.f32 %v447, %v465
      %v487 = vadd.f32 %v448, %v465
      %v488 = vadd.f32 %v449, %v465
      %v489 = vadd.f32 %v450, %v465
      %v490 = vadd.f32 %v451, %v465
      %v491 = vadd.f32 %v452, %v465
      %v492 = vadd.f32 %v453, %v465
      %v493 = vadd.f32 %v454, %v465
      %v494 = vadd.f32 %v455, %v465
      %v495 = vadd.f32 %v456, %v465
      %v496 = vadd.f32 %v457, %v465
      %v497 = vadd.f32 %v458, %v465
      %v498 = vadd.f32 %v459, %v465
      %v499 = vmax.f32 %v467, 0.0
      %v500 = vmax.f32 %v468, 0.0
      %v501 = vmax.f32 %v469, 0.0
      %v502 = vmax.f32 %v470, 0.0
      %v503 = vmax.f32 %v471, 0.0
      %v504 = vmax.f32 %v472, 0.0
      %v505 = vmax.f32 %v473, 0.0
      %v506 = vmax.f32 %v474, 0.0
      %v507 = vmax.f32 %v475, 0.0
      %v508 = vmax.f32 %v476, 0.0
      %v509 = vmax.f32 %v477, 0.0
      %v510 = vmax.f32 %v478, 0.0
      %v511 = vmax.f32 %v479, 0.0
      %v512 = vmax.f32 %v480, 0.0
      %v513 = vmax.f32 %v481, 0.0
      %v514 = vmax.f32 %v482, 0.0
      %v515 = vmax.f32 %v483, 0.0
      %v516 = vmax.f32 %v484, 0.0
      %v517 = vmax.f32 %v485, 0.0
      %v518 = vmax.f32 %v486, 0.0
      %v519 = vmax.f32 %v487, 0.0
      %v520 = vmax.f32 %v488, 0.0
      %v521 = vmax.f32 %v489, 0.0
      %v522 = vmax.f32 %v490, 0.0
      %v523 = vmax.f32 %v491, 0.0
      %v524 = vmax.f32 %v492, 0.0
      %v525 = vmax.f32 %v493, 0.0
      %v526 = vmax.f32 %v494, 0.0
      %v527 = vmax.f32 %v495, 0.0
      %v528 = vmax.f32 %v496, 0.0
      %v529 = vmax.f32 %v497, 0.0
      %v530 = vmax.f32 %v498, 0.0
      %s531 = scalar_lea.vmem [#allocation2], 24
      %vm532 = vcmask 31744
      %533 = vst.msk [vmem:[%s531 + $0x1] sm:$0xff] %vm532, %v499
      %534 = vst.msk [vmem:[%s531 + $0x9] sm:$0xff] %vm532, %v500
      %535 = vst.msk [vmem:[%s531 + $0x19] sm:$0xff] %vm532, %v501
      %536 = vst.msk [vmem:[%s531 + $0x21] sm:$0xff] %vm532, %v502
      %537 = vst.msk [vmem:[%s531 + $0x31] sm:$0xff] %vm532, %v503
      %538 = vst.msk [vmem:[%s531 + $0x39] sm:$0xff] %vm532, %v504
      %539 = vst.msk [vmem:[%s531 + $0x49] sm:$0xff] %vm532, %v505
      %540 = vst.msk [vmem:[%s531 + $0x51] sm:$0xff] %vm532, %v506
      %541 = vst.msk [vmem:[%s531 + $0x61] sm:$0xff] %vm532, %v507
      %542 = vst.msk [vmem:[%s531 + $0x69] sm:$0xff] %vm532, %v508
      %543 = vst.msk [vmem:[%s531 + $0x79] sm:$0xff] %vm532, %v509
      %544 = vst.msk [vmem:[%s531 + $0x81] sm:$0xff] %vm532, %v510
      %545 = vst.msk [vmem:[%s531 + $0x91] sm:$0xff] %vm532, %v511
      %546 = vst.msk [vmem:[%s531 + $0x99] sm:$0xff] %vm532, %v512
      %547 = vst.msk [vmem:[%s531 + $0xa9] sm:$0xff] %vm532, %v513
      %548 = vst.msk [vmem:[%s531 + $0xb1] sm:$0xff] %vm532, %v514
      %549 = vst.msk [vmem:[%s531 + $0xc1] sm:$0xff] %vm532, %v515
      %550 = vst.msk [vmem:[%s531 + $0xc9] sm:$0xff] %vm532, %v516
      %551 = vst.msk [vmem:[%s531 + $0xd9] sm:$0xff] %vm532, %v517
      %552 = vst.msk [vmem:[%s531 + $0xe1] sm:$0xff] %vm532, %v518
      %553 = vst.msk [vmem:[%s531 + $0xf1] sm:$0xff] %vm532, %v519
      %554 = vst.msk [vmem:[%s531 + $0xf9] sm:$0xff] %vm532, %v520
      %555 = vst.msk [vmem:[%s531 + $0x109] sm:$0xff] %vm532, %v521
      %556 = vst.msk [vmem:[%s531 + $0x111] sm:$0xff] %vm532, %v522
      %557 = vst.msk [vmem:[%s531 + $0x121] sm:$0xff] %vm532, %v523
      %558 = vst.msk [vmem:[%s531 + $0x129] sm:$0xff] %vm532, %v524
      %559 = vst.msk [vmem:[%s531 + $0x139] sm:$0xff] %vm532, %v525
      %560 = vst.msk [vmem:[%s531 + $0x141] sm:$0xff] %vm532, %v526
      %561 = vst.msk [vmem:[%s531 + $0x151] sm:$0xff] %vm532, %v527
      %562 = vst.msk [vmem:[%s531 + $0x159] sm:$0xff] %vm532, %v528
      %563 = vst.msk [vmem:[%s531 + $0x169] sm:$0xff] %vm532, %v529
      %564 = vst.msk [vmem:[%s531 + $0x171] sm:$0xff] %vm532, %v530
      %v565 = vld [vmem:[#allocation2] sm:$0xff]
      %v566 = vld [vmem:[#allocation2 + $0x8] sm:$0xff]
      %v567 = vld [vmem:[#allocation2 + $0x18] sm:$0xff]
      %v568 = vld [vmem:[#allocation2 + $0x20] sm:$0xff]
      %v569 = vld [vmem:[#allocation2 + $0x30] sm:$0xff]
      %v570 = vld [vmem:[#allocation2 + $0x38] sm:$0xff]
      %v571 = vld [vmem:[#allocation2 + $0x48] sm:$0xff]
      %v572 = vld [vmem:[#allocation2 + $0x50] sm:$0xff]
      %v573 = vld [vmem:[#allocation2 + $0x60] sm:$0xff]
      %v574 = vld [vmem:[#allocation2 + $0x68] sm:$0xff]
      %v575 = vld [vmem:[#allocation2 + $0x78] sm:$0xff]
      %v576 = vld [vmem:[#allocation2 + $0x80] sm:$0xff]
      %v577 = vld [vmem:[#allocation2 + $0x90] sm:$0xff]
      %v578 = vld [vmem:[#allocation2 + $0x98] sm:$0xff]
      %v579 = vld [vmem:[#allocation2 + $0xa8] sm:$0xff]
      %v580 = vld [vmem:[#allocation2 + $0xb0] sm:$0xff]
      %v581 = vld [vmem:[#allocation2 + $0xc0] sm:$0xff]
      %v582 = vld [vmem:[#allocation2 + $0xc8] sm:$0xff]
      %v583 = vld [vmem:[#allocation2 + $0xd8] sm:$0xff]
      %v584 = vld [vmem:[#allocation2 + $0xe0] sm:$0xff]
      %v585 = vld [vmem:[#allocation2 + $0xf0] sm:$0xff]
      %v586 = vld [vmem:[#allocation2 + $0xf8] sm:$0xff]
      %v587 = vld [vmem:[#allocation2 + $0x108] sm:$0xff]
      %v588 = vld [vmem:[#allocation2 + $0x110] sm:$0xff]
      %v589 = vld [vmem:[#allocation2 + $0x120] sm:$0xff]
      %v590 = vld [vmem:[#allocation2 + $0x128] sm:$0xff]
      %v591 = vld [vmem:[#allocation2 + $0x138] sm:$0xff]
      %v592 = vld [vmem:[#allocation2 + $0x140] sm:$0xff]
      %v593 = vld [vmem:[#allocation2 + $0x150] sm:$0xff]
      %v594 = vld [vmem:[#allocation2 + $0x158] sm:$0xff]
      %v595 = vld [vmem:[#allocation2 + $0x168] sm:$0xff]
      %v596 = vld [vmem:[#allocation2 + $0x170] sm:$0xff]
      %v597 = vld [vmem:[#allocation2 + $0x1] sm:$0xff]
      %v598 = vld [vmem:[#allocation2 + $0x9] sm:$0xff]
      %v599 = vld [vmem:[#allocation2 + $0x19] sm:$0xff]
      %v600 = vld [vmem:[#allocation2 + $0x21] sm:$0xff]
      %v601 = vld [vmem:[#allocation2 + $0x31] sm:$0xff]
      %v602 = vld [vmem:[#allocation2 + $0x39] sm:$0xff]
      %v603 = vld [vmem:[#allocation2 + $0x49] sm:$0xff]
      %v604 = vld [vmem:[#allocation2 + $0x51] sm:$0xff]
      %v605 = vld [vmem:[#allocation2 + $0x61] sm:$0xff]
      %v606 = vld [vmem:[#allocation2 + $0x69] sm:$0xff]
      %v607 = vld [vmem:[#allocation2 + $0x79] sm:$0xff]
      %v608 = vld [vmem:[#allocation2 + $0x81] sm:$0xff]
      %v609 = vld [vmem:[#allocation2 + $0x91] sm:$0xff]
      %v610 = vld [vmem:[#allocation2 + $0x99] sm:$0xff]
      %v611 = vld [vmem:[#allocation2 + $0xa9] sm:$0xff]
      %v612 = vld [vmem:[#allocation2 + $0xb1] sm:$0xff]
      %v613 = vld [vmem:[#allocation2 + $0xc1] sm:$0xff]
      %v614 = vld [vmem:[#allocation2 + $0xc9] sm:$0xff]
      %v615 = vld [vmem:[#allocation2 + $0xd9] sm:$0xff]
      %v616 = vld [vmem:[#allocation2 + $0xe1] sm:$0xff]
      %v617 = vld [vmem:[#allocation2 + $0xf1] sm:$0xff]
      %v618 = vld [vmem:[#allocation2 + $0xf9] sm:$0xff]
      %v619 = vld [vmem:[#allocation2 + $0x109] sm:$0xff]
      %v620 = vld [vmem:[#allocation2 + $0x111] sm:$0xff]
      %v621 = vld [vmem:[#allocation2 + $0x121] sm:$0xff]
      %v622 = vld [vmem:[#allocation2 + $0x129] sm:$0xff]
      %v623 = vld [vmem:[#allocation2 + $0x139] sm:$0xff]
      %v624 = vld [vmem:[#allocation2 + $0x141] sm:$0xff]
      %v625 = vld [vmem:[#allocation2 + $0x151] sm:$0xff]
      %v626 = vld [vmem:[#allocation2 + $0x159] sm:$0xff]
      %v627 = vld [vmem:[#allocation2 + $0x169] sm:$0xff]
      %v628 = vld [vmem:[#allocation2 + $0x171] sm:$0xff]
      %v629 = vld [vmem:[#allocation2 + $0x2] sm:$0xff]
      %v630 = vld [vmem:[#allocation2 + $0xa] sm:$0xff]
      %v631 = vld [vmem:[#allocation2 + $0x1a] sm:$0xff]
      %v632 = vld [vmem:[#allocation2 + $0x22] sm:$0xff]
      %v633 = vld [vmem:[#allocation2 + $0x32] sm:$0xff]
      %v634 = vld [vmem:[#allocation2 + $0x3a] sm:$0xff]
      %v635 = vld [vmem:[#allocation2 + $0x4a] sm:$0xff]
      %v636 = vld [vmem:[#allocation2 + $0x52] sm:$0xff]
      %v637 = vld [vmem:[#allocation2 + $0x62] sm:$0xff]
      %v638 = vld [vmem:[#allocation2 + $0x6a] sm:$0xff]
      %v639 = vld [vmem:[#allocation2 + $0x7a] sm:$0xff]
      %v640 = vld [vmem:[#allocation2 + $0x82] sm:$0xff]
      %v641 = vld [vmem:[#allocation2 + $0x92] sm:$0xff]
      %v642 = vld [vmem:[#allocation2 + $0x9a] sm:$0xff]
      %v643 = vld [vmem:[#allocation2 + $0xaa] sm:$0xff]
      %v644 = vld [vmem:[#allocation2 + $0xb2] sm:$0xff]
      %v645 = vld [vmem:[#allocation2 + $0xc2] sm:$0xff]
      %v646 = vld [vmem:[#allocation2 + $0xca] sm:$0xff]
      %v647 = vld [vmem:[#allocation2 + $0xda] sm:$0xff]
      %v648 = vld [vmem:[#allocation2 + $0xe2] sm:$0xff]
      %v649 = vld [vmem:[#allocation2 + $0xf2] sm:$0xff]
      %v650 = vld [vmem:[#allocation2 + $0xfa] sm:$0xff]
      %v651 = vld [vmem:[#allocation2 + $0x10a] sm:$0xff]
      %v652 = vld [vmem:[#allocation2 + $0x112] sm:$0xff]
      %v653 = vld [vmem:[#allocation2 + $0x122] sm:$0xff]
      %v654 = vld [vmem:[#allocation2 + $0x12a] sm:$0xff]
      %v655 = vld [vmem:[#allocation2 + $0x13a] sm:$0xff]
      %v656 = vld [vmem:[#allocation2 + $0x142] sm:$0xff]
      %v657 = vld [vmem:[#allocation2 + $0x152] sm:$0xff]
      %v658 = vld [vmem:[#allocation2 + $0x15a] sm:$0xff]
      %v659 = vld [vmem:[#allocation2 + $0x16a] sm:$0xff]
      %v660 = vld [vmem:[#allocation2 + $0x172] sm:$0xff]
      %v661 = vld [vmem:[%s531] sm:$0xff]
      %v662 = vld [vmem:[%s531 + $0x8] sm:$0xff]
      %v663 = vld [vmem:[%s531 + $0x18] sm:$0xff]
      %v664 = vld [vmem:[%s531 + $0x20] sm:$0xff]
      %v665 = vld [vmem:[%s531 + $0x30] sm:$0xff]
      %v666 = vld [vmem:[%s531 + $0x38] sm:$0xff]
      %v667 = vld [vmem:[%s531 + $0x48] sm:$0xff]
      %v668 = vld [vmem:[%s531 + $0x50] sm:$0xff]
      %v669 = vld [vmem:[%s531 + $0x60] sm:$0xff]
      %v670 = vld [vmem:[%s531 + $0x68] sm:$0xff]
      %v671 = vld [vmem:[%s531 + $0x78] sm:$0xff]
      %v672 = vld [vmem:[%s531 + $0x80] sm:$0xff]
      %v673 = vld [vmem:[%s531 + $0x90] sm:$0xff]
      %v674 = vld [vmem:[%s531 + $0x98] sm:$0xff]
      %v675 = vld [vmem:[%s531 + $0xa8] sm:$0xff]
      %v676 = vld [vmem:[%s531 + $0xb0] sm:$0xff]
      %v677 = vld [vmem:[%s531 + $0xc0] sm:$0xff]
      %v678 = vld [vmem:[%s531 + $0xc8] sm:$0xff]
      %v679 = vld [vmem:[%s531 + $0xd8] sm:$0xff]
      %v680 = vld [vmem:[%s531 + $0xe0] sm:$0xff]
      %v681 = vld [vmem:[%s531 + $0xf0] sm:$0xff]
      %v682 = vld [vmem:[%s531 + $0xf8] sm:$0xff]
      %v683 = vld [vmem:[%s531 + $0x108] sm:$0xff]
      %v684 = vld [vmem:[%s531 + $0x110] sm:$0xff]
      %v685 = vld [vmem:[%s531 + $0x120] sm:$0xff]
      %v686 = vld [vmem:[%s531 + $0x128] sm:$0xff]
      %v687 = vld [vmem:[%s531 + $0x138] sm:$0xff]
      %v688 = vld [vmem:[%s531 + $0x140] sm:$0xff]
      %v689 = vld [vmem:[%s531 + $0x150] sm:$0xff]
      %v690 = vld [vmem:[%s531 + $0x158] sm:$0xff]
      %v691 = vld [vmem:[%s531 + $0x168] sm:$0xff]
      %v692 = vld [vmem:[%s531 + $0x170] sm:$0xff]
      %v693 = vld [vmem:[%s531 + $0x1] sm:$0xff]
      %v694 = vld [vmem:[%s531 + $0x9] sm:$0xff]
      %v695 = vld [vmem:[%s531 + $0x19] sm:$0xff]
      %v696 = vld [vmem:[%s531 + $0x21] sm:$0xff]
      %v697 = vld [vmem:[%s531 + $0x31] sm:$0xff]
      %v698 = vld [vmem:[%s531 + $0x39] sm:$0xff]
      %v699 = vld [vmem:[%s531 + $0x49] sm:$0xff]
      %v700 = vld [vmem:[%s531 + $0x51] sm:$0xff]
      %v701 = vld [vmem:[%s531 + $0x61] sm:$0xff]
      %v702 = vld [vmem:[%s531 + $0x69] sm:$0xff]
      %v703 = vld [vmem:[%s531 + $0x79] sm:$0xff]
      %v704 = vld [vmem:[%s531 + $0x81] sm:$0xff]
      %v705 = vld [vmem:[%s531 + $0x91] sm:$0xff]
      %v706 = vld [vmem:[%s531 + $0x99] sm:$0xff]
      %v707 = vld [vmem:[%s531 + $0xa9] sm:$0xff]
      %v708 = vld [vmem:[%s531 + $0xb1] sm:$0xff]
      %v709 = vld [vmem:[%s531 + $0xc1] sm:$0xff]
      %v710 = vld [vmem:[%s531 + $0xc9] sm:$0xff]
      %v711 = vld [vmem:[%s531 + $0xd9] sm:$0xff]
      %v712 = vld [vmem:[%s531 + $0xe1] sm:$0xff]
      %v713 = vld [vmem:[%s531 + $0xf1] sm:$0xff]
      %v714 = vld [vmem:[%s531 + $0xf9] sm:$0xff]
      %v715 = vld [vmem:[%s531 + $0x109] sm:$0xff]
      %v716 = vld [vmem:[%s531 + $0x111] sm:$0xff]
      %v717 = vld [vmem:[%s531 + $0x121] sm:$0xff]
      %v718 = vld [vmem:[%s531 + $0x129] sm:$0xff]
      %v719 = vld [vmem:[%s531 + $0x139] sm:$0xff]
      %v720 = vld [vmem:[%s531 + $0x141] sm:$0xff]
      %v721 = vld [vmem:[%s531 + $0x151] sm:$0xff]
      %v722 = vld [vmem:[%s531 + $0x159] sm:$0xff]
      %v723 = vld [vmem:[%s531 + $0x169] sm:$0xff]
      %v724 = vld [vmem:[%s531 + $0x171] sm:$0xff]
      %v725 = vld [vmem:[%s531 + $0x2] sm:$0xff]
      %v726 = vld [vmem:[%s531 + $0xa] sm:$0xff]
      %v727 = vld [vmem:[%s531 + $0x1a] sm:$0xff]
      %v728 = vld [vmem:[%s531 + $0x22] sm:$0xff]
      %v729 = vld [vmem:[%s531 + $0x32] sm:$0xff]
      %v730 = vld [vmem:[%s531 + $0x3a] sm:$0xff]
      %v731 = vld [vmem:[%s531 + $0x4a] sm:$0xff]
      %v732 = vld [vmem:[%s531 + $0x52] sm:$0xff]
      %v733 = vld [vmem:[%s531 + $0x62] sm:$0xff]
      %v734 = vld [vmem:[%s531 + $0x6a] sm:$0xff]
      %v735 = vld [vmem:[%s531 + $0x7a] sm:$0xff]
      %v736 = vld [vmem:[%s531 + $0x82] sm:$0xff]
      %v737 = vld [vmem:[%s531 + $0x92] sm:$0xff]
      %v738 = vld [vmem:[%s531 + $0x9a] sm:$0xff]
      %v739 = vld [vmem:[%s531 + $0xaa] sm:$0xff]
      %v740 = vld [vmem:[%s531 + $0xb2] sm:$0xff]
      %v741 = vld [vmem:[%s531 + $0xc2] sm:$0xff]
      %v742 = vld [vmem:[%s531 + $0xca] sm:$0xff]
      %v743 = vld [vmem:[%s531 + $0xda] sm:$0xff]
      %v744 = vld [vmem:[%s531 + $0xe2] sm:$0xff]
      %v745 = vld [vmem:[%s531 + $0xf2] sm:$0xff]
      %v746 = vld [vmem:[%s531 + $0xfa] sm:$0xff]
      %v747 = vld [vmem:[%s531 + $0x10a] sm:$0xff]
      %v748 = vld [vmem:[%s531 + $0x112] sm:$0xff]
      %v749 = vld [vmem:[%s531 + $0x122] sm:$0xff]
      %v750 = vld [vmem:[%s531 + $0x12a] sm:$0xff]
      %v751 = vld [vmem:[%s531 + $0x13a] sm:$0xff]
      %v752 = vld [vmem:[%s531 + $0x142] sm:$0xff]
      %v753 = vld [vmem:[%s531 + $0x152] sm:$0xff]
      %v754 = vld [vmem:[%s531 + $0x15a] sm:$0xff]
      %v755 = vld [vmem:[%s531 + $0x16a] sm:$0xff]
      %v756 = vld [vmem:[%s531 + $0x172] sm:$0xff]
      %s757 = scalar_lea.vmem [#allocation2], 48
      %v758 = vld [vmem:[%s757] sm:$0xff]
      %v759 = vld [vmem:[%s757 + $0x8] sm:$0xff]
      %v760 = vld [vmem:[%s757 + $0x18] sm:$0xff]
      %v761 = vld [vmem:[%s757 + $0x20] sm:$0xff]
      %v762 = vld [vmem:[%s757 + $0x30] sm:$0xff]
      %v763 = vld [vmem:[%s757 + $0x38] sm:$0xff]
      %v764 = vld [vmem:[%s757 + $0x48] sm:$0xff]
      %v765 = vld [vmem:[%s757 + $0x50] sm:$0xff]
      %v766 = vld [vmem:[%s757 + $0x60] sm:$0xff]
      %v767 = vld [vmem:[%s757 + $0x68] sm:$0xff]
      %v768 = vld [vmem:[%s757 + $0x78] sm:$0xff]
      %v769 = vld [vmem:[%s757 + $0x80] sm:$0xff]
      %v770 = vld [vmem:[%s757 + $0x90] sm:$0xff]
      %v771 = vld [vmem:[%s757 + $0x98] sm:$0xff]
      %v772 = vld [vmem:[%s757 + $0xa8] sm:$0xff]
      %v773 = vld [vmem:[%s757 + $0xb0] sm:$0xff]
      %v774 = vld [vmem:[%s757 + $0xc0] sm:$0xff]
      %v775 = vld [vmem:[%s757 + $0xc8] sm:$0xff]
      %v776 = vld [vmem:[%s757 + $0xd8] sm:$0xff]
      %v777 = vld [vmem:[%s757 + $0xe0] sm:$0xff]
      %v778 = vld [vmem:[%s757 + $0xf0] sm:$0xff]
      %v779 = vld [vmem:[%s757 + $0xf8] sm:$0xff]
      %v780 = vld [vmem:[%s757 + $0x108] sm:$0xff]
      %v781 = vld [vmem:[%s757 + $0x110] sm:$0xff]
      %v782 = vld [vmem:[%s757 + $0x120] sm:$0xff]
      %v783 = vld [vmem:[%s757 + $0x128] sm:$0xff]
      %v784 = vld [vmem:[%s757 + $0x138] sm:$0xff]
      %v785 = vld [vmem:[%s757 + $0x140] sm:$0xff]
      %v786 = vld [vmem:[%s757 + $0x150] sm:$0xff]
      %v787 = vld [vmem:[%s757 + $0x158] sm:$0xff]
      %v788 = vld [vmem:[%s757 + $0x168] sm:$0xff]
      %v789 = vld [vmem:[%s757 + $0x170] sm:$0xff]
      %v790 = vld [vmem:[%s757 + $0x1] sm:$0xff]
      %v791 = vld [vmem:[%s757 + $0x9] sm:$0xff]
      %v792 = vld [vmem:[%s757 + $0x19] sm:$0xff]
      %v793 = vld [vmem:[%s757 + $0x21] sm:$0xff]
      %v794 = vld [vmem:[%s757 + $0x31] sm:$0xff]
      %v795 = vld [vmem:[%s757 + $0x39] sm:$0xff]
      %v796 = vld [vmem:[%s757 + $0x49] sm:$0xff]
      %v797 = vld [vmem:[%s757 + $0x51] sm:$0xff]
      %v798 = vld [vmem:[%s757 + $0x61] sm:$0xff]
      %v799 = vld [vmem:[%s757 + $0x69] sm:$0xff]
      %v800 = vld [vmem:[%s757 + $0x79] sm:$0xff]
      %v801 = vld [vmem:[%s757 + $0x81] sm:$0xff]
      %v802 = vld [vmem:[%s757 + $0x91] sm:$0xff]
      %v803 = vld [vmem:[%s757 + $0x99] sm:$0xff]
      %v804 = vld [vmem:[%s757 + $0xa9] sm:$0xff]
      %v805 = vld [vmem:[%s757 + $0xb1] sm:$0xff]
      %v806 = vld [vmem:[%s757 + $0xc1] sm:$0xff]
      %v807 = vld [vmem:[%s757 + $0xc9] sm:$0xff]
      %v808 = vld [vmem:[%s757 + $0xd9] sm:$0xff]
      %v809 = vld [vmem:[%s757 + $0xe1] sm:$0xff]
      %v810 = vld [vmem:[%s757 + $0xf1] sm:$0xff]
      %v811 = vld [vmem:[%s757 + $0xf9] sm:$0xff]
      %v812 = vld [vmem:[%s757 + $0x109] sm:$0xff]
      %v813 = vld [vmem:[%s757 + $0x111] sm:$0xff]
      %v814 = vld [vmem:[%s757 + $0x121] sm:$0xff]
      %v815 = vld [vmem:[%s757 + $0x129] sm:$0xff]
      %v816 = vld [vmem:[%s757 + $0x139] sm:$0xff]
      %v817 = vld [vmem:[%s757 + $0x141] sm:$0xff]
      %v818 = vld [vmem:[%s757 + $0x151] sm:$0xff]
      %v819 = vld [vmem:[%s757 + $0x159] sm:$0xff]
      %v820 = vld [vmem:[%s757 + $0x169] sm:$0xff]
      %v821 = vld [vmem:[%s757 + $0x171] sm:$0xff]
      %v822 = vld [vmem:[%s757 + $0x2] sm:$0xff]
      %v823 = vld [vmem:[%s757 + $0xa] sm:$0xff]
      %v824 = vld [vmem:[%s757 + $0x1a] sm:$0xff]
      %v825 = vld [vmem:[%s757 + $0x22] sm:$0xff]
      %v826 = vld [vmem:[%s757 + $0x32] sm:$0xff]
      %v827 = vld [vmem:[%s757 + $0x3a] sm:$0xff]
      %v828 = vld [vmem:[%s757 + $0x4a] sm:$0xff]
      %v829 = vld [vmem:[%s757 + $0x52] sm:$0xff]
      %v830 = vld [vmem:[%s757 + $0x62] sm:$0xff]
      %v831 = vld [vmem:[%s757 + $0x6a] sm:$0xff]
      %v832 = vld [vmem:[%s757 + $0x7a] sm:$0xff]
      %v833 = vld [vmem:[%s757 + $0x82] sm:$0xff]
      %v834 = vld [vmem:[%s757 + $0x92] sm:$0xff]
      %v835 = vld [vmem:[%s757 + $0x9a] sm:$0xff]
      %v836 = vld [vmem:[%s757 + $0xaa] sm:$0xff]
      %v837 = vld [vmem:[%s757 + $0xb2] sm:$0xff]
      %v838 = vld [vmem:[%s757 + $0xc2] sm:$0xff]
      %v839 = vld [vmem:[%s757 + $0xca] sm:$0xff]
      %v840 = vld [vmem:[%s757 + $0xda] sm:$0xff]
      %v841 = vld [vmem:[%s757 + $0xe2] sm:$0xff]
      %v842 = vld [vmem:[%s757 + $0xf2] sm:$0xff]
      %v843 = vld [vmem:[%s757 + $0xfa] sm:$0xff]
      %v844 = vld [vmem:[%s757 + $0x10a] sm:$0xff]
      %v845 = vld [vmem:[%s757 + $0x112] sm:$0xff]
      %v846 = vld [vmem:[%s757 + $0x122] sm:$0xff]
      %v847 = vld [vmem:[%s757 + $0x12a] sm:$0xff]
      %v848 = vld [vmem:[%s757 + $0x13a] sm:$0xff]
      %v849 = vld [vmem:[%s757 + $0x142] sm:$0xff]
      %v850 = vld [vmem:[%s757 + $0x152] sm:$0xff]
      %v851 = vld [vmem:[%s757 + $0x15a] sm:$0xff]
      %v852 = vld [vmem:[%s757 + $0x16a] sm:$0xff]
      %v853 = vld [vmem:[%s757 + $0x172] sm:$0xff]
      %886 = vrot.lane.b32.xlu0 %v597, 4
      %v887 = vpop.permute.xlu0 %886
      %888 = vrot.lane.b32.xlu0 %v598, 4
      %v889 = vpop.permute.xlu0 %888
      %890 = vrot.lane.b32.xlu0 %v599, 4
      %v891 = vpop.permute.xlu0 %890
      %892 = vrot.lane.b32.xlu0 %v600, 4
      %v893 = vpop.permute.xlu0 %892
      %894 = vrot.lane.b32.xlu0 %v601, 4
      %v895 = vpop.permute.xlu0 %894
      %896 = vrot.lane.b32.xlu0 %v602, 4
      %v897 = vpop.permute.xlu0 %896
      %898 = vrot.lane.b32.xlu0 %v603, 4
      %v899 = vpop.permute.xlu0 %898
      %900 = vrot.lane.b32.xlu0 %v604, 4
      %v901 = vpop.permute.xlu0 %900
      %902 = vrot.lane.b32.xlu0 %v605, 4
      %v903 = vpop.permute.xlu0 %902
      %904 = vrot.lane.b32.xlu0 %v606, 4
      %v905 = vpop.permute.xlu0 %904
      %906 = vrot.lane.b32.xlu0 %v607, 4
      %v907 = vpop.permute.xlu0 %906
      %908 = vrot.lane.b32.xlu0 %v608, 4
      %v909 = vpop.permute.xlu0 %908
      %910 = vrot.lane.b32.xlu0 %v609, 4
      %v911 = vpop.permute.xlu0 %910
      %912 = vrot.lane.b32.xlu0 %v610, 4
      %v913 = vpop.permute.xlu0 %912
      %914 = vrot.lane.b32.xlu0 %v611, 4
      %v915 = vpop.permute.xlu0 %914
      %916 = vrot.lane.b32.xlu0 %v612, 4
      %v917 = vpop.permute.xlu0 %916
      %918 = vrot.lane.b32.xlu0 %v613, 4
      %v919 = vpop.permute.xlu0 %918
      %920 = vrot.lane.b32.xlu0 %v614, 4
      %v921 = vpop.permute.xlu0 %920
      %922 = vrot.lane.b32.xlu0 %v615, 4
      %v923 = vpop.permute.xlu0 %922
      %924 = vrot.lane.b32.xlu0 %v616, 4
      %v925 = vpop.permute.xlu0 %924
      %926 = vrot.lane.b32.xlu0 %v617, 4
      %v927 = vpop.permute.xlu0 %926
      %928 = vrot.lane.b32.xlu0 %v618, 4
      %v929 = vpop.permute.xlu0 %928
      %930 = vrot.lane.b32.xlu0 %v619, 4
      %v931 = vpop.permute.xlu0 %930
      %932 = vrot.lane.b32.xlu0 %v620, 4
      %v933 = vpop.permute.xlu0 %932
      %934 = vrot.lane.b32.xlu0 %v621, 4
      %v935 = vpop.permute.xlu0 %934
      %936 = vrot.lane.b32.xlu0 %v622, 4
      %v937 = vpop.permute.xlu0 %936
      %938 = vrot.lane.b32.xlu0 %v623, 4
      %v939 = vpop.permute.xlu0 %938
      %940 = vrot.lane.b32.xlu0 %v624, 4
      %v941 = vpop.permute.xlu0 %940
      %942 = vrot.lane.b32.xlu0 %v625, 4
      %v943 = vpop.permute.xlu0 %942
      %944 = vrot.lane.b32.xlu0 %v626, 4
      %v945 = vpop.permute.xlu0 %944
      %946 = vrot.lane.b32.xlu0 %v627, 4
      %v947 = vpop.permute.xlu0 %946
      %948 = vrot.lane.b32.xlu0 %v628, 4
      %v949 = vpop.permute.xlu0 %948
      %1014 = vrot.lane.b32.xlu0 %v629, 8
      %v1015 = vpop.permute.xlu0 %1014
      %1016 = vrot.lane.b32.xlu0 %v630, 8
      %v1017 = vpop.permute.xlu0 %1016
      %1018 = vrot.lane.b32.xlu0 %v631, 8
      %v1019 = vpop.permute.xlu0 %1018
      %1020 = vrot.lane.b32.xlu0 %v632, 8
      %v1021 = vpop.permute.xlu0 %1020
      %1022 = vrot.lane.b32.xlu0 %v633, 8
      %v1023 = vpop.permute.xlu0 %1022
      %1024 = vrot.lane.b32.xlu0 %v634, 8
      %v1025 = vpop.permute.xlu0 %1024
      %1026 = vrot.lane.b32.xlu0 %v635, 8
      %v1027 = vpop.permute.xlu0 %1026
      %1028 = vrot.lane.b32.xlu0 %v636, 8
      %v1029 = vpop.permute.xlu0 %1028
      %1030 = vrot.lane.b32.xlu0 %v637, 8
      %v1031 = vpop.permute.xlu0 %1030
      %1032 = vrot.lane.b32.xlu0 %v638, 8
      %v1033 = vpop.permute.xlu0 %1032
      %1034 = vrot.lane.b32.xlu0 %v639, 8
      %v1035 = vpop.permute.xlu0 %1034
      %1036 = vrot.lane.b32.xlu0 %v640, 8
      %v1037 = vpop.permute.xlu0 %1036
      %1038 = vrot.lane.b32.xlu0 %v641, 8
      %v1039 = vpop.permute.xlu0 %1038
      %1040 = vrot.lane.b32.xlu0 %v642, 8
      %v1041 = vpop.permute.xlu0 %1040
      %1042 = vrot.lane.b32.xlu0 %v643, 8
      %v1043 = vpop.permute.xlu0 %1042
      %1044 = vrot.lane.b32.xlu0 %v644, 8
      %v1045 = vpop.permute.xlu0 %1044
      %1046 = vrot.lane.b32.xlu0 %v645, 8
      %v1047 = vpop.permute.xlu0 %1046
      %1048 = vrot.lane.b32.xlu0 %v646, 8
      %v1049 = vpop.permute.xlu0 %1048
      %1050 = vrot.lane.b32.xlu0 %v647, 8
      %v1051 = vpop.permute.xlu0 %1050
      %1052 = vrot.lane.b32.xlu0 %v648, 8
      %v1053 = vpop.permute.xlu0 %1052
      %1054 = vrot.lane.b32.xlu0 %v649, 8
      %v1055 = vpop.permute.xlu0 %1054
      %1056 = vrot.lane.b32.xlu0 %v650, 8
      %v1057 = vpop.permute.xlu0 %1056
      %1058 = vrot.lane.b32.xlu0 %v651, 8
      %v1059 = vpop.permute.xlu0 %1058
      %1060 = vrot.lane.b32.xlu0 %v652, 8
      %v1061 = vpop.permute.xlu0 %1060
      %1062 = vrot.lane.b32.xlu0 %v653, 8
      %v1063 = vpop.permute.xlu0 %1062
      %1064 = vrot.lane.b32.xlu0 %v654, 8
      %v1065 = vpop.permute.xlu0 %1064
      %1066 = vrot.lane.b32.xlu0 %v655, 8
      %v1067 = vpop.permute.xlu0 %1066
      %1068 = vrot.lane.b32.xlu0 %v656, 8
      %v1069 = vpop.permute.xlu0 %1068
      %1070 = vrot.lane.b32.xlu0 %v657, 8
      %v1071 = vpop.permute.xlu0 %1070
      %1072 = vrot.lane.b32.xlu0 %v658, 8
      %v1073 = vpop.permute.xlu0 %1072
      %1074 = vrot.lane.b32.xlu0 %v659, 8
      %v1075 = vpop.permute.xlu0 %1074
      %1076 = vrot.lane.b32.xlu0 %v660, 8
      %v1077 = vpop.permute.xlu0 %1076
      %1142 = vrot.lane.b32.xlu0 %v661, 12
      %v1143 = vpop.permute.xlu0 %1142
      %1144 = vrot.lane.b32.xlu0 %v662, 12
      %v1145 = vpop.permute.xlu0 %1144
      %1146 = vrot.lane.b32.xlu0 %v663, 12
      %v1147 = vpop.permute.xlu0 %1146
      %1148 = vrot.lane.b32.xlu0 %v664, 12
      %v1149 = vpop.permute.xlu0 %1148
      %1150 = vrot.lane.b32.xlu0 %v665, 12
      %v1151 = vpop.permute.xlu0 %1150
      %1152 = vrot.lane.b32.xlu0 %v666, 12
      %v1153 = vpop.permute.xlu0 %1152
      %1154 = vrot.lane.b32.xlu0 %v667, 12
      %v1155 = vpop.permute.xlu0 %1154
      %1156 = vrot.lane.b32.xlu0 %v668, 12
      %v1157 = vpop.permute.xlu0 %1156
      %1158 = vrot.lane.b32.xlu0 %v669, 12
      %v1159 = vpop.permute.xlu0 %1158
      %1160 = vrot.lane.b32.xlu0 %v670, 12
      %v1161 = vpop.permute.xlu0 %1160
      %1162 = vrot.lane.b32.xlu0 %v671, 12
      %v1163 = vpop.permute.xlu0 %1162
      %1164 = vrot.lane.b32.xlu0 %v672, 12
      %v1165 = vpop.permute.xlu0 %1164
      %1166 = vrot.lane.b32.xlu0 %v673, 12
      %v1167 = vpop.permute.xlu0 %1166
      %1168 = vrot.lane.b32.xlu0 %v674, 12
      %v1169 = vpop.permute.xlu0 %1168
      %1170 = vrot.lane.b32.xlu0 %v675, 12
      %v1171 = vpop.permute.xlu0 %1170
      %1172 = vrot.lane.b32.xlu0 %v676, 12
      %v1173 = vpop.permute.xlu0 %1172
      %1174 = vrot.lane.b32.xlu0 %v677, 12
      %v1175 = vpop.permute.xlu0 %1174
      %1176 = vrot.lane.b32.xlu0 %v678, 12
      %v1177 = vpop.permute.xlu0 %1176
      %1178 = vrot.lane.b32.xlu0 %v679, 12
      %v1179 = vpop.permute.xlu0 %1178
      %1180 = vrot.lane.b32.xlu0 %v680, 12
      %v1181 = vpop.permute.xlu0 %1180
      %1182 = vrot.lane.b32.xlu0 %v681, 12
      %v1183 = vpop.permute.xlu0 %1182
      %1184 = vrot.lane.b32.xlu0 %v682, 12
      %v1185 = vpop.permute.xlu0 %1184
      %1186 = vrot.lane.b32.xlu0 %v683, 12
      %v1187 = vpop.permute.xlu0 %1186
      %1188 = vrot.lane.b32.xlu0 %v684, 12
      %v1189 = vpop.permute.xlu0 %1188
      %1190 = vrot.lane.b32.xlu0 %v685, 12
      %v1191 = vpop.permute.xlu0 %1190
      %1192 = vrot.lane.b32.xlu0 %v686, 12
      %v1193 = vpop.permute.xlu0 %1192
      %1194 = vrot.lane.b32.xlu0 %v687, 12
      %v1195 = vpop.permute.xlu0 %1194
      %1196 = vrot.lane.b32.xlu0 %v688, 12
      %v1197 = vpop.permute.xlu0 %1196
      %1198 = vrot.lane.b32.xlu0 %v689, 12
      %v1199 = vpop.permute.xlu0 %1198
      %1200 = vrot.lane.b32.xlu0 %v690, 12
      %v1201 = vpop.permute.xlu0 %1200
      %1202 = vrot.lane.b32.xlu0 %v691, 12
      %v1203 = vpop.permute.xlu0 %1202
      %1204 = vrot.lane.b32.xlu0 %v692, 12
      %v1205 = vpop.permute.xlu0 %1204
      %1270 = vrot.lane.b32.xlu0 %v693, 16
      %v1271 = vpop.permute.xlu0 %1270
      %1272 = vrot.lane.b32.xlu0 %v694, 16
      %v1273 = vpop.permute.xlu0 %1272
      %1274 = vrot.lane.b32.xlu0 %v695, 16
      %v1275 = vpop.permute.xlu0 %1274
      %1276 = vrot.lane.b32.xlu0 %v696, 16
      %v1277 = vpop.permute.xlu0 %1276
      %1278 = vrot.lane.b32.xlu0 %v697, 16
      %v1279 = vpop.permute.xlu0 %1278
      %1280 = vrot.lane.b32.xlu0 %v698, 16
      %v1281 = vpop.permute.xlu0 %1280
      %1282 = vrot.lane.b32.xlu0 %v699, 16
      %v1283 = vpop.permute.xlu0 %1282
      %1284 = vrot.lane.b32.xlu0 %v700, 16
      %v1285 = vpop.permute.xlu0 %1284
      %1286 = vrot.lane.b32.xlu0 %v701, 16
      %v1287 = vpop.permute.xlu0 %1286
      %1288 = vrot.lane.b32.xlu0 %v702, 16
      %v1289 = vpop.permute.xlu0 %1288
      %1290 = vrot.lane.b32.xlu0 %v703, 16
      %v1291 = vpop.permute.xlu0 %1290
      %1292 = vrot.lane.b32.xlu0 %v704, 16
      %v1293 = vpop.permute.xlu0 %1292
      %1294 = vrot.lane.b32.xlu0 %v705, 16
      %v1295 = vpop.permute.xlu0 %1294
      %1296 = vrot.lane.b32.xlu0 %v706, 16
      %v1297 = vpop.permute.xlu0 %1296
      %1298 = vrot.lane.b32.xlu0 %v707, 16
      %v1299 = vpop.permute.xlu0 %1298
      %1300 = vrot.lane.b32.xlu0 %v708, 16
      %v1301 = vpop.permute.xlu0 %1300
      %1302 = vrot.lane.b32.xlu0 %v709, 16
      %v1303 = vpop.permute.xlu0 %1302
      %1304 = vrot.lane.b32.xlu0 %v710, 16
      %v1305 = vpop.permute.xlu0 %1304
      %1306 = vrot.lane.b32.xlu0 %v711, 16
      %v1307 = vpop.permute.xlu0 %1306
      %1308 = vrot.lane.b32.xlu0 %v712, 16
      %v1309 = vpop.permute.xlu0 %1308
      %1310 = vrot.lane.b32.xlu0 %v713, 16
      %v1311 = vpop.permute.xlu0 %1310
      %1312 = vrot.lane.b32.xlu0 %v714, 16
      %v1313 = vpop.permute.xlu0 %1312
      %1314 = vrot.lane.b32.xlu0 %v715, 16
      %v1315 = vpop.permute.xlu0 %1314
      %1316 = vrot.lane.b32.xlu0 %v716, 16
      %v1317 = vpop.permute.xlu0 %1316
      %1318 = vrot.lane.b32.xlu0 %v717, 16
      %v1319 = vpop.permute.xlu0 %1318
      %1320 = vrot.lane.b32.xlu0 %v718, 16
      %v1321 = vpop.permute.xlu0 %1320
      %1322 = vrot.lane.b32.xlu0 %v719, 16
      %v1323 = vpop.permute.xlu0 %1322
      %1324 = vrot.lane.b32.xlu0 %v720, 16
      %v1325 = vpop.permute.xlu0 %1324
      %1326 = vrot.lane.b32.xlu0 %v721, 16
      %v1327 = vpop.permute.xlu0 %1326
      %1328 = vrot.lane.b32.xlu0 %v722, 16
      %v1329 = vpop.permute.xlu0 %1328
      %1330 = vrot.lane.b32.xlu0 %v723, 16
      %v1331 = vpop.permute.xlu0 %1330
      %1332 = vrot.lane.b32.xlu0 %v724, 16
      %v1333 = vpop.permute.xlu0 %1332
      %1398 = vrot.lane.b32.xlu0 %v725, 20
      %v1399 = vpop.permute.xlu0 %1398
      %1400 = vrot.lane.b32.xlu0 %v726, 20
      %v1401 = vpop.permute.xlu0 %1400
      %1402 = vrot.lane.b32.xlu0 %v727, 20
      %v1403 = vpop.permute.xlu0 %1402
      %1404 = vrot.lane.b32.xlu0 %v728, 20
      %v1405 = vpop.permute.xlu0 %1404
      %1406 = vrot.lane.b32.xlu0 %v729, 20
      %v1407 = vpop.permute.xlu0 %1406
      %1408 = vrot.lane.b32.xlu0 %v730, 20
      %v1409 = vpop.permute.xlu0 %1408
      %1410 = vrot.lane.b32.xlu0 %v731, 20
      %v1411 = vpop.permute.xlu0 %1410
      %1412 = vrot.lane.b32.xlu0 %v732, 20
      %v1413 = vpop.permute.xlu0 %1412
      %1414 = vrot.lane.b32.xlu0 %v733, 20
      %v1415 = vpop.permute.xlu0 %1414
      %1416 = vrot.lane.b32.xlu0 %v734, 20
      %v1417 = vpop.permute.xlu0 %1416
      %1418 = vrot.lane.b32.xlu0 %v735, 20
      %v1419 = vpop.permute.xlu0 %1418
      %1420 = vrot.lane.b32.xlu0 %v736, 20
      %v1421 = vpop.permute.xlu0 %1420
      %1422 = vrot.lane.b32.xlu0 %v737, 20
      %v1423 = vpop.permute.xlu0 %1422
      %1424 = vrot.lane.b32.xlu0 %v738, 20
      %v1425 = vpop.permute.xlu0 %1424
      %1426 = vrot.lane.b32.xlu0 %v739, 20
      %v1427 = vpop.permute.xlu0 %1426
      %1428 = vrot.lane.b32.xlu0 %v740, 20
      %v1429 = vpop.permute.xlu0 %1428
      %1430 = vrot.lane.b32.xlu0 %v741, 20
      %v1431 = vpop.permute.xlu0 %1430
      %1432 = vrot.lane.b32.xlu0 %v742, 20
      %v1433 = vpop.permute.xlu0 %1432
      %1434 = vrot.lane.b32.xlu0 %v743, 20
      %v1435 = vpop.permute.xlu0 %1434
      %1436 = vrot.lane.b32.xlu0 %v744, 20
      %v1437 = vpop.permute.xlu0 %1436
      %1438 = vrot.lane.b32.xlu0 %v745, 20
      %v1439 = vpop.permute.xlu0 %1438
      %1440 = vrot.lane.b32.xlu0 %v746, 20
      %v1441 = vpop.permute.xlu0 %1440
      %1442 = vrot.lane.b32.xlu0 %v747, 20
      %v1443 = vpop.permute.xlu0 %1442
      %1444 = vrot.lane.b32.xlu0 %v748, 20
      %v1445 = vpop.permute.xlu0 %1444
      %1446 = vrot.lane.b32.xlu0 %v749, 20
      %v1447 = vpop.permute.xlu0 %1446
      %1448 = vrot.lane.b32.xlu0 %v750, 20
      %v1449 = vpop.permute.xlu0 %1448
      %1450 = vrot.lane.b32.xlu0 %v751, 20
      %v1451 = vpop.permute.xlu0 %1450
      %1452 = vrot.lane.b32.xlu0 %v752, 20
      %v1453 = vpop.permute.xlu0 %1452
      %1454 = vrot.lane.b32.xlu0 %v753, 20
      %v1455 = vpop.permute.xlu0 %1454
      %1456 = vrot.lane.b32.xlu0 %v754, 20
      %v1457 = vpop.permute.xlu0 %1456
      %1458 = vrot.lane.b32.xlu0 %v755, 20
      %v1459 = vpop.permute.xlu0 %1458
      %1460 = vrot.lane.b32.xlu0 %v756, 20
      %v1461 = vpop.permute.xlu0 %1460
      %1526 = vrot.lane.b32.xlu0 %v758, 24
      %v1527 = vpop.permute.xlu0 %1526
      %1528 = vrot.lane.b32.xlu0 %v759, 24
      %v1529 = vpop.permute.xlu0 %1528
      %1530 = vrot.lane.b32.xlu0 %v760, 24
      %v1531 = vpop.permute.xlu0 %1530
      %1532 = vrot.lane.b32.xlu0 %v761, 24
      %v1533 = vpop.permute.xlu0 %1532
      %1534 = vrot.lane.b32.xlu0 %v762, 24
      %v1535 = vpop.permute.xlu0 %1534
      %1536 = vrot.lane.b32.xlu0 %v763, 24
      %v1537 = vpop.permute.xlu0 %1536
      %1538 = vrot.lane.b32.xlu0 %v764, 24
      %v1539 = vpop.permute.xlu0 %1538
      %1540 = vrot.lane.b32.xlu0 %v765, 24
      %v1541 = vpop.permute.xlu0 %1540
      %1542 = vrot.lane.b32.xlu0 %v766, 24
      %v1543 = vpop.permute.xlu0 %1542
      %1544 = vrot.lane.b32.xlu0 %v767, 24
      %v1545 = vpop.permute.xlu0 %1544
      %1546 = vrot.lane.b32.xlu0 %v768, 24
      %v1547 = vpop.permute.xlu0 %1546
      %1548 = vrot.lane.b32.xlu0 %v769, 24
      %v1549 = vpop.permute.xlu0 %1548
      %1550 = vrot.lane.b32.xlu0 %v770, 24
      %v1551 = vpop.permute.xlu0 %1550
      %1552 = vrot.lane.b32.xlu0 %v771, 24
      %v1553 = vpop.permute.xlu0 %1552
      %1554 = vrot.lane.b32.xlu0 %v772, 24
      %v1555 = vpop.permute.xlu0 %1554
      %1556 = vrot.lane.b32.xlu0 %v773, 24
      %v1557 = vpop.permute.xlu0 %1556
      %1558 = vrot.lane.b32.xlu0 %v774, 24
      %v1559 = vpop.permute.xlu0 %1558
      %1560 = vrot.lane.b32.xlu0 %v775, 24
      %v1561 = vpop.permute.xlu0 %1560
      %1562 = vrot.lane.b32.xlu0 %v776, 24
      %v1563 = vpop.permute.xlu0 %1562
      %1564 = vrot.lane.b32.xlu0 %v777, 24
      %v1565 = vpop.permute.xlu0 %1564
      %1566 = vrot.lane.b32.xlu0 %v778, 24
      %v1567 = vpop.permute.xlu0 %1566
      %1568 = vrot.lane.b32.xlu0 %v779, 24
      %v1569 = vpop.permute.xlu0 %1568
      %1570 = vrot.lane.b32.xlu0 %v780, 24
      %v1571 = vpop.permute.xlu0 %1570
      %1572 = vrot.lane.b32.xlu0 %v781, 24
      %v1573 = vpop.permute.xlu0 %1572
      %1574 = vrot.lane.b32.xlu0 %v782, 24
      %v1575 = vpop.permute.xlu0 %1574
      %1576 = vrot.lane.b32.xlu0 %v783, 24
      %v1577 = vpop.permute.xlu0 %1576
      %1578 = vrot.lane.b32.xlu0 %v784, 24
      %v1579 = vpop.permute.xlu0 %1578
      %1580 = vrot.lane.b32.xlu0 %v785, 24
      %v1581 = vpop.permute.xlu0 %1580
      %1582 = vrot.lane.b32.xlu0 %v786, 24
      %v1583 = vpop.permute.xlu0 %1582
      %1584 = vrot.lane.b32.xlu0 %v787, 24
      %v1585 = vpop.permute.xlu0 %1584
      %1586 = vrot.lane.b32.xlu0 %v788, 24
      %v1587 = vpop.permute.xlu0 %1586
      %1588 = vrot.lane.b32.xlu0 %v789, 24
      %v1589 = vpop.permute.xlu0 %1588
      %1654 = vrot.lane.b32.xlu0 %v790, 28
      %v1655 = vpop.permute.xlu0 %1654
      %1656 = vrot.lane.b32.xlu0 %v791, 28
      %v1657 = vpop.permute.xlu0 %1656
      %1658 = vrot.lane.b32.xlu0 %v792, 28
      %v1659 = vpop.permute.xlu0 %1658
      %1660 = vrot.lane.b32.xlu0 %v793, 28
      %v1661 = vpop.permute.xlu0 %1660
      %1662 = vrot.lane.b32.xlu0 %v794, 28
      %v1663 = vpop.permute.xlu0 %1662
      %1664 = vrot.lane.b32.xlu0 %v795, 28
      %v1665 = vpop.permute.xlu0 %1664
      %1666 = vrot.lane.b32.xlu0 %v796, 28
      %v1667 = vpop.permute.xlu0 %1666
      %1668 = vrot.lane.b32.xlu0 %v797, 28
      %v1669 = vpop.permute.xlu0 %1668
      %1670 = vrot.lane.b32.xlu0 %v798, 28
      %v1671 = vpop.permute.xlu0 %1670
      %1672 = vrot.lane.b32.xlu0 %v799, 28
      %v1673 = vpop.permute.xlu0 %1672
      %1674 = vrot.lane.b32.xlu0 %v800, 28
      %v1675 = vpop.permute.xlu0 %1674
      %1676 = vrot.lane.b32.xlu0 %v801, 28
      %v1677 = vpop.permute.xlu0 %1676
      %1678 = vrot.lane.b32.xlu0 %v802, 28
      %v1679 = vpop.permute.xlu0 %1678
      %1680 = vrot.lane.b32.xlu0 %v803, 28
      %v1681 = vpop.permute.xlu0 %1680
      %1682 = vrot.lane.b32.xlu0 %v804, 28
      %v1683 = vpop.permute.xlu0 %1682
      %1684 = vrot.lane.b32.xlu0 %v805, 28
      %v1685 = vpop.permute.xlu0 %1684
      %1686 = vrot.lane.b32.xlu0 %v806, 28
      %v1687 = vpop.permute.xlu0 %1686
      %1688 = vrot.lane.b32.xlu0 %v807, 28
      %v1689 = vpop.permute.xlu0 %1688
      %1690 = vrot.lane.b32.xlu0 %v808, 28
      %v1691 = vpop.permute.xlu0 %1690
      %1692 = vrot.lane.b32.xlu0 %v809, 28
      %v1693 = vpop.permute.xlu0 %1692
      %1694 = vrot.lane.b32.xlu0 %v810, 28
      %v1695 = vpop.permute.xlu0 %1694
      %1696 = vrot.lane.b32.xlu0 %v811, 28
      %v1697 = vpop.permute.xlu0 %1696
      %1698 = vrot.lane.b32.xlu0 %v812, 28
      %v1699 = vpop.permute.xlu0 %1698
      %1700 = vrot.lane.b32.xlu0 %v813, 28
      %v1701 = vpop.permute.xlu0 %1700
      %1702 = vrot.lane.b32.xlu0 %v814, 28
      %v1703 = vpop.permute.xlu0 %1702
      %1704 = vrot.lane.b32.xlu0 %v815, 28
      %v1705 = vpop.permute.xlu0 %1704
      %1706 = vrot.lane.b32.xlu0 %v816, 28
      %v1707 = vpop.permute.xlu0 %1706
      %1708 = vrot.lane.b32.xlu0 %v817, 28
      %v1709 = vpop.permute.xlu0 %1708
      %1710 = vrot.lane.b32.xlu0 %v818, 28
      %v1711 = vpop.permute.xlu0 %1710
      %1712 = vrot.lane.b32.xlu0 %v819, 28
      %v1713 = vpop.permute.xlu0 %1712
      %1714 = vrot.lane.b32.xlu0 %v820, 28
      %v1715 = vpop.permute.xlu0 %1714
      %1716 = vrot.lane.b32.xlu0 %v821, 28
      %v1717 = vpop.permute.xlu0 %1716
      %1782 = vrot.lane.b32.xlu0 %v822, 32
      %v1783 = vpop.permute.xlu0 %1782
      %1784 = vrot.lane.b32.xlu0 %v823, 32
      %v1785 = vpop.permute.xlu0 %1784
      %1786 = vrot.lane.b32.xlu0 %v824, 32
      %v1787 = vpop.permute.xlu0 %1786
      %1788 = vrot.lane.b32.xlu0 %v825, 32
      %v1789 = vpop.permute.xlu0 %1788
      %1790 = vrot.lane.b32.xlu0 %v826, 32
      %v1791 = vpop.permute.xlu0 %1790
      %1792 = vrot.lane.b32.xlu0 %v827, 32
      %v1793 = vpop.permute.xlu0 %1792
      %1794 = vrot.lane.b32.xlu0 %v828, 32
      %v1795 = vpop.permute.xlu0 %1794
      %1796 = vrot.lane.b32.xlu0 %v829, 32
      %v1797 = vpop.permute.xlu0 %1796
      %1798 = vrot.lane.b32.xlu0 %v830, 32
      %v1799 = vpop.permute.xlu0 %1798
      %1800 = vrot.lane.b32.xlu0 %v831, 32
      %v1801 = vpop.permute.xlu0 %1800
      %1802 = vrot.lane.b32.xlu0 %v832, 32
      %v1803 = vpop.permute.xlu0 %1802
      %1804 = vrot.lane.b32.xlu0 %v833, 32
      %v1805 = vpop.permute.xlu0 %1804
      %1806 = vrot.lane.b32.xlu0 %v834, 32
      %v1807 = vpop.permute.xlu0 %1806
      %1808 = vrot.lane.b32.xlu0 %v835, 32
      %v1809 = vpop.permute.xlu0 %1808
      %1810 = vrot.lane.b32.xlu0 %v836, 32
      %v1811 = vpop.permute.xlu0 %1810
      %1812 = vrot.lane.b32.xlu0 %v837, 32
      %v1813 = vpop.permute.xlu0 %1812
      %1814 = vrot.lane.b32.xlu0 %v838, 32
      %v1815 = vpop.permute.xlu0 %1814
      %1816 = vrot.lane.b32.xlu0 %v839, 32
      %v1817 = vpop.permute.xlu0 %1816
      %1818 = vrot.lane.b32.xlu0 %v840, 32
      %v1819 = vpop.permute.xlu0 %1818
      %1820 = vrot.lane.b32.xlu0 %v841, 32
      %v1821 = vpop.permute.xlu0 %1820
      %1822 = vrot.lane.b32.xlu0 %v842, 32
      %v1823 = vpop.permute.xlu0 %1822
      %1824 = vrot.lane.b32.xlu0 %v843, 32
      %v1825 = vpop.permute.xlu0 %1824
      %1826 = vrot.lane.b32.xlu0 %v844, 32
      %v1827 = vpop.permute.xlu0 %1826
      %1828 = vrot.lane.b32.xlu0 %v845, 32
      %v1829 = vpop.permute.xlu0 %1828
      %1830 = vrot.lane.b32.xlu0 %v846, 32
      %v1831 = vpop.permute.xlu0 %1830
      %1832 = vrot.lane.b32.xlu0 %v847, 32
      %v1833 = vpop.permute.xlu0 %1832
      %1834 = vrot.lane.b32.xlu0 %v848, 32
      %v1835 = vpop.permute.xlu0 %1834
      %1836 = vrot.lane.b32.xlu0 %v849, 32
      %v1837 = vpop.permute.xlu0 %1836
      %1838 = vrot.lane.b32.xlu0 %v850, 32
      %v1839 = vpop.permute.xlu0 %1838
      %1840 = vrot.lane.b32.xlu0 %v851, 32
      %v1841 = vpop.permute.xlu0 %1840
      %1842 = vrot.lane.b32.xlu0 %v852, 32
      %v1843 = vpop.permute.xlu0 %1842
      %1844 = vrot.lane.b32.xlu0 %v853, 32
      %v1845 = vpop.permute.xlu0 %1844
      %v1878 = vsel %vm532, %v565, %v887
      %v1879 = vsel %vm532, %v566, %v889
      %v1880 = vsel %vm532, %v567, %v891
      %v1881 = vsel %vm532, %v568, %v893
      %v1882 = vsel %vm532, %v569, %v895
      %v1883 = vsel %vm532, %v570, %v897
      %v1884 = vsel %vm532, %v571, %v899
      %v1885 = vsel %vm532, %v572, %v901
      %v1886 = vsel %vm532, %v573, %v903
      %v1887 = vsel %vm532, %v574, %v905
      %v1888 = vsel %vm532, %v575, %v907
      %v1889 = vsel %vm532, %v576, %v909
      %v1890 = vsel %vm532, %v577, %v911
      %v1891 = vsel %vm532, %v578, %v913
      %v1892 = vsel %vm532, %v579, %v915
      %v1893 = vsel %vm532, %v580, %v917
      %v1894 = vsel %vm532, %v581, %v919
      %v1895 = vsel %vm532, %v582, %v921
      %v1896 = vsel %vm532, %v583, %v923
      %v1897 = vsel %vm532, %v584, %v925
      %v1898 = vsel %vm532, %v585, %v927
      %v1899 = vsel %vm532, %v586, %v929
      %v1900 = vsel %vm532, %v587, %v931
      %v1901 = vsel %vm532, %v588, %v933
      %v1902 = vsel %vm532, %v589, %v935
      %v1903 = vsel %vm532, %v590, %v937
      %v1904 = vsel %vm532, %v591, %v939
      %v1905 = vsel %vm532, %v592, %v941
      %v1906 = vsel %vm532, %v593, %v943
      %v1907 = vsel %vm532, %v594, %v945
      %v1908 = vsel %vm532, %v595, %v947
      %v1909 = vsel %vm532, %v596, %v949
      %vm1910 = vcmask 64512
      %v1911 = vsel %vm1910, %v1878, %v1015
      %v1912 = vsel %vm1910, %v1879, %v1017
      %v1913 = vsel %vm1910, %v1880, %v1019
      %v1914 = vsel %vm1910, %v1881, %v1021
      %v1915 = vsel %vm1910, %v1882, %v1023
      %v1916 = vsel %vm1910, %v1883, %v1025
      %v1917 = vsel %vm1910, %v1884, %v1027
      %v1918 = vsel %vm1910, %v1885, %v1029
      %v1919 = vsel %vm1910, %v1886, %v1031
      %v1920 = vsel %vm1910, %v1887, %v1033
      %v1921 = vsel %vm1910, %v1888, %v1035
      %v1922 = vsel %vm1910, %v1889, %v1037
      %v1923 = vsel %vm1910, %v1890, %v1039
      %v1924 = vsel %vm1910, %v1891, %v1041
      %v1925 = vsel %vm1910, %v1892, %v1043
      %v1926 = vsel %vm1910, %v1893, %v1045
      %v1927 = vsel %vm1910, %v1894, %v1047
      %v1928 = vsel %vm1910, %v1895, %v1049
      %v1929 = vsel %vm1910, %v1896, %v1051
      %v1930 = vsel %vm1910, %v1897, %v1053
      %v1931 = vsel %vm1910, %v1898, %v1055
      %v1932 = vsel %vm1910, %v1899, %v1057
      %v1933 = vsel %vm1910, %v1900, %v1059
      %v1934 = vsel %vm1910, %v1901, %v1061
      %v1935 = vsel %vm1910, %v1902, %v1063
      %v1936 = vsel %vm1910, %v1903, %v1065
      %v1937 = vsel %vm1910, %v1904, %v1067
      %v1938 = vsel %vm1910, %v1905, %v1069
      %v1939 = vsel %vm1910, %v1906, %v1071
      %v1940 = vsel %vm1910, %v1907, %v1073
      %v1941 = vsel %vm1910, %v1908, %v1075
      %v1942 = vsel %vm1910, %v1909, %v1077
      %vm1943 = vcmask 97280
      %v1944 = vsel %vm1943, %v1911, %v1143
      %v1945 = vsel %vm1943, %v1912, %v1145
      %v1946 = vsel %vm1943, %v1913, %v1147
      %v1947 = vsel %vm1943, %v1914, %v1149
      %v1948 = vsel %vm1943, %v1915, %v1151
      %v1949 = vsel %vm1943, %v1916, %v1153
      %v1950 = vsel %vm1943, %v1917, %v1155
      %v1951 = vsel %vm1943, %v1918, %v1157
      %v1952 = vsel %vm1943, %v1919, %v1159
      %v1953 = vsel %vm1943, %v1920, %v1161
      %v1954 = vsel %vm1943, %v1921, %v1163
      %v1955 = vsel %vm1943, %v1922, %v1165
      %v1956 = vsel %vm1943, %v1923, %v1167
      %v1957 = vsel %vm1943, %v1924, %v1169
      %v1958 = vsel %vm1943, %v1925, %v1171
      %v1959 = vsel %vm1943, %v1926, %v1173
      %v1960 = vsel %vm1943, %v1927, %v1175
      %v1961 = vsel %vm1943, %v1928, %v1177
      %v1962 = vsel %vm1943, %v1929, %v1179
      %v1963 = vsel %vm1943, %v1930, %v1181
      %v1964 = vsel %vm1943, %v1931, %v1183
      %v1965 = vsel %vm1943, %v1932, %v1185
      %v1966 = vsel %vm1943, %v1933, %v1187
      %v1967 = vsel %vm1943, %v1934, %v1189
      %v1968 = vsel %vm1943, %v1935, %v1191
      %v1969 = vsel %vm1943, %v1936, %v1193
      %v1970 = vsel %vm1943, %v1937, %v1195
      %v1971 = vsel %vm1943, %v1938, %v1197
      %v1972 = vsel %vm1943, %v1939, %v1199
      %v1973 = vsel %vm1943, %v1940, %v1201
      %v1974 = vsel %vm1943, %v1941, %v1203
      %v1975 = vsel %vm1943, %v1942, %v1205
      %vm1976 = vcmask 130048
      %v1977 = vsel %vm1976, %v1944, %v1271
      %v1978 = vsel %vm1976, %v1945, %v1273
      %v1979 = vsel %vm1976, %v1946, %v1275
      %v1980 = vsel %vm1976, %v1947, %v1277
      %v1981 = vsel %vm1976, %v1948, %v1279
      %v1982 = vsel %vm1976, %v1949, %v1281
      %v1983 = vsel %vm1976, %v1950, %v1283
      %v1984 = vsel %vm1976, %v1951, %v1285
      %v1985 = vsel %vm1976, %v1952, %v1287
      %v1986 = vsel %vm1976, %v1953, %v1289
      %v1987 = vsel %vm1976, %v1954, %v1291
      %v1988 = vsel %vm1976, %v1955, %v1293
      %v1989 = vsel %vm1976, %v1956, %v1295
      %v1990 = vsel %vm1976, %v1957, %v1297
      %v1991 = vsel %vm1976, %v1958, %v1299
      %v1992 = vsel %vm1976, %v1959, %v1301
      %v1993 = vsel %vm1976, %v1960, %v1303
      %v1994 = vsel %vm1976, %v1961, %v1305
      %v1995 = vsel %vm1976, %v1962, %v1307
      %v1996 = vsel %vm1976, %v1963, %v1309
      %v1997 = vsel %vm1976, %v1964, %v1311
      %v1998 = vsel %vm1976, %v1965, %v1313
      %v1999 = vsel %vm1976, %v1966, %v1315
      %v2000 = vsel %vm1976, %v1967, %v1317
      %v2001 = vsel %vm1976, %v1968, %v1319
      %v2002 = vsel %vm1976, %v1969, %v1321
      %v2003 = vsel %vm1976, %v1970, %v1323
      %v2004 = vsel %vm1976, %v1971, %v1325
      %v2005 = vsel %vm1976, %v1972, %v1327
      %v2006 = vsel %vm1976, %v1973, %v1329
      %v2007 = vsel %vm1976, %v1974, %v1331
      %v2008 = vsel %vm1976, %v1975, %v1333
      %vm2009 = vcmask 162816
      %v2010 = vsel %vm2009, %v1977, %v1399
      %v2011 = vsel %vm2009, %v1978, %v1401
      %v2012 = vsel %vm2009, %v1979, %v1403
      %v2013 = vsel %vm2009, %v1980, %v1405
      %v2014 = vsel %vm2009, %v1981, %v1407
      %v2015 = vsel %vm2009, %v1982, %v1409
      %v2016 = vsel %vm2009, %v1983, %v1411
      %v2017 = vsel %vm2009, %v1984, %v1413
      %v2018 = vsel %vm2009, %v1985, %v1415
      %v2019 = vsel %vm2009, %v1986, %v1417
      %v2020 = vsel %vm2009, %v1987, %v1419
      %v2021 = vsel %vm2009, %v1988, %v1421
      %v2022 = vsel %vm2009, %v1989, %v1423
      %v2023 = vsel %vm2009, %v1990, %v1425
      %v2024 = vsel %vm2009, %v1991, %v1427
      %v2025 = vsel %vm2009, %v1992, %v1429
      %v2026 = vsel %vm2009, %v1993, %v1431
      %v2027 = vsel %vm2009, %v1994, %v1433
      %v2028 = vsel %vm2009, %v1995, %v1435
      %v2029 = vsel %vm2009, %v1996, %v1437
      %v2030 = vsel %vm2009, %v1997, %v1439
      %v2031 = vsel %vm2009, %v1998, %v1441
      %v2032 = vsel %vm2009, %v1999, %v1443
      %v2033 = vsel %vm2009, %v2000, %v1445
      %v2034 = vsel %vm2009, %v2001, %v1447
      %v2035 = vsel %vm2009, %v2002, %v1449
      %v2036 = vsel %vm2009, %v2003, %v1451
      %v2037 = vsel %vm2009, %v2004, %v1453
      %v2038 = vsel %vm2009, %v2005, %v1455
      %v2039 = vsel %vm2009, %v2006, %v1457
      %v2040 = vsel %vm2009, %v2007, %v1459
      %v2041 = vsel %vm2009, %v2008, %v1461
      %vm2042 = vcmask 195584
      %v2043 = vsel %vm2042, %v2010, %v1527
      %v2044 = vsel %vm2042, %v2011, %v1529
      %v2045 = vsel %vm2042, %v2012, %v1531
      %v2046 = vsel %vm2042, %v2013, %v1533
      %v2047 = vsel %vm2042, %v2014, %v1535
      %v2048 = vsel %vm2042, %v2015, %v1537
      %v2049 = vsel %vm2042, %v2016, %v1539
      %v2050 = vsel %vm2042, %v2017, %v1541
      %v2051 = vsel %vm2042, %v2018, %v1543
      %v2052 = vsel %vm2042, %v2019, %v1545
      %v2053 = vsel %vm2042, %v2020, %v1547
      %v2054 = vsel %vm2042, %v2021, %v1549
      %v2055 = vsel %vm2042, %v2022, %v1551
      %v2056 = vsel %vm2042, %v2023, %v1553
      %v2057 = vsel %vm2042, %v2024, %v1555
      %v2058 = vsel %vm2042, %v2025, %v1557
      %v2059 = vsel %vm2042, %v2026, %v1559
      %v2060 = vsel %vm2042, %v2027, %v1561
      %v2061 = vsel %vm2042, %v2028, %v1563
      %v2062 = vsel %vm2042, %v2029, %v1565
      %v2063 = vsel %vm2042, %v2030, %v1567
      %v2064 = vsel %vm2042, %v2031, %v1569
      %v2065 = vsel %vm2042, %v2032, %v1571
      %v2066 = vsel %vm2042, %v2033, %v1573
      %v2067 = vsel %vm2042, %v2034, %v1575
      %v2068 = vsel %vm2042, %v2035, %v1577
      %v2069 = vsel %vm2042, %v2036, %v1579
      %v2070 = vsel %vm2042, %v2037, %v1581
      %v2071 = vsel %vm2042, %v2038, %v1583
      %v2072 = vsel %vm2042, %v2039, %v1585
      %v2073 = vsel %vm2042, %v2040, %v1587
      %v2074 = vsel %vm2042, %v2041, %v1589
      %vm2075 = vcmask 228352
      %v2076 = vsel %vm2075, %v2043, %v1655
      %v2077 = vsel %vm2075, %v2044, %v1657
      %v2078 = vsel %vm2075, %v2045, %v1659
      %v2079 = vsel %vm2075, %v2046, %v1661
      %v2080 = vsel %vm2075, %v2047, %v1663
      %v2081 = vsel %vm2075, %v2048, %v1665
      %v2082 = vsel %vm2075, %v2049, %v1667
      %v2083 = vsel %vm2075, %v2050, %v1669
      %v2084 = vsel %vm2075, %v2051, %v1671
      %v2085 = vsel %vm2075, %v2052, %v1673
      %v2086 = vsel %vm2075, %v2053, %v1675
      %v2087 = vsel %vm2075, %v2054, %v1677
      %v2088 = vsel %vm2075, %v2055, %v1679
      %v2089 = vsel %vm2075, %v2056, %v1681
      %v2090 = vsel %vm2075, %v2057, %v1683
      %v2091 = vsel %vm2075, %v2058, %v1685
      %v2092 = vsel %vm2075, %v2059, %v1687
      %v2093 = vsel %vm2075, %v2060, %v1689
      %v2094 = vsel %vm2075, %v2061, %v1691
      %v2095 = vsel %vm2075, %v2062, %v1693
      %v2096 = vsel %vm2075, %v2063, %v1695
      %v2097 = vsel %vm2075, %v2064, %v1697
      %v2098 = vsel %vm2075, %v2065, %v1699
      %v2099 = vsel %vm2075, %v2066, %v1701
      %v2100 = vsel %vm2075, %v2067, %v1703
      %v2101 = vsel %vm2075, %v2068, %v1705
      %v2102 = vsel %vm2075, %v2069, %v1707
      %v2103 = vsel %vm2075, %v2070, %v1709
      %v2104 = vsel %vm2075, %v2071, %v1711
      %v2105 = vsel %vm2075, %v2072, %v1713
      %v2106 = vsel %vm2075, %v2073, %v1715
      %v2107 = vsel %vm2075, %v2074, %v1717
      %vm2108 = vcmask 261120
      %v2109 = vsel %vm2108, %v2076, %v1783
      %v2110 = vsel %vm2108, %v2077, %v1785
      %v2111 = vsel %vm2108, %v2078, %v1787
      %v2112 = vsel %vm2108, %v2079, %v1789
      %v2113 = vsel %vm2108, %v2080, %v1791
      %v2114 = vsel %vm2108, %v2081, %v1793
      %v2115 = vsel %vm2108, %v2082, %v1795
      %v2116 = vsel %vm2108, %v2083, %v1797
      %v2117 = vsel %vm2108, %v2084, %v1799
      %v2118 = vsel %vm2108, %v2085, %v1801
      %v2119 = vsel %vm2108, %v2086, %v1803
      %v2120 = vsel %vm2108, %v2087, %v1805
      %v2121 = vsel %vm2108, %v2088, %v1807
      %v2122 = vsel %vm2108, %v2089, %v1809
      %v2123 = vsel %vm2108, %v2090, %v1811
      %v2124 = vsel %vm2108, %v2091, %v1813
      %v2125 = vsel %vm2108, %v2092, %v1815
      %v2126 = vsel %vm2108, %v2093, %v1817
      %v2127 = vsel %vm2108, %v2094, %v1819
      %v2128 = vsel %vm2108, %v2095, %v1821
      %v2129 = vsel %vm2108, %v2096, %v1823
      %v2130 = vsel %vm2108, %v2097, %v1825
      %v2131 = vsel %vm2108, %v2098, %v1827
      %v2132 = vsel %vm2108, %v2099, %v1829
      %v2133 = vsel %vm2108, %v2100, %v1831
      %v2134 = vsel %vm2108, %v2101, %v1833
      %v2135 = vsel %vm2108, %v2102, %v1835
      %v2136 = vsel %vm2108, %v2103, %v1837
      %v2137 = vsel %vm2108, %v2104, %v1839
      %v2138 = vsel %vm2108, %v2105, %v1841
      %v2139 = vsel %vm2108, %v2106, %v1843
      %v2140 = vsel %vm2108, %v2107, %v1845
      %v2141 = vpack.c.bf16 %v2110, %v2109
      %v2142 = vpack.c.bf16 %v2112, %v2111
      %v2143 = vpack.c.bf16 %v2114, %v2113
      %v2144 = vpack.c.bf16 %v2116, %v2115
      %v2145 = vpack.c.bf16 %v2118, %v2117
      %v2146 = vpack.c.bf16 %v2120, %v2119
      %v2147 = vpack.c.bf16 %v2122, %v2121
      %v2148 = vpack.c.bf16 %v2124, %v2123
      %v2149 = vpack.c.bf16 %v2126, %v2125
      %v2150 = vpack.c.bf16 %v2128, %v2127
      %v2151 = vpack.c.bf16 %v2130, %v2129
      %v2152 = vpack.c.bf16 %v2132, %v2131
      %v2153 = vpack.c.bf16 %v2134, %v2133
      %v2154 = vpack.c.bf16 %v2136, %v2135
      %v2155 = vpack.c.bf16 %v2138, %v2137
      %v2156 = vpack.c.bf16 %v2140, %v2139
      %v2157 = vld [vmem:[%s3] sm:$0xf]
      %v2158 = vld [vmem:[%s3 + $0x4] sm:$0xf]
      %v2159 = vld [vmem:[%s3 + $0x8] sm:$0xf]
      %v2160 = vld [vmem:[%s3 + $0xc] sm:$0xf]
      %v2161 = vld [vmem:[%s3 + $0x10] sm:$0x3]
      %v2167 = vunpack.c.l.b16 %v2157
      %v2168 = vunpack.c.l.b16 %v2158
      %v2169 = vunpack.c.l.b16 %v2159
      %v2170 = vunpack.c.l.b16 %v2160
      %v2171 = vunpack.c.l.b16 %v2161
      %v2172 = vpack.c.b16 %v2168, %v2167
      %v2173 = vpack.c.b16 %v2170, %v2169
      %v2174 = vpack.c.b16 %v2171, %v2171
      %vm2177 = vcmask 293888
      %v2179 = vsel %vm2177, %v2141, 0
      %v2182 = vsel %vm2177, %v2142, 0
      %v2185 = vsel %vm2177, %v2143, 0
      %v2188 = vsel %vm2177, %v2144, 0
      %v2191 = vsel %vm2177, %v2145, 0
      %v2194 = vsel %vm2177, %v2146, 0
      %v2197 = vsel %vm2177, %v2147, 0
      %v2200 = vsel %vm2177, %v2148, 0
      %v2203 = vsel %vm2177, %v2149, 0
      %v2206 = vsel %vm2177, %v2150, 0
      %v2209 = vsel %vm2177, %v2151, 0
      %v2212 = vsel %vm2177, %v2152, 0
      %v2215 = vsel %vm2177, %v2153, 0
      %v2218 = vsel %vm2177, %v2154, 0
      %v2221 = vsel %vm2177, %v2155, 0
      %v2224 = vsel %vm2177, %v2156, 0
      %vm2226 = vcmask 1041408
      %v2228 = vsel %vm2226, %v2174, 0
      %2230 = vmatprep.subr.bf16.mxu0 0
      %2231 = vmatpush1.bf16.msra.mxu0 %v2172
      %2232 = vmatprep.subr.bf16.mxu0 0
      %2233 = vmatpush1.bf16.msra.mxu0 %v2173
      %2234 = vmatprep.subr.bf16.mxu0 0
      %2235 = vmatpush1.bf16.msra.mxu0 %v2228
      %2236 = vmatprep.subr.bf16.mxu0 0
      %2237 = vmatpush1.bf16.msra.mxu0 0
      %2238 = vmatprep.subr.bf16.mxu0 0
      %2239 = vmatpush1.bf16.msra.mxu0 0
      %2240 = vmatprep.subr.bf16.mxu0 0
      %2241 = vmatpush1.bf16.msra.mxu0 0
      %2242 = vmatprep.subr.bf16.mxu0 0
      %2243 = vmatpush1.bf16.msra.mxu0 0
      %2244 = vmatprep.subr.bf16.mxu0 0
      %2245 = vmatpush1.bf16.msra.mxu0 0
      %2246 = vmatprep.subr.bf16.mxu0 0
      %2247 = vmatpush1.bf16.msra.mxu0 0
      %2248 = vmatprep.subr.bf16.mxu0 0
      %2249 = vmatpush1.bf16.msra.mxu0 0
      %2250 = vmatprep.subr.bf16.mxu0 0
      %2251 = vmatpush1.bf16.msra.mxu0 0
      %2252 = vmatprep.subr.bf16.mxu0 0
      %2253 = vmatpush1.bf16.msra.mxu0 0
      %2254 = vmatprep.subr.bf16.mxu0 0
      %2255 = vmatpush1.bf16.msra.mxu0 0
      %2256 = vmatprep.subr.bf16.mxu0 0
      %2257 = vmatpush1.bf16.msra.mxu0 0
      %2258 = vmatprep.subr.bf16.mxu0 0
      %2259 = vmatpush1.bf16.msra.mxu0 0
      %2260 = vmatprep.subr.bf16.mxu0 0
      %2261 = vmatpush1.bf16.msra.mxu0 0
      %2262 = vmatprep.mubr.bf16.mxu0 0
      %2263 = vmatmul.mubr.bf16.gmra.mrb[0].mxu0 %v2179
      %v2264 = vpop.f32.mrb[0].mxu0
      %v2265 = vadd.f32 0.0, %v2264
      %v2266 = vpop.f32.mrb[0].mxu0
      %v2267 = vpop.f32.mrb[0].mxu0
      %v2268 = vadd.f32 0.0, %v2267
      %v2269 = vpop.f32.mrb[0].mxu0
      %2270 = vmatprep.mubr.bf16.mxu0 0
      %2271 = vmatmul.mubr.bf16.gmra.mrb[0].mxu0 %v2182
      %v2272 = vpop.f32.mrb[0].mxu0
      %v2273 = vadd.f32 0.0, %v2272
      %v2274 = vpop.f32.mrb[0].mxu0
      %v2275 = vpop.f32.mrb[0].mxu0
      %v2276 = vadd.f32 0.0, %v2275
      %v2277 = vpop.f32.mrb[0].mxu0
      %2278 = vmatprep.mubr.bf16.mxu0 0
      %2279 = vmatmul.mubr.bf16.gmra.mrb[0].mxu0 %v2185
      %v2280 = vpop.f32.mrb[0].mxu0
      %v2281 = vadd.f32 0.0, %v2280
      %v2282 = vpop.f32.mrb[0].mxu0
      %v2283 = vpop.f32.mrb[0].mxu0
      %v2284 = vadd.f32 0.0, %v2283
      %v2285 = vpop.f32.mrb[0].mxu0
      %2286 = vmatprep.mubr.bf16.mxu0 0
      %2287 = vmatmul.mubr.bf16.gmra.mrb[0].mxu0 %v2188
      %v2288 = vpop.f32.mrb[0].mxu0
      %v2289 = vadd.f32 0.0, %v2288
      %v2290 = vpop.f32.mrb[0].mxu0
      %v2291 = vpop.f32.mrb[0].mxu0
      %v2292 = vadd.f32 0.0, %v2291
      %v2293 = vpop.f32.mrb[0].mxu0
      %2294 = vmatprep.mubr.bf16.mxu0 0
      %2295 = vmatmul.mubr.bf16.gmra.mrb[0].mxu0 %v2191
      %v2296 = vpop.f32.mrb[0].mxu0
      %v2297 = vadd.f32 0.0, %v2296
      %v2298 = vpop.f32.mrb[0].mxu0
      %v2299 = vpop.f32.mrb[0].mxu0
      %v2300 = vadd.f32 0.0, %v2299
      %v2301 = vpop.f32.mrb[0].mxu0
      %2302 = vmatprep.mubr.bf16.mxu0 0
      %2303 = vmatmul.mubr.bf16.gmra.mrb[0].mxu0 %v2194
      %v2304 = vpop.f32.mrb[0].mxu0
      %v2305 = vadd.f32 0.0, %v2304
      %v2306 = vpop.f32.mrb[0].mxu0
      %v2307 = vpop.f32.mrb[0].mxu0
      %v2308 = vadd.f32 0.0, %v2307
      %v2309 = vpop.f32.mrb[0].mxu0
      %2310 = vmatprep.mubr.bf16.mxu0 0
      %2311 = vmatmul.mubr.bf16.gmra.mrb[0].mxu0 %v2197
      %v2312 = vpop.f32.mrb[0].mxu0
      %v2313 = vadd.f32 0.0, %v2312
      %v2314 = vpop.f32.mrb[0].mxu0
      %v2315 = vpop.f32.mrb[0].mxu0
      %v2316 = vadd.f32 0.0, %v2315
      %v2317 = vpop.f32.mrb[0].mxu0
      %2318 = vmatprep.mubr.bf16.mxu0 0
      %2319 = vmatmul.mubr.bf16.gmra.mrb[0].mxu0 %v2200
      %v2320 = vpop.f32.mrb[0].mxu0
      %v2321 = vadd.f32 0.0, %v2320
      %v2322 = vpop.f32.mrb[0].mxu0
      %v2323 = vpop.f32.mrb[0].mxu0
      %v2324 = vadd.f32 0.0, %v2323
      %v2325 = vpop.f32.mrb[0].mxu0
      %2326 = vmatprep.mubr.bf16.mxu0 0
      %2327 = vmatmul.mubr.bf16.gmra.mrb[0].mxu0 %v2203
      %v2328 = vpop.f32.mrb[0].mxu0
      %v2329 = vadd.f32 0.0, %v2328
      %v2330 = vpop.f32.mrb[0].mxu0
      %v2331 = vpop.f32.mrb[0].mxu0
      %v2332 = vadd.f32 0.0, %v2331
      %v2333 = vpop.f32.mrb[0].mxu0
      %2334 = vmatprep.mubr.bf16.mxu0 0
      %2335 = vmatmul.mubr.bf16.gmra.mrb[0].mxu0 %v2206
      %v2336 = vpop.f32.mrb[0].mxu0
      %v2337 = vadd.f32 0.0, %v2336
      %v2338 = vpop.f32.mrb[0].mxu0
      %v2339 = vpop.f32.mrb[0].mxu0
      %v2340 = vadd.f32 0.0, %v2339
      %v2341 = vpop.f32.mrb[0].mxu0
      %2342 = vmatprep.mubr.bf16.mxu0 0
      %2343 = vmatmul.mubr.bf16.gmra.mrb[0].mxu0 %v2209
      %v2344 = vpop.f32.mrb[0].mxu0
      %v2345 = vadd.f32 0.0, %v2344
      %v2346 = vpop.f32.mrb[0].mxu0
      %v2347 = vpop.f32.mrb[0].mxu0
      %v2348 = vadd.f32 0.0, %v2347
      %v2349 = vpop.f32.mrb[0].mxu0
      %2350 = vmatprep.mubr.bf16.mxu0 0
      %2351 = vmatmul.mubr.bf16.gmra.mrb[0].mxu0 %v2212
      %v2352 = vpop.f32.mrb[0].mxu0
      %v2353 = vadd.f32 0.0, %v2352
      %v2354 = vpop.f32.mrb[0].mxu0
      %v2355 = vpop.f32.mrb[0].mxu0
      %v2356 = vadd.f32 0.0, %v2355
      %v2357 = vpop.f32.mrb[0].mxu0
      %2358 = vmatprep.mubr.bf16.mxu0 0
      %2359 = vmatmul.mubr.bf16.gmra.mrb[0].mxu0 %v2215
      %v2360 = vpop.f32.mrb[0].mxu0
      %v2361 = vadd.f32 0.0, %v2360
      %v2362 = vpop.f32.mrb[0].mxu0
      %v2363 = vpop.f32.mrb[0].mxu0
      %v2364 = vadd.f32 0.0, %v2363
      %v2365 = vpop.f32.mrb[0].mxu0
      %2366 = vmatprep.mubr.bf16.mxu0 0
      %2367 = vmatmul.mubr.bf16.gmra.mrb[0].mxu0 %v2218
      %v2368 = vpop.f32.mrb[0].mxu0
      %v2369 = vadd.f32 0.0, %v2368
      %v2370 = vpop.f32.mrb[0].mxu0
      %v2371 = vpop.f32.mrb[0].mxu0
      %v2372 = vadd.f32 0.0, %v2371
      %v2373 = vpop.f32.mrb[0].mxu0
      %2374 = vmatprep.mubr.bf16.mxu0 0
      %2375 = vmatmul.mubr.bf16.gmra.mrb[0].mxu0 %v2221
      %v2376 = vpop.f32.mrb[0].mxu0
      %v2377 = vadd.f32 0.0, %v2376
      %v2378 = vpop.f32.mrb[0].mxu0
      %v2379 = vpop.f32.mrb[0].mxu0
      %v2380 = vadd.f32 0.0, %v2379
      %v2381 = vpop.f32.mrb[0].mxu0
      %2382 = vmatprep.mubr.bf16.mxu0 0
      %2383 = vmatmul.mubr.bf16.gmra.mrb[0].mxu0 %v2224
      %v2384 = vpop.f32.mrb[0].mxu0
      %v2385 = vadd.f32 0.0, %v2384
      %v2386 = vpop.f32.mrb[0].mxu0
      %v2387 = vpop.f32.mrb[0].mxu0
      %v2388 = vadd.f32 0.0, %v2387
      %v2389 = vpop.f32.mrb[0].mxu0
      %2390 = vdwg.mxu0
      %v2391 = vpack.c.bf16 %v2268, %v2265
      %v2392 = vpack.c.bf16 %v2276, %v2273
      %v2393 = vpack.c.bf16 %v2284, %v2281
      %v2394 = vpack.c.bf16 %v2292, %v2289
      %v2395 = vpack.c.bf16 %v2300, %v2297
      %v2396 = vpack.c.bf16 %v2308, %v2305
      %v2397 = vpack.c.bf16 %v2316, %v2313
      %v2398 = vpack.c.bf16 %v2324, %v2321
      %v2399 = vpack.c.bf16 %v2332, %v2329
      %v2400 = vpack.c.bf16 %v2340, %v2337
      %v2401 = vpack.c.bf16 %v2348, %v2345
      %v2402 = vpack.c.bf16 %v2356, %v2353
      %v2403 = vpack.c.bf16 %v2364, %v2361
      %v2404 = vpack.c.bf16 %v2372, %v2369
      %v2405 = vpack.c.bf16 %v2380, %v2377
      %v2406 = vpack.c.bf16 %v2388, %v2385
      %v2423 = vunpack.c.l.b16 %v2391
      %v2424 = vunpack.c.h.b16 %v2391
      %v2425 = vunpack.c.l.b16 %v2392
      %v2426 = vunpack.c.h.b16 %v2392
      %v2427 = vunpack.c.l.b16 %v2393
      %v2428 = vunpack.c.h.b16 %v2393
      %v2429 = vunpack.c.l.b16 %v2394
      %v2430 = vunpack.c.h.b16 %v2394
      %v2431 = vunpack.c.l.b16 %v2395
      %v2432 = vunpack.c.h.b16 %v2395
      %v2433 = vunpack.c.l.b16 %v2396
      %v2434 = vunpack.c.h.b16 %v2396
      %v2435 = vunpack.c.l.b16 %v2397
      %v2436 = vunpack.c.h.b16 %v2397
      %v2437 = vunpack.c.l.b16 %v2398
      %v2438 = vunpack.c.h.b16 %v2398
      %v2439 = vunpack.c.l.b16 %v2399
      %v2440 = vunpack.c.h.b16 %v2399
      %v2441 = vunpack.c.l.b16 %v2400
      %v2442 = vunpack.c.h.b16 %v2400
      %v2443 = vunpack.c.l.b16 %v2401
      %v2444 = vunpack.c.h.b16 %v2401
      %v2445 = vunpack.c.l.b16 %v2402
      %v2446 = vunpack.c.h.b16 %v2402
      %v2447 = vunpack.c.l.b16 %v2403
      %v2448 = vunpack.c.h.b16 %v2403
      %v2449 = vunpack.c.l.b16 %v2404
      %v2450 = vunpack.c.h.b16 %v2404
      %v2451 = vunpack.c.l.b16 %v2405
      %v2452 = vunpack.c.h.b16 %v2405
      %v2453 = vunpack.c.l.b16 %v2406
      %v2454 = vunpack.c.h.b16 %v2406
      %v2455 = vpack.c.b16 %v2423, %v2423
      %v2456 = vpack.c.b16 %v2424, %v2424
      %v2457 = vpack.c.b16 %v2425, %v2425
      %v2458 = vpack.c.b16 %v2426, %v2426
      %v2459 = vpack.c.b16 %v2427, %v2427
      %v2460 = vpack.c.b16 %v2428, %v2428
      %v2461 = vpack.c.b16 %v2429, %v2429
      %v2462 = vpack.c.b16 %v2430, %v2430
      %v2463 = vpack.c.b16 %v2431, %v2431
      %v2464 = vpack.c.b16 %v2432, %v2432
      %v2465 = vpack.c.b16 %v2433, %v2433
      %v2466 = vpack.c.b16 %v2434, %v2434
      %v2467 = vpack.c.b16 %v2435, %v2435
      %v2468 = vpack.c.b16 %v2436, %v2436
      %v2469 = vpack.c.b16 %v2437, %v2437
      %v2470 = vpack.c.b16 %v2438, %v2438
      %v2471 = vpack.c.b16 %v2439, %v2439
      %v2472 = vpack.c.b16 %v2440, %v2440
      %v2473 = vpack.c.b16 %v2441, %v2441
      %v2474 = vpack.c.b16 %v2442, %v2442
      %v2475 = vpack.c.b16 %v2443, %v2443
      %v2476 = vpack.c.b16 %v2444, %v2444
      %v2477 = vpack.c.b16 %v2445, %v2445
      %v2478 = vpack.c.b16 %v2446, %v2446
      %v2479 = vpack.c.b16 %v2447, %v2447
      %v2480 = vpack.c.b16 %v2448, %v2448
      %v2481 = vpack.c.b16 %v2449, %v2449
      %v2482 = vpack.c.b16 %v2450, %v2450
      %v2483 = vpack.c.b16 %v2451, %v2451
      %v2484 = vpack.c.b16 %v2452, %v2452
      %v2485 = vpack.c.b16 %v2453, %v2453
      %v2486 = vpack.c.b16 %v2454, %v2454
      %vm2519 = vcmask 27648
      %2520 = vst.msk [vmem:[%s285] sm:$0xf] %vm2519, %v2455
      %2521 = vst.msk [vmem:[%s285 + $0x4] sm:$0xf] %vm2519, %v2456
      %2522 = vst.msk [vmem:[%s285 + $0x8] sm:$0xf] %vm2519, %v2457
      %2523 = vst.msk [vmem:[%s285 + $0xc] sm:$0xf] %vm2519, %v2458
      %2524 = vst.msk [vmem:[%s285 + $0x10] sm:$0xf] %vm2519, %v2459
      %2525 = vst.msk [vmem:[%s285 + $0x14] sm:$0xf] %vm2519, %v2460
      %2526 = vst.msk [vmem:[%s285 + $0x18] sm:$0xf] %vm2519, %v2461
      %2527 = vst.msk [vmem:[%s285 + $0x1c] sm:$0xf] %vm2519, %v2462
      %2528 = vst.msk [vmem:[%s285 + $0x20] sm:$0xf] %vm2519, %v2463
      %2529 = vst.msk [vmem:[%s285 + $0x24] sm:$0xf] %vm2519, %v2464
      %2530 = vst.msk [vmem:[%s285 + $0x28] sm:$0xf] %vm2519, %v2465
      %2531 = vst.msk [vmem:[%s285 + $0x2c] sm:$0xf] %vm2519, %v2466
      %2532 = vst.msk [vmem:[%s285 + $0x30] sm:$0xf] %vm2519, %v2467
      %2533 = vst.msk [vmem:[%s285 + $0x34] sm:$0xf] %vm2519, %v2468
      %2534 = vst.msk [vmem:[%s285 + $0x38] sm:$0xf] %vm2519, %v2469
      %2535 = vst.msk [vmem:[%s285 + $0x3c] sm:$0xf] %vm2519, %v2470
      %2536 = vst.msk [vmem:[%s285 + $0x40] sm:$0xf] %vm2519, %v2471
      %2537 = vst.msk [vmem:[%s285 + $0x44] sm:$0xf] %vm2519, %v2472
      %2538 = vst.msk [vmem:[%s285 + $0x48] sm:$0xf] %vm2519, %v2473
      %2539 = vst.msk [vmem:[%s285 + $0x4c] sm:$0xf] %vm2519, %v2474
      %2540 = vst.msk [vmem:[%s285 + $0x50] sm:$0xf] %vm2519, %v2475
      %2541 = vst.msk [vmem:[%s285 + $0x54] sm:$0xf] %vm2519, %v2476
      %2542 = vst.msk [vmem:[%s285 + $0x58] sm:$0xf] %vm2519, %v2477
      %2543 = vst.msk [vmem:[%s285 + $0x5c] sm:$0xf] %vm2519, %v2478
      %2544 = vst.msk [vmem:[%s285 + $0x60] sm:$0xf] %vm2519, %v2479
      %2545 = vst.msk [vmem:[%s285 + $0x64] sm:$0xf] %vm2519, %v2480
      %2546 = vst.msk [vmem:[%s285 + $0x68] sm:$0xf] %vm2519, %v2481
      %2547 = vst.msk [vmem:[%s285 + $0x6c] sm:$0xf] %vm2519, %v2482
      %2548 = vst.msk [vmem:[%s285 + $0x70] sm:$0xf] %vm2519, %v2483
      %2549 = vst.msk [vmem:[%s285 + $0x74] sm:$0xf] %vm2519, %v2484
      %2550 = vst.msk [vmem:[%s285 + $0x78] sm:$0xf] %vm2519, %v2485
      %2551 = vst.msk [vmem:[%s285 + $0x7c] sm:$0xf] %vm2519, %v2486
      %v2552 = vld [vmem:[%s289] sm:$0x1]
      %v2553 = vsel %vm532, %v2265, 0.0
      %v2554 = vsel %vm532, %v2268, 0.0
      %v2555 = vadd.f32 %v2553, %v2554
      %v2556 = vsel %vm532, %v2273, 0.0
      %v2557 = vadd.f32 %v2555, %v2556
      %v2558 = vsel %vm532, %v2276, 0.0
      %v2559 = vadd.f32 %v2557, %v2558
      %v2560 = vsel %vm532, %v2281, 0.0
      %v2561 = vadd.f32 %v2559, %v2560
      %v2562 = vsel %vm532, %v2284, 0.0
      %v2563 = vadd.f32 %v2561, %v2562
      %v2564 = vsel %vm532, %v2289, 0.0
      %v2565 = vadd.f32 %v2563, %v2564
      %v2566 = vsel %vm532, %v2292, 0.0
      %v2567 = vadd.f32 %v2565, %v2566
      %v2568 = vsel %vm532, %v2297, 0.0
      %v2569 = vadd.f32 %v2567, %v2568
      %v2570 = vsel %vm532, %v2300, 0.0
      %v2571 = vadd.f32 %v2569, %v2570
      %v2572 = vsel %vm532, %v2305, 0.0
      %v2573 = vadd.f32 %v2571, %v2572
      %v2574 = vsel %vm532, %v2308, 0.0
      %v2575 = vadd.f32 %v2573, %v2574
      %v2576 = vsel %vm532, %v2313, 0.0
      %v2577 = vadd.f32 %v2575, %v2576
      %v2578 = vsel %vm532, %v2316, 0.0
      %v2579 = vadd.f32 %v2577, %v2578
      %v2580 = vsel %vm532, %v2321, 0.0
      %v2581 = vadd.f32 %v2579, %v2580
      %v2582 = vsel %vm532, %v2324, 0.0
      %v2583 = vadd.f32 %v2581, %v2582
      %v2584 = vsel %vm532, %v2329, 0.0
      %v2585 = vadd.f32 %v2583, %v2584
      %v2586 = vsel %vm532, %v2332, 0.0
      %v2587 = vadd.f32 %v2585, %v2586
      %v2588 = vsel %vm532, %v2337, 0.0
      %v2589 = vadd.f32 %v2587, %v2588
      %v2590 = vsel %vm532, %v2340, 0.0
      %v2591 = vadd.f32 %v2589, %v2590
      %v2592 = vsel %vm532, %v2345, 0.0
      %v2593 = vadd.f32 %v2591, %v2592
      %v2594 = vsel %vm532, %v2348, 0.0
      %v2595 = vadd.f32 %v2593, %v2594
      %v2596 = vsel %vm532, %v2353, 0.0
      %v2597 = vadd.f32 %v2595, %v2596
      %v2598 = vsel %vm532, %v2356, 0.0
      %v2599 = vadd.f32 %v2597, %v2598
      %v2600 = vsel %vm532, %v2361, 0.0
      %v2601 = vadd.f32 %v2599, %v2600
      %v2602 = vsel %vm532, %v2364, 0.0
      %v2603 = vadd.f32 %v2601, %v2602
      %v2604 = vsel %vm532, %v2369, 0.0
      %v2605 = vadd.f32 %v2603, %v2604
      %v2606 = vsel %vm532, %v2372, 0.0
      %v2607 = vadd.f32 %v2605, %v2606
      %v2608 = vsel %vm532, %v2377, 0.0
      %v2609 = vadd.f32 %v2607, %v2608
      %v2610 = vsel %vm532, %v2380, 0.0
      %v2611 = vadd.f32 %v2609, %v2610
      %v2612 = vsel %vm532, %v2385, 0.0
      %v2613 = vadd.f32 %v2611, %v2612
      %v2614 = vsel %vm532, %v2388, 0.0
      %v2615 = vadd.f32 %v2613, %v2614
      %v2616 = vrot.slane %v2615, 4
      %v2617 = vadd.f32 %v2615, %v2616
      %v2618 = vrot.slane %v2617, 2
      %v2619 = vadd.f32 %v2617, %v2618
      %v2620 = vrot.slane %v2619, 1
      %v2621 = vadd.f32 %v2619, %v2620
      %v2622 = vadd.f32 %v2552, %v2621
      %vm2623 = vcmask 24576
      %2624 = vst.msk [vmem:[%s289] sm:$0x1] %vm2623, %v2622
      %v2625 = vld [vmem:[%s292] sm:$0x1]
      %v2626 = vmul.f32 %v2265, %v2265
      %v2627 = vmul.f32 %v2268, %v2268
      %v2628 = vmul.f32 %v2273, %v2273
      %v2629 = vmul.f32 %v2276, %v2276
      %v2630 = vmul.f32 %v2281, %v2281
      %v2631 = vmul.f32 %v2284, %v2284
      %v2632 = vmul.f32 %v2289, %v2289
      %v2633 = vmul.f32 %v2292, %v2292
      %v2634 = vmul.f32 %v2297, %v2297
      %v2635 = vmul.f32 %v2300, %v2300
      %v2636 = vmul.f32 %v2305, %v2305
      %v2637 = vmul.f32 %v2308, %v2308
      %v2638 = vmul.f32 %v2313, %v2313
      %v2639 = vmul.f32 %v2316, %v2316
      %v2640 = vmul.f32 %v2321, %v2321
      %v2641 = vmul.f32 %v2324, %v2324
      %v2642 = vmul.f32 %v2329, %v2329
      %v2643 = vmul.f32 %v2332, %v2332
      %v2644 = vmul.f32 %v2337, %v2337
      %v2645 = vmul.f32 %v2340, %v2340
      %v2646 = vmul.f32 %v2345, %v2345
      %v2647 = vmul.f32 %v2348, %v2348
      %v2648 = vmul.f32 %v2353, %v2353
      %v2649 = vmul.f32 %v2356, %v2356
      %v2650 = vmul.f32 %v2361, %v2361
      %v2651 = vmul.f32 %v2364, %v2364
      %v2652 = vmul.f32 %v2369, %v2369
      %v2653 = vmul.f32 %v2372, %v2372
      %v2654 = vmul.f32 %v2377, %v2377
      %v2655 = vmul.f32 %v2380, %v2380
      %v2656 = vmul.f32 %v2385, %v2385
      %v2657 = vmul.f32 %v2388, %v2388
      %v2658 = vsel %vm532, %v2626, 0.0
      %v2659 = vsel %vm532, %v2627, 0.0
      %v2660 = vadd.f32 %v2658, %v2659
      %v2661 = vsel %vm532, %v2628, 0.0
      %v2662 = vadd.f32 %v2660, %v2661
      %v2663 = vsel %vm532, %v2629, 0.0
      %v2664 = vadd.f32 %v2662, %v2663
      %v2665 = vsel %vm532, %v2630, 0.0
      %v2666 = vadd.f32 %v2664, %v2665
      %v2667 = vsel %vm532, %v2631, 0.0
      %v2668 = vadd.f32 %v2666, %v2667
      %v2669 = vsel %vm532, %v2632, 0.0
      %v2670 = vadd.f32 %v2668, %v2669
      %v2671 = vsel %vm532, %v2633, 0.0
      %v2672 = vadd.f32 %v2670, %v2671
      %v2673 = vsel %vm532, %v2634, 0.0
      %v2674 = vadd.f32 %v2672, %v2673
      %v2675 = vsel %vm532, %v2635, 0.0
      %v2676 = vadd.f32 %v2674, %v2675
      %v2677 = vsel %vm532, %v2636, 0.0
      %v2678 = vadd.f32 %v2676, %v2677
      %v2679 = vsel %vm532, %v2637, 0.0
      %v2680 = vadd.f32 %v2678, %v2679
      %v2681 = vsel %vm532, %v2638, 0.0
      %v2682 = vadd.f32 %v2680, %v2681
      %v2683 = vsel %vm532, %v2639, 0.0
      %v2684 = vadd.f32 %v2682, %v2683
      %v2685 = vsel %vm532, %v2640, 0.0
      %v2686 = vadd.f32 %v2684, %v2685
      %v2687 = vsel %vm532, %v2641, 0.0
      %v2688 = vadd.f32 %v2686, %v2687
      %v2689 = vsel %vm532, %v2642, 0.0
      %v2690 = vadd.f32 %v2688, %v2689
      %v2691 = vsel %vm532, %v2643, 0.0
      %v2692 = vadd.f32 %v2690, %v2691
      %v2693 = vsel %vm532, %v2644, 0.0
      %v2694 = vadd.f32 %v2692, %v2693
      %v2695 = vsel %vm532, %v2645, 0.0
      %v2696 = vadd.f32 %v2694, %v2695
      %v2697 = vsel %vm532, %v2646, 0.0
      %v2698 = vadd.f32 %v2696, %v2697
      %v2699 = vsel %vm532, %v2647, 0.0
      %v2700 = vadd.f32 %v2698, %v2699
      %v2701 = vsel %vm532, %v2648, 0.0
      %v2702 = vadd.f32 %v2700, %v2701
      %v2703 = vsel %vm532, %v2649, 0.0
      %v2704 = vadd.f32 %v2702, %v2703
      %v2705 = vsel %vm532, %v2650, 0.0
      %v2706 = vadd.f32 %v2704, %v2705
      %v2707 = vsel %vm532, %v2651, 0.0
      %v2708 = vadd.f32 %v2706, %v2707
      %v2709 = vsel %vm532, %v2652, 0.0
      %v2710 = vadd.f32 %v2708, %v2709
      %v2711 = vsel %vm532, %v2653, 0.0
      %v2712 = vadd.f32 %v2710, %v2711
      %v2713 = vsel %vm532, %v2654, 0.0
      %v2714 = vadd.f32 %v2712, %v2713
      %v2715 = vsel %vm532, %v2655, 0.0
      %v2716 = vadd.f32 %v2714, %v2715
      %v2717 = vsel %vm532, %v2656, 0.0
      %v2718 = vadd.f32 %v2716, %v2717
      %v2719 = vsel %vm532, %v2657, 0.0
      %v2720 = vadd.f32 %v2718, %v2719
      %v2721 = vrot.slane %v2720, 4
      %v2722 = vadd.f32 %v2720, %v2721
      %v2723 = vrot.slane %v2722, 2
      %v2724 = vadd.f32 %v2722, %v2723
      %v2725 = vrot.slane %v2724, 1
      %v2726 = vadd.f32 %v2724, %v2725
      %v2727 = vadd.f32 %v2625, %v2726
      %2728 = vst.msk [vmem:[%s292] sm:$0x1] %vm2623, %v2727
      %s2729 = sadd.s32 %s22, %s23
      %p2730 = scmp.lt.s32.totalorder %s2729, 1
      %s2731 = scalar_select %p2730, %s2729, 1
      %s2732 = smul.addr %s2731, 32
      %s2733 = smul.addr %s2732, 4
      %s2734 = scalar_lea.vmem %s4, %s2733
      %p2735 = scmp.lt.s32.totalorder %s22, 1
      %s2736 = scalar_select %p2735, %s22, 1
      %s2737 = scalar_lea.vmem %s5, %s2736
      %p2738 = scmp.lt.s32.totalorder %s22, 1
      %s2739 = scalar_select %p2738, %s22, 1
      %s2740 = scalar_lea.vmem %s6, %s2739
      // Predicated region
      $region41: #{basic_block_forward.4} parent=35 // pred_check
        %p2741 = pneg %p141
      $region42: #{basic_block_forward.4} parent=35 // pred_check_branch
        %2743 = sbr.rel (%p2741) target = $region44
      $region43: #{basic_block_forward.4} parent=35 // pred_region
        %s2744 = sadd.s32 %s22, %s23
      $region44: #{basic_block_forward.4} parent=35 // pred_fallthru
        _
      // Predicated region
      $region45: #{basic_block_forward.4} parent=35 // pred_check
        %p2745 = pneg %p167
      $region46: #{basic_block_forward.4} parent=35 // pred_check_branch
        %2747 = sbr.rel (%p2745) target = $region48
      $region47: #{basic_block_forward.4} parent=35 // pred_region
        _
      $region48: #{basic_block_forward.4} parent=35 // pred_fallthru
        _
      // Predicated region
      $region49: #{basic_block_forward.4} parent=35 // pred_check
        %p2748 = pneg %p193
      $region50: #{basic_block_forward.4} parent=35 // pred_check_branch
        %2750 = sbr.rel (%p2748) target = $region52
      $region51: #{basic_block_forward.4} parent=35 // pred_region
        _
      $region52: #{basic_block_forward.4} parent=35 // pred_fallthru
        _
    $region36: #{basic_block_forward.4} parent=5 // pred_fallthru
      _
    %p2751 = scmp.le.s32.totalorder 2, %s13
    // Predicated region
    $region53: #{basic_block_forward.4} parent=5 // pred_check
      %p2752 = pneg %p2751
    $region54: #{basic_block_forward.4} parent=5 // pred_check_branch
      %2754 = sbr.rel (%p2752) target = $region56
    $region55: #{basic_block_forward.4} parent=5 // pred_region
      %s2755 = ssub.s32 %s13, 2
      // Predicated region
      $region57: #{basic_block_forward.4} parent=55 // pred_check
        %p2756 = pneg %p147
      $region58: #{basic_block_forward.4} parent=55 // pred_check_branch
        %2758 = sbr.rel (%p2756) target = $region60
      $region59: #{basic_block_forward.4} parent=55 // pred_region
        %s2759 = sadd.s32 %s24, %s25
        %p2760 = scmp.lt.s32.totalorder %s2759, 1
        %s2761 = scalar_select %p2760, %s2759, 1
        %s2762 = smul.addr %s2761, 32
        %s2763 = smul.addr %s2762, 4
        %s2764 = scalar_lea.vmem %s4, %s2763
      $region60: #{basic_block_forward.4} parent=55 // pred_fallthru
        _
      // Predicated region
      $region61: #{basic_block_forward.4} parent=55 // pred_check
        %p2765 = pneg %p173
      $region62: #{basic_block_forward.4} parent=55 // pred_check_branch
        %2767 = sbr.rel (%p2765) target = $region64
      $region63: #{basic_block_forward.4} parent=55 // pred_region
        %p2768 = scmp.lt.s32.totalorder %s24, 1
        %s2769 = scalar_select %p2768, %s24, 1
        %s2770 = scalar_lea.vmem %s5, %s2769
      $region64: #{basic_block_forward.4} parent=55 // pred_fallthru
        _
      // Predicated region
      $region65: #{basic_block_forward.4} parent=55 // pred_check
        %p2771 = pneg %p199
      $region66: #{basic_block_forward.4} parent=55 // pred_check_branch
        %2773 = sbr.rel (%p2771) target = $region68
      $region67: #{basic_block_forward.4} parent=55 // pred_region
        %p2774 = scmp.lt.s32.totalorder %s24, 1
        %s2775 = scalar_select %p2774, %s24, 1
        %s2776 = scalar_lea.vmem %s6, %s2775
      $region68: #{basic_block_forward.4} parent=55 // pred_fallthru
        _
    $region56: #{basic_block_forward.4} parent=5 // pred_fallthru
      _
  $region6: #{basic_block_forward.4} parent=0 // loop_footer
    %s17 = sadd.s32 1, %s13
  $region7: #{basic_block_forward.4} parent=0 // loop_footer_branch
    %12 = sbr.rel target = $region3
  $region8: #{basic_block_forward.4} parent=0 // loop_exit
    _

</llo_original>
